<compile_context>
chip_gen: v5e
topology: v5e:2x2
jax: 0.10.0
libtpu: 0.0.40
codegen_flags: <defaults>
</compile_context>

<pallas_src>
import functools

import jax
import jax.numpy as jnp
from jax.experimental import pallas as pl
from jax.experimental.pallas import tpu as pltpu


def _store_reflect_pad(pad_ref, v):
    """Write ReflectionPad2d(1) of v: (H, W, C) into pad_ref: (H+2, W+2, C)."""
    H, W = v.shape[0], v.shape[1]
    v = v.astype(pad_ref.dtype)
    pad_ref[1:H + 1, 1:W + 1, :] = v
    pad_ref[0:1, 1:W + 1, :] = v[1:2]                      # top    = row 1
    pad_ref[H + 1:H + 2, 1:W + 1, :] = v[H - 2:H - 1]      # bottom = row H-2
    # columns reflected from the row-padded buffer (also fills the corners)
    pad_ref[:, 0:1, :] = pad_ref[:, 2:3, :]                # left   = original col 1
    pad_ref[:, W + 1:W + 2, :] = pad_ref[:, W - 1:W, :]    # right  = original col W-2


def _conv3x3(pad_ref, slab_ref, w_ref, *, H, W, C):
    """3x3 cross-correlation as a single K=9*C matmul.

    pad_ref : (H+2, W+2, C) padded input (VMEM scratch)
    slab_ref: (H, W, 9*C)   im2col slab   (VMEM scratch)
    w_ref   : (9*C, Cout)   weights, row index = (kh*3 + kw)*C + ci
    """
    for k in range(9):
        dy, dx = divmod(k, 3)
        slab_ref[:, :, k * C:(k + 1) * C] = pad_ref[dy:dy + H, dx:dx + W, :]
    return jnp.einsum("hwk,kc->hwc", slab_ref[...], w_ref[...],
                      preferred_element_type=jnp.float32)      # f32 accumulation


def _resnet_block_kernel(x_ref, w1_ref, c1_ref, w2_ref, c2_ref, o_ref,
                         pad_ref, slab_ref, *, H, W, C):
    """Fused residual block (eval mode).

    BN scale is pre-folded into w1/w2; (conv bias + BN shift) pre-folded into c1/c2.
    The stage-1 activation `h` never leaves VMEM.
    """
    x = x_ref[0]                                               # (H, W, C)

    # ---- stage 1: reflect-pad -> conv3x3 -> BN -> ReLU
    _store_reflect_pad(pad_ref, x)
    y1 = _conv3x3(pad_ref, slab_ref, w1_ref, H=H, W=W, C=C)
    h = jnp.maximum(y1 + c1_ref[0], 0.0)                       # f32 epilogue
    # TODO(synk): training-mode Dropout(0.5) and batch-statistics BatchNorm are not
    # implemented; eval-mode semantics only (Dropout = identity, running stats).

    # ---- stage 2: reflect-pad -> conv3x3 -> BN -> residual add
    _store_reflect_pad(pad_ref, h)
    y2 = _conv3x3(pad_ref, slab_ref, w2_ref, H=H, W=W, C=C)
    o_ref[0] = (y2 + c2_ref[0] + x.astype(jnp.float32)).astype(o_ref.dtype)


def _fold_params(w_oihw, b, gamma, beta, rm, rv, *, eps, compute_dtype):
    """Fold eval-mode BatchNorm into the conv: w' = w*scale (per Cout), c = (b-rm)*scale+beta."""
    c_out, c_in = w_oihw.shape[0], w_oihw.shape[1]
    scale = gamma / jnp.sqrt(rv + eps)                                       # (Cout,)
    w = jnp.transpose(w_oihw, (2, 3, 1, 0)).reshape(9 * c_in, c_out)         # tap-major
    w = (w * scale[None, :]).astype(compute_dtype)
    c = ((b - rm) * scale + beta).astype(jnp.float32)
    return w, c.reshape(1, c_out)


def resnet_block_forward(x_nchw, params, *, compute_dtype=jnp.float32, eps=1e-5):
    """Full resnet_block forward. x_nchw: (B, C, H, W) float32."""
    B, C, H, W = x_nchw.shape
    w1, c1 = _fold_params(params["w1"], params["b1"], params["gamma1"],
                          params["beta1"], params["rm1"], params["rv1"],
                          eps=eps, compute_dtype=compute_dtype)
    w2, c2 = _fold_params(params["w2"], params["b2"], params["gamma2"],
                          params["beta2"], params["rm2"], params["rv2"],
                          eps=eps, compute_dtype=compute_dtype)

    # Single boundary transpose NCHW -> NHWC (channels on the lane axis in-kernel).
    # With C=4 the lane axis is intrinsically narrow; a fully lane-dense layout would
    # need an in-kernel relayout (merged H*W*C last dim) — left out to keep lowering robust.
    x = jnp.transpose(x_nchw, (0, 2, 3, 1)).astype(compute_dtype)

    const2 = lambda b: (0, 0)
    out = pl.pallas_call(
        functools.partial(_resnet_block_kernel, H=H, W=W, C=C),
        out_shape=jax.ShapeDtypeStruct((B, H, W, C), jnp.float32),
        grid=(B,),
        in_specs=[
            pl.BlockSpec((1, H, W, C), lambda b: (b, 0, 0, 0)),   # input (also the residual)
            pl.BlockSpec((9 * C, C), const2),                     # w1 (constant across grid)
            pl.BlockSpec((1, C), const2),                         # c1
            pl.BlockSpec((9 * C, C), const2),                     # w2
            pl.BlockSpec((1, C), const2),                         # c2
        ],
        out_specs=pl.BlockSpec((1, H, W, C), lambda b: (b, 0, 0, 0)),
        scratch_shapes=[
            pltpu.VMEM((H + 2, W + 2, C), compute_dtype),   # shared reflect-pad buffer
            pltpu.VMEM((H, W, 9 * C), compute_dtype),       # im2col slab
        ],
        compiler_params=pltpu.CompilerParams(
            dimension_semantics=("parallel",),
        ),
    )(x, w1, c1, w2, c2)
    return jnp.transpose(out, (0, 3, 1, 2))                      # NHWC -> NCHW


# ----------------------------- pure-JAX reference -----------------------------
def _ref_stage(x_nhwc, w_oihw, b, gamma, beta, rm, rv, eps=1e-5):
    xp = jnp.pad(x_nhwc, ((0, 0), (1, 1), (1, 1), (0, 0)), mode="reflect")
    w_hwio = jnp.transpose(w_oihw, (2, 3, 1, 0))
    y = jax.lax.conv_general_dilated(
        xp, w_hwio, window_strides=(1, 1), padding="VALID",
        dimension_numbers=("NHWC", "HWIO", "NHWC")) + b
    scale = gamma / jnp.sqrt(rv + eps)
    return (y - rm) * scale + beta


def resnet_block_reference(x_nchw, params, eps=1e-5):
    x = jnp.transpose(x_nchw, (0, 2, 3, 1))
    h = jnp.maximum(_ref_stage(x, params["w1"], params["b1"], params["gamma1"],
                               params["beta1"], params["rm1"], params["rv1"], eps), 0.0)
    out = _ref_stage(h, params["w2"], params["b2"], params["gamma2"],
                     params["beta2"], params["rm2"], params["rv2"], eps) + x
    return jnp.transpose(out, (0, 3, 1, 2))


if __name__ == "__main__":
    B, C, H, W = 2, 4, 16, 16
    key = jax.random.PRNGKey(0)
    ks = jax.random.split(key, 13)

    params = {
        "w1": 0.1 * jax.random.normal(ks[0], (C, C, 3, 3), jnp.float32),
        "b1": 0.1 * jax.random.normal(ks[1], (C,), jnp.float32),
        "gamma1": 1.0 + 0.1 * jax.random.normal(ks[2], (C,), jnp.float32),
        "beta1": 0.1 * jax.random.normal(ks[3], (C,), jnp.float32),
        "rm1": 0.1 * jax.random.normal(ks[4], (C,), jnp.float32),
        "rv1": 0.5 + jnp.abs(jax.random.normal(ks[5], (C,), jnp.float32)),
        "w2": 0.1 * jax.random.normal(ks[6], (C, C, 3, 3), jnp.float32),
        "b2": 0.1 * jax.random.normal(ks[7], (C,), jnp.float32),
        "gamma2": 1.0 + 0.1 * jax.random.normal(ks[8], (C,), jnp.float32),
        "beta2": 0.1 * jax.random.normal(ks[9], (C,), jnp.float32),
        "rm2": 0.1 * jax.random.normal(ks[10], (C,), jnp.float32),
        "rv2": 0.5 + jnp.abs(jax.random.normal(ks[11], (C,), jnp.float32)),
    }
    x = jax.random.normal(ks[12], (B, C, H, W), jnp.float32)

    ref = jax.block_until_ready(resnet_block_reference(x, params))

    # f32 path — exact eval-mode semantics of the PyTorch module.
    out = jax.block_until_ready(resnet_block_forward(x, params))
    assert out.shape == (B, C, H, W), out.shape
    err = float(jnp.max(jnp.abs(out - ref)))
    assert jnp.allclose(out, ref, atol=1e-4, rtol=1e-4), err

    # bf16-I/O path (halved HBM traffic, f32 accumulation + f32 epilogue) — loose check.
    out_bf16 = jax.block_until_ready(
        resnet_block_forward(x, params, compute_dtype=jnp.bfloat16))
    err_bf16 = float(jnp.max(jnp.abs(out_bf16 - ref)))
    assert jnp.allclose(out_bf16, ref, atol=1e-1, rtol=1e-1), err_bf16

    print("KERNEL_OK")
</pallas_src>

<mosaic_0001>
module attributes {stable_mosaic.version = 11 : i64} {
  func.func @_resnet_block_kernel(%arg0: i32, %arg1: memref<1x16x16x4xf32, #tpu.memory_space<vmem>>, %arg2: memref<36x4xf32, #tpu.memory_space<vmem>>, %arg3: memref<1x4xf32, #tpu.memory_space<vmem>>, %arg4: memref<36x4xf32, #tpu.memory_space<vmem>>, %arg5: memref<1x4xf32, #tpu.memory_space<vmem>>, %arg6: memref<1x16x16x4xf32, #tpu.memory_space<vmem>>, %arg7: memref<18x18x4xf32, #tpu.memory_space<vmem>>, %arg8: memref<16x16x36xf32, #tpu.memory_space<vmem>>) attributes {dimension_semantics = [#tpu.dimension_semantics<parallel>], iteration_bounds = array<i64: 2>, scalar_prefetch = 0 : i64, scratch_operands = 2 : i64, tpu.core_type = #tpu.core_type<tc>, window_params = [{transform_indices = @transform_0, window_bounds = array<i64: 1, 16, 16, 4>}, {pipeline_mode = #tpu.pipeline_mode<synchronous>, transform_indices = @transform_1, window_bounds = array<i64: 36, 4>}, {pipeline_mode = #tpu.pipeline_mode<synchronous>, transform_indices = @transform_2, window_bounds = array<i64: 1, 4>}, {pipeline_mode = #tpu.pipeline_mode<synchronous>, transform_indices = @transform_3, window_bounds = array<i64: 36, 4>}, {pipeline_mode = #tpu.pipeline_mode<synchronous>, transform_indices = @transform_4, window_bounds = array<i64: 1, 4>}, {transform_indices = @transform_5, window_bounds = array<i64: 1, 16, 16, 4>}]} {
    %c0 = arith.constant 0 : index
    %c0_0 = arith.constant 0 : index
    %c0_1 = arith.constant 0 : index
    %c0_2 = arith.constant 0 : index
    %0 = vector.load %arg1[%c0, %c0_0, %c0_1, %c0_2] : memref<1x16x16x4xf32, #tpu.memory_space<vmem>>, vector<1x16x16x4xf32>
    %1 = vector.shape_cast %0 : vector<1x16x16x4xf32> to vector<16x16x4xf32>
    %c1 = arith.constant 1 : index
    %c1_3 = arith.constant 1 : index
    %c0_4 = arith.constant 0 : index
    %2 = vector.load %arg7[%c1, %c1_3, %c0_4] : memref<18x18x4xf32, #tpu.memory_space<vmem>>, vector<16x16x4xf32>
    tpu.vector_store %arg7[%c1, %c1_3, %c0_4], %1 {strides = array<i32>} : memref<18x18x4xf32, #tpu.memory_space<vmem>>, vector<16x16x4xf32>,
    %3 = vector.extract_strided_slice %1 {offsets = [1, 0, 0], sizes = [1, 16, 4], strides = [1, 1, 1]} : vector<16x16x4xf32> to vector<1x16x4xf32>
    %c0_5 = arith.constant 0 : index
    %c1_6 = arith.constant 1 : index
    %c0_7 = arith.constant 0 : index
    %4 = vector.load %arg7[%c0_5, %c1_6, %c0_7] : memref<18x18x4xf32, #tpu.memory_space<vmem>>, vector<1x16x4xf32>
    tpu.vector_store %arg7[%c0_5, %c1_6, %c0_7], %3 {strides = array<i32>} : memref<18x18x4xf32, #tpu.memory_space<vmem>>, vector<1x16x4xf32>,
    %5 = vector.extract_strided_slice %1 {offsets = [14, 0, 0], sizes = [1, 16, 4], strides = [1, 1, 1]} : vector<16x16x4xf32> to vector<1x16x4xf32>
    %c17 = arith.constant 17 : index
    %c1_8 = arith.constant 1 : index
    %c0_9 = arith.constant 0 : index
    %6 = vector.load %arg7[%c17, %c1_8, %c0_9] : memref<18x18x4xf32, #tpu.memory_space<vmem>>, vector<1x16x4xf32>
    tpu.vector_store %arg7[%c17, %c1_8, %c0_9], %5 {strides = array<i32>} : memref<18x18x4xf32, #tpu.memory_space<vmem>>, vector<1x16x4xf32>,
    %c0_10 = arith.constant 0 : index
    %c2 = arith.constant 2 : index
    %c0_11 = arith.constant 0 : index
    %7 = vector.load %arg7[%c0_10, %c2, %c0_11] : memref<18x18x4xf32, #tpu.memory_space<vmem>>, vector<18x1x4xf32>
    %c0_12 = arith.constant 0 : index
    %c0_13 = arith.constant 0 : index
    %c0_14 = arith.constant 0 : index
    %8 = vector.load %arg7[%c0_12, %c0_13, %c0_14] : memref<18x18x4xf32, #tpu.memory_space<vmem>>, vector<18x1x4xf32>
    tpu.vector_store %arg7[%c0_12, %c0_13, %c0_14], %7 {strides = array<i32>} : memref<18x18x4xf32, #tpu.memory_space<vmem>>, vector<18x1x4xf32>,
    %c0_15 = arith.constant 0 : index
    %c15 = arith.constant 15 : index
    %c0_16 = arith.constant 0 : index
    %9 = vector.load %arg7[%c0_15, %c15, %c0_16] : memref<18x18x4xf32, #tpu.memory_space<vmem>>, vector<18x1x4xf32>
    %c0_17 = arith.constant 0 : index
    %c17_18 = arith.constant 17 : index
    %c0_19 = arith.constant 0 : index
    %10 = vector.load %arg7[%c0_17, %c17_18, %c0_19] : memref<18x18x4xf32, #tpu.memory_space<vmem>>, vector<18x1x4xf32>
    tpu.vector_store %arg7[%c0_17, %c17_18, %c0_19], %9 {strides = array<i32>} : memref<18x18x4xf32, #tpu.memory_space<vmem>>, vector<18x1x4xf32>,
    %c0_20 = arith.constant 0 : index
    %c0_21 = arith.constant 0 : index
    %c0_22 = arith.constant 0 : index
    %11 = vector.load %arg7[%c0_20, %c0_21, %c0_22] : memref<18x18x4xf32, #tpu.memory_space<vmem>>, vector<16x16x4xf32>
    %c0_23 = arith.constant 0 : index
    %c0_24 = arith.constant 0 : index
    %c0_25 = arith.constant 0 : index
    %12 = vector.load %arg8[%c0_23, %c0_24, %c0_25] : memref<16x16x36xf32, #tpu.memory_space<vmem>>, vector<16x16x4xf32>
    tpu.vector_store %arg8[%c0_23, %c0_24, %c0_25], %11 {strides = array<i32>} : memref<16x16x36xf32, #tpu.memory_space<vmem>>, vector<16x16x4xf32>,
    %c0_26 = arith.constant 0 : index
    %c1_27 = arith.constant 1 : index
    %c0_28 = arith.constant 0 : index
    %13 = vector.load %arg7[%c0_26, %c1_27, %c0_28] : memref<18x18x4xf32, #tpu.memory_space<vmem>>, vector<16x16x4xf32>
    %c0_29 = arith.constant 0 : index
    %c0_30 = arith.constant 0 : index
    %c4 = arith.constant 4 : index
    %14 = vector.load %arg8[%c0_29, %c0_30, %c4] : memref<16x16x36xf32, #tpu.memory_space<vmem>>, vector<16x16x4xf32>
    tpu.vector_store %arg8[%c0_29, %c0_30, %c4], %13 {strides = array<i32>} : memref<16x16x36xf32, #tpu.memory_space<vmem>>, vector<16x16x4xf32>,
    %c0_31 = arith.constant 0 : index
    %c2_32 = arith.constant 2 : index
    %c0_33 = arith.constant 0 : index
    %15 = vector.load %arg7[%c0_31, %c2_32, %c0_33] : memref<18x18x4xf32, #tpu.memory_space<vmem>>, vector<16x16x4xf32>
    %c0_34 = arith.constant 0 : index
    %c0_35 = arith.constant 0 : index
    %c8 = arith.constant 8 : index
    %16 = vector.load %arg8[%c0_34, %c0_35, %c8] : memref<16x16x36xf32, #tpu.memory_space<vmem>>, vector<16x16x4xf32>
    tpu.vector_store %arg8[%c0_34, %c0_35, %c8], %15 {strides = array<i32>} : memref<16x16x36xf32, #tpu.memory_space<vmem>>, vector<16x16x4xf32>,
    %c1_36 = arith.constant 1 : index
    %c0_37 = arith.constant 0 : index
    %c0_38 = arith.constant 0 : index
    %17 = vector.load %arg7[%c1_36, %c0_37, %c0_38] : memref<18x18x4xf32, #tpu.memory_space<vmem>>, vector<16x16x4xf32>
    %c0_39 = arith.constant 0 : index
    %c0_40 = arith.constant 0 : index
    %c12 = arith.constant 12 : index
    %18 = vector.load %arg8[%c0_39, %c0_40, %c12] : memref<16x16x36xf32, #tpu.memory_space<vmem>>, vector<16x16x4xf32>
    tpu.vector_store %arg8[%c0_39, %c0_40, %c12], %17 {strides = array<i32>} : memref<16x16x36xf32, #tpu.memory_space<vmem>>, vector<16x16x4xf32>,
    %c1_41 = arith.constant 1 : index
    %c1_42 = arith.constant 1 : index
    %c0_43 = arith.constant 0 : index
    %19 = vector.load %arg7[%c1_41, %c1_42, %c0_43] : memref<18x18x4xf32, #tpu.memory_space<vmem>>, vector<16x16x4xf32>
    %c0_44 = arith.constant 0 : index
    %c0_45 = arith.constant 0 : index
    %c16 = arith.constant 16 : index
    %20 = vector.load %arg8[%c0_44, %c0_45, %c16] : memref<16x16x36xf32, #tpu.memory_space<vmem>>, vector<16x16x4xf32>
    tpu.vector_store %arg8[%c0_44, %c0_45, %c16], %19 {strides = array<i32>} : memref<16x16x36xf32, #tpu.memory_space<vmem>>, vector<16x16x4xf32>,
    %c1_46 = arith.constant 1 : index
    %c2_47 = arith.constant 2 : index
    %c0_48 = arith.constant 0 : index
    %21 = vector.load %arg7[%c1_46, %c2_47, %c0_48] : memref<18x18x4xf32, #tpu.memory_space<vmem>>, vector<16x16x4xf32>
    %c0_49 = arith.constant 0 : index
    %c0_50 = arith.constant 0 : index
    %c20 = arith.constant 20 : index
    %22 = vector.load %arg8[%c0_49, %c0_50, %c20] : memref<16x16x36xf32, #tpu.memory_space<vmem>>, vector<16x16x4xf32>
    tpu.vector_store %arg8[%c0_49, %c0_50, %c20], %21 {strides = array<i32>} : memref<16x16x36xf32, #tpu.memory_space<vmem>>, vector<16x16x4xf32>,
    %c2_51 = arith.constant 2 : index
    %c0_52 = arith.constant 0 : index
    %c0_53 = arith.constant 0 : index
    %23 = vector.load %arg7[%c2_51, %c0_52, %c0_53] : memref<18x18x4xf32, #tpu.memory_space<vmem>>, vector<16x16x4xf32>
    %c0_54 = arith.constant 0 : index
    %c0_55 = arith.constant 0 : index
    %c24 = arith.constant 24 : index
    %24 = vector.load %arg8[%c0_54, %c0_55, %c24] : memref<16x16x36xf32, #tpu.memory_space<vmem>>, vector<16x16x4xf32>
    tpu.vector_store %arg8[%c0_54, %c0_55, %c24], %23 {strides = array<i32>} : memref<16x16x36xf32, #tpu.memory_space<vmem>>, vector<16x16x4xf32>,
    %c2_56 = arith.constant 2 : index
    %c1_57 = arith.constant 1 : index
    %c0_58 = arith.constant 0 : index
    %25 = vector.load %arg7[%c2_56, %c1_57, %c0_58] : memref<18x18x4xf32, #tpu.memory_space<vmem>>, vector<16x16x4xf32>
    %c0_59 = arith.constant 0 : index
    %c0_60 = arith.constant 0 : index
    %c28 = arith.constant 28 : index
    %26 = vector.load %arg8[%c0_59, %c0_60, %c28] : memref<16x16x36xf32, #tpu.memory_space<vmem>>, vector<16x16x4xf32>
    tpu.vector_store %arg8[%c0_59, %c0_60, %c28], %25 {strides = array<i32>} : memref<16x16x36xf32, #tpu.memory_space<vmem>>, vector<16x16x4xf32>,
    %c2_61 = arith.constant 2 : index
    %c2_62 = arith.constant 2 : index
    %c0_63 = arith.constant 0 : index
    %27 = vector.load %arg7[%c2_61, %c2_62, %c0_63] : memref<18x18x4xf32, #tpu.memory_space<vmem>>, vector<16x16x4xf32>
    %c0_64 = arith.constant 0 : index
    %c0_65 = arith.constant 0 : index
    %c32 = arith.constant 32 : index
    %28 = vector.load %arg8[%c0_64, %c0_65, %c32] : memref<16x16x36xf32, #tpu.memory_space<vmem>>, vector<16x16x4xf32>
    tpu.vector_store %arg8[%c0_64, %c0_65, %c32], %27 {strides = array<i32>} : memref<16x16x36xf32, #tpu.memory_space<vmem>>, vector<16x16x4xf32>,
    %c0_66 = arith.constant 0 : index
    %c0_67 = arith.constant 0 : index
    %c0_68 = arith.constant 0 : index
    %29 = vector.load %arg8[%c0_66, %c0_67, %c0_68] : memref<16x16x36xf32, #tpu.memory_space<vmem>>, vector<16x16x36xf32>
    %c0_69 = arith.constant 0 : index
    %c0_70 = arith.constant 0 : index
    %30 = vector.load %arg2[%c0_69, %c0_70] : memref<36x4xf32, #tpu.memory_space<vmem>>, vector<36x4xf32>
    "tpu.trace_start"() <{level = 10 : i32, message = "hwk,kc->hwc"}> : () -> ()
    %cst = arith.constant dense<0.000000e+00> : vector<16x16x4xf32>
    %31 = tpu.matmul %29, %30, %cst {dimension_numbers = #tpu.dot_dimension_numbers<[2], [0], [0, 1], [1], [0, 0, 0, 1, 1, 1], [], []>} : vector<16x16x36xf32>, vector<36x4xf32>, vector<16x16x4xf32> -> vector<16x16x4xf32>
    "tpu.trace_stop"() : () -> ()
    %c0_71 = arith.constant 0 : index
    %c0_72 = arith.constant 0 : index
    %32 = vector.load %arg3[%c0_71, %c0_72] : memref<1x4xf32, #tpu.memory_space<vmem>>, vector<1x4xf32>
    %33 = vector.shape_cast %32 : vector<1x4xf32> to vector<4xf32>
    %34 = vector.shape_cast %33 : vector<4xf32> to vector<1x1x4xf32>
    %35 = vector.broadcast %34 : vector<1x1x4xf32> to vector<16x16x4xf32>
    %36 = arith.addf %31, %35 : vector<16x16x4xf32>
    %cst_73 = arith.constant 0.000000e+00 : f32
    %37 = vector.broadcast %cst_73 : f32 to vector<16x16x4xf32>
    %38 = arith.maximumf %36, %37 : vector<16x16x4xf32>
    %c1_74 = arith.constant 1 : index
    %c1_75 = arith.constant 1 : index
    %c0_76 = arith.constant 0 : index
    %39 = vector.load %arg7[%c1_74, %c1_75, %c0_76] : memref<18x18x4xf32, #tpu.memory_space<vmem>>, vector<16x16x4xf32>
    tpu.vector_store %arg7[%c1_74, %c1_75, %c0_76], %38 {strides = array<i32>} : memref<18x18x4xf32, #tpu.memory_space<vmem>>, vector<16x16x4xf32>,
    %40 = vector.extract_strided_slice %38 {offsets = [1, 0, 0], sizes = [1, 16, 4], strides = [1, 1, 1]} : vector<16x16x4xf32> to vector<1x16x4xf32>
    %c0_77 = arith.constant 0 : index
    %c1_78 = arith.constant 1 : index
    %c0_79 = arith.constant 0 : index
    %41 = vector.load %arg7[%c0_77, %c1_78, %c0_79] : memref<18x18x4xf32, #tpu.memory_space<vmem>>, vector<1x16x4xf32>
    tpu.vector_store %arg7[%c0_77, %c1_78, %c0_79], %40 {strides = array<i32>} : memref<18x18x4xf32, #tpu.memory_space<vmem>>, vector<1x16x4xf32>,
    %42 = vector.extract_strided_slice %38 {offsets = [14, 0, 0], sizes = [1, 16, 4], strides = [1, 1, 1]} : vector<16x16x4xf32> to vector<1x16x4xf32>
    %c17_80 = arith.constant 17 : index
    %c1_81 = arith.constant 1 : index
    %c0_82 = arith.constant 0 : index
    %43 = vector.load %arg7[%c17_80, %c1_81, %c0_82] : memref<18x18x4xf32, #tpu.memory_space<vmem>>, vector<1x16x4xf32>
    tpu.vector_store %arg7[%c17_80, %c1_81, %c0_82], %42 {strides = array<i32>} : memref<18x18x4xf32, #tpu.memory_space<vmem>>, vector<1x16x4xf32>,
    %c0_83 = arith.constant 0 : index
    %c2_84 = arith.constant 2 : index
    %c0_85 = arith.constant 0 : index
    %44 = vector.load %arg7[%c0_83, %c2_84, %c0_85] : memref<18x18x4xf32, #tpu.memory_space<vmem>>, vector<18x1x4xf32>
    %c0_86 = arith.constant 0 : index
    %c0_87 = arith.constant 0 : index
    %c0_88 = arith.constant 0 : index
    %45 = vector.load %arg7[%c0_86, %c0_87, %c0_88] : memref<18x18x4xf32, #tpu.memory_space<vmem>>, vector<18x1x4xf32>
    tpu.vector_store %arg7[%c0_86, %c0_87, %c0_88], %44 {strides = array<i32>} : memref<18x18x4xf32, #tpu.memory_space<vmem>>, vector<18x1x4xf32>,
    %c0_89 = arith.constant 0 : index
    %c15_90 = arith.constant 15 : index
    %c0_91 = arith.constant 0 : index
    %46 = vector.load %arg7[%c0_89, %c15_90, %c0_91] : memref<18x18x4xf32, #tpu.memory_space<vmem>>, vector<18x1x4xf32>
    %c0_92 = arith.constant 0 : index
    %c17_93 = arith.constant 17 : index
    %c0_94 = arith.constant 0 : index
    %47 = vector.load %arg7[%c0_92, %c17_93, %c0_94] : memref<18x18x4xf32, #tpu.memory_space<vmem>>, vector<18x1x4xf32>
    tpu.vector_store %arg7[%c0_92, %c17_93, %c0_94], %46 {strides = array<i32>} : memref<18x18x4xf32, #tpu.memory_space<vmem>>, vector<18x1x4xf32>,
    %c0_95 = arith.constant 0 : index
    %c0_96 = arith.constant 0 : index
    %c0_97 = arith.constant 0 : index
    %48 = vector.load %arg7[%c0_95, %c0_96, %c0_97] : memref<18x18x4xf32, #tpu.memory_space<vmem>>, vector<16x16x4xf32>
    %c0_98 = arith.constant 0 : index
    %c0_99 = arith.constant 0 : index
    %c0_100 = arith.constant 0 : index
    %49 = vector.load %arg8[%c0_98, %c0_99, %c0_100] : memref<16x16x36xf32, #tpu.memory_space<vmem>>, vector<16x16x4xf32>
    tpu.vector_store %arg8[%c0_98, %c0_99, %c0_100], %48 {strides = array<i32>} : memref<16x16x36xf32, #tpu.memory_space<vmem>>, vector<16x16x4xf32>,
    %c0_101 = arith.constant 0 : index
    %c1_102 = arith.constant 1 : index
    %c0_103 = arith.constant 0 : index
    %50 = vector.load %arg7[%c0_101, %c1_102, %c0_103] : memref<18x18x4xf32, #tpu.memory_space<vmem>>, vector<16x16x4xf32>
    %c0_104 = arith.constant 0 : index
    %c0_105 = arith.constant 0 : index
    %c4_106 = arith.constant 4 : index
    %51 = vector.load %arg8[%c0_104, %c0_105, %c4_106] : memref<16x16x36xf32, #tpu.memory_space<vmem>>, vector<16x16x4xf32>
    tpu.vector_store %arg8[%c0_104, %c0_105, %c4_106], %50 {strides = array<i32>} : memref<16x16x36xf32, #tpu.memory_space<vmem>>, vector<16x16x4xf32>,
    %c0_107 = arith.constant 0 : index
    %c2_108 = arith.constant 2 : index
    %c0_109 = arith.constant 0 : index
    %52 = vector.load %arg7[%c0_107, %c2_108, %c0_109] : memref<18x18x4xf32, #tpu.memory_space<vmem>>, vector<16x16x4xf32>
    %c0_110 = arith.constant 0 : index
    %c0_111 = arith.constant 0 : index
    %c8_112 = arith.constant 8 : index
    %53 = vector.load %arg8[%c0_110, %c0_111, %c8_112] : memref<16x16x36xf32, #tpu.memory_space<vmem>>, vector<16x16x4xf32>
    tpu.vector_store %arg8[%c0_110, %c0_111, %c8_112], %52 {strides = array<i32>} : memref<16x16x36xf32, #tpu.memory_space<vmem>>, vector<16x16x4xf32>,
    %c1_113 = arith.constant 1 : index
    %c0_114 = arith.constant 0 : index
    %c0_115 = arith.constant 0 : index
    %54 = vector.load %arg7[%c1_113, %c0_114, %c0_115] : memref<18x18x4xf32, #tpu.memory_space<vmem>>, vector<16x16x4xf32>
    %c0_116 = arith.constant 0 : index
    %c0_117 = arith.constant 0 : index
    %c12_118 = arith.constant 12 : index
    %55 = vector.load %arg8[%c0_116, %c0_117, %c12_118] : memref<16x16x36xf32, #tpu.memory_space<vmem>>, vector<16x16x4xf32>
    tpu.vector_store %arg8[%c0_116, %c0_117, %c12_118], %54 {strides = array<i32>} : memref<16x16x36xf32, #tpu.memory_space<vmem>>, vector<16x16x4xf32>,
    %c1_119 = arith.constant 1 : index
    %c1_120 = arith.constant 1 : index
    %c0_121 = arith.constant 0 : index
    %56 = vector.load %arg7[%c1_119, %c1_120, %c0_121] : memref<18x18x4xf32, #tpu.memory_space<vmem>>, vector<16x16x4xf32>
    %c0_122 = arith.constant 0 : index
    %c0_123 = arith.constant 0 : index
    %c16_124 = arith.constant 16 : index
    %57 = vector.load %arg8[%c0_122, %c0_123, %c16_124] : memref<16x16x36xf32, #tpu.memory_space<vmem>>, vector<16x16x4xf32>
    tpu.vector_store %arg8[%c0_122, %c0_123, %c16_124], %56 {strides = array<i32>} : memref<16x16x36xf32, #tpu.memory_space<vmem>>, vector<16x16x4xf32>,
    %c1_125 = arith.constant 1 : index
    %c2_126 = arith.constant 2 : index
    %c0_127 = arith.constant 0 : index
    %58 = vector.load %arg7[%c1_125, %c2_126, %c0_127] : memref<18x18x4xf32, #tpu.memory_space<vmem>>, vector<16x16x4xf32>
    %c0_128 = arith.constant 0 : index
    %c0_129 = arith.constant 0 : index
    %c20_130 = arith.constant 20 : index
    %59 = vector.load %arg8[%c0_128, %c0_129, %c20_130] : memref<16x16x36xf32, #tpu.memory_space<vmem>>, vector<16x16x4xf32>
    tpu.vector_store %arg8[%c0_128, %c0_129, %c20_130], %58 {strides = array<i32>} : memref<16x16x36xf32, #tpu.memory_space<vmem>>, vector<16x16x4xf32>,
    %c2_131 = arith.constant 2 : index
    %c0_132 = arith.constant 0 : index
    %c0_133 = arith.constant 0 : index
    %60 = vector.load %arg7[%c2_131, %c0_132, %c0_133] : memref<18x18x4xf32, #tpu.memory_space<vmem>>, vector<16x16x4xf32>
    %c0_134 = arith.constant 0 : index
    %c0_135 = arith.constant 0 : index
    %c24_136 = arith.constant 24 : index
    %61 = vector.load %arg8[%c0_134, %c0_135, %c24_136] : memref<16x16x36xf32, #tpu.memory_space<vmem>>, vector<16x16x4xf32>
    tpu.vector_store %arg8[%c0_134, %c0_135, %c24_136], %60 {strides = array<i32>} : memref<16x16x36xf32, #tpu.memory_space<vmem>>, vector<16x16x4xf32>,
    %c2_137 = arith.constant 2 : index
    %c1_138 = arith.constant 1 : index
    %c0_139 = arith.constant 0 : index
    %62 = vector.load %arg7[%c2_137, %c1_138, %c0_139] : memref<18x18x4xf32, #tpu.memory_space<vmem>>, vector<16x16x4xf32>
    %c0_140 = arith.constant 0 : index
    %c0_141 = arith.constant 0 : index
    %c28_142 = arith.constant 28 : index
    %63 = vector.load %arg8[%c0_140, %c0_141, %c28_142] : memref<16x16x36xf32, #tpu.memory_space<vmem>>, vector<16x16x4xf32>
    tpu.vector_store %arg8[%c0_140, %c0_141, %c28_142], %62 {strides = array<i32>} : memref<16x16x36xf32, #tpu.memory_space<vmem>>, vector<16x16x4xf32>,
    %c2_143 = arith.constant 2 : index
    %c2_144 = arith.constant 2 : index
    %c0_145 = arith.constant 0 : index
    %64 = vector.load %arg7[%c2_143, %c2_144, %c0_145] : memref<18x18x4xf32, #tpu.memory_space<vmem>>, vector<16x16x4xf32>
    %c0_146 = arith.constant 0 : index
    %c0_147 = arith.constant 0 : index
    %c32_148 = arith.constant 32 : index
    %65 = vector.load %arg8[%c0_146, %c0_147, %c32_148] : memref<16x16x36xf32, #tpu.memory_space<vmem>>, vector<16x16x4xf32>
    tpu.vector_store %arg8[%c0_146, %c0_147, %c32_148], %64 {strides = array<i32>} : memref<16x16x36xf32, #tpu.memory_space<vmem>>, vector<16x16x4xf32>,
    %c0_149 = arith.constant 0 : index
    %c0_150 = arith.constant 0 : index
    %c0_151 = arith.constant 0 : index
    %66 = vector.load %arg8[%c0_149, %c0_150, %c0_151] : memref<16x16x36xf32, #tpu.memory_space<vmem>>, vector<16x16x36xf32>
    %c0_152 = arith.constant 0 : index
    %c0_153 = arith.constant 0 : index
    %67 = vector.load %arg4[%c0_152, %c0_153] : memref<36x4xf32, #tpu.memory_space<vmem>>, vector<36x4xf32>
    "tpu.trace_start"() <{level = 10 : i32, message = "hwk,kc->hwc"}> : () -> ()
    %cst_154 = arith.constant dense<0.000000e+00> : vector<16x16x4xf32>
    %68 = tpu.matmul %66, %67, %cst_154 {dimension_numbers = #tpu.dot_dimension_numbers<[2], [0], [0, 1], [1], [0, 0, 0, 1, 1, 1], [], []>} : vector<16x16x36xf32>, vector<36x4xf32>, vector<16x16x4xf32> -> vector<16x16x4xf32>
    "tpu.trace_stop"() : () -> ()
    %c0_155 = arith.constant 0 : index
    %c0_156 = arith.constant 0 : index
    %69 = vector.load %arg5[%c0_155, %c0_156] : memref<1x4xf32, #tpu.memory_space<vmem>>, vector<1x4xf32>
    %70 = vector.shape_cast %69 : vector<1x4xf32> to vector<4xf32>
    %71 = vector.shape_cast %70 : vector<4xf32> to vector<1x1x4xf32>
    %72 = vector.broadcast %71 : vector<1x1x4xf32> to vector<16x16x4xf32>
    %73 = arith.addf %68, %72 : vector<16x16x4xf32>
    %74 = arith.addf %73, %1 : vector<16x16x4xf32>
    %c0_157 = arith.constant 0 : index
    %c0_158 = arith.constant 0 : index
    %c0_159 = arith.constant 0 : index
    %c0_160 = arith.constant 0 : index
    %75 = vector.load %arg6[%c0_157, %c0_158, %c0_159, %c0_160] : memref<1x16x16x4xf32, #tpu.memory_space<vmem>>, vector<1x16x16x4xf32>
    %76 = vector.shape_cast %75 : vector<1x16x16x4xf32> to vector<16x16x4xf32>
    %77 = vector.shape_cast %74 : vector<16x16x4xf32> to vector<1x16x16x4xf32>
    tpu.vector_store %arg6[%c0_157, %c0_158, %c0_159, %c0_160], %77 {strides = array<i32>} : memref<1x16x16x4xf32, #tpu.memory_space<vmem>>, vector<1x16x16x4xf32>,
    return
  }
  func.func @transform_0(%arg0: i32) -> (i32, i32, i32, i32) {
    %c0_i32 = arith.constant 0 : i32
    %c0_i32_0 = arith.constant 0 : i32
    %c0_i32_1 = arith.constant 0 : i32
    %c0_i32_2 = arith.constant 0 : i32
    return %arg0, %c0_i32, %c0_i32_0, %c0_i32_1 : i32, i32, i32, i32
  }
  func.func @transform_1(%arg0: i32) -> (i32, i32) {
    %c0_i32 = arith.constant 0 : i32
    %c0_i32_0 = arith.constant 0 : i32
    %c0_i32_1 = arith.constant 0 : i32
    return %c0_i32, %c0_i32_0 : i32, i32
  }
  func.func @transform_2(%arg0: i32) -> (i32, i32) {
    %c0_i32 = arith.constant 0 : i32
    %c0_i32_0 = arith.constant 0 : i32
    %c0_i32_1 = arith.constant 0 : i32
    return %c0_i32, %c0_i32_0 : i32, i32
  }
  func.func @transform_3(%arg0: i32) -> (i32, i32) {
    %c0_i32 = arith.constant 0 : i32
    %c0_i32_0 = arith.constant 0 : i32
    %c0_i32_1 = arith.constant 0 : i32
    return %c0_i32, %c0_i32_0 : i32, i32
  }
  func.func @transform_4(%arg0: i32) -> (i32, i32) {
    %c0_i32 = arith.constant 0 : i32
    %c0_i32_0 = arith.constant 0 : i32
    %c0_i32_1 = arith.constant 0 : i32
    return %c0_i32, %c0_i32_0 : i32, i32
  }
  func.func @transform_5(%arg0: i32) -> (i32, i32, i32, i32) {
    %c0_i32 = arith.constant 0 : i32
    %c0_i32_0 = arith.constant 0 : i32
    %c0_i32_1 = arith.constant 0 : i32
    %c0_i32_2 = arith.constant 0 : i32
    return %arg0, %c0_i32, %c0_i32_0, %c0_i32_1 : i32, i32, i32, i32
  }
}

</mosaic_0001>

<llo_original>
// kernel: tpu_custom_call.1
$region0: #{tpu_custom_call.1}
  #allocation0 [shape = 'u32[]', space=smem, size = 0x4, offset = 0x4, fixed_abs, tag = 'smem constant byte address 0x4 - core index']
  #allocation1 [shape = 'u32[72,128]{1,0:T(1,128)}', space=vmem, size = 0x9000, scoped, tag = 'internal scratch']
  #allocation2 [shape = 'f32[18,18,4]{2,1,0:T(8,128)}', space=vmem, size = 0x36000, scoped, tag = 'scratch operand']
  #allocation3 [shape = 'f32[16,16,36]{2,1,0:T(8,128)}', space=vmem, size = 0x20000, scoped, tag = 'scratch operand']
  %s0 = inlined_call_operand.vmem [shape: f32[2,16,16,4], index: 0, kind: input, shape index: {}]
  %s1 = inlined_call_operand.vmem [shape: f32[36,4], index: 1, kind: input, shape index: {}]
  %s2 = inlined_call_operand.vmem [shape: f32[1,4], index: 2, kind: input, shape index: {}]
  %s3 = inlined_call_operand.vmem [shape: f32[36,4], index: 3, kind: input, shape index: {}]
  %s4 = inlined_call_operand.vmem [shape: f32[1,4], index: 4, kind: input, shape index: {}]
  %s5 = inlined_call_operand.vmem [shape: f32[2,16,16,4], index: 5, kind: output, shape index: {}]
  %s6 = sld [smem:[#allocation0]]
  $region53: #{tpu_custom_call.1} parent=0
    _
  %s8 = ssub.s32 1, %s6
  %s9 = scalar_select 0, %s8, %s6
  loop: start=0, step=1, limit=4
  $region2: #{tpu_custom_call.1} parent=0 // loop_pre_header
    _
  $region3: #{tpu_custom_call.1} parent=0 // loop_header
    %s11 = sphi 0, %s15
    %p12 = scmp.ge.s32.totalorder %s11, 4
    %s21 = sphi 0, %s23
    %s24 = sphi 0, %s21
    %s25 = sphi 0, %s24
    %s41 = sphi 0, %s25
    %s45 = sphi 0, %s45
    %s47 = sphi 0, %s45
    %s48 = sphi 0, %s47
    %s62 = sphi 0, %s48
    %s66 = sphi 0, %s66
    %s68 = sphi 0, %s66
    %s69 = sphi 0, %s68
    %s83 = sphi 0, %s69
    %s87 = sphi 0, %s87
    %s89 = sphi 0, %s87
    %s90 = sphi 0, %s89
    %s104 = sphi 0, %s90
    %s108 = sphi 0, %s108
    %s110 = sphi 0, %s108
    %s111 = sphi 0, %s110
    %s125 = sphi 0, %s111
    %s131 = sphi 0, %s133
    %s134 = sphi 0, %s131
    %s135 = sphi 0, %s134
    %s151 = sphi 0, %s135
  $region4: #{tpu_custom_call.1} parent=0 // loop_header_branch
    %14 = sbr.rel (%p12) target = $region8
  $region5: #{tpu_custom_call.1} parent=0 // loop_body
    %s16 = ssub.s32 %s11, 1
    %s17 = ssub.s32 %s11, 2
    %s18 = sadd.s32 %s11, 1
    %s19 = ssub.s32 %s11, %s18
    %p20 = scmp.eq.s32.totalorder %s19, 0
    %s22 = sadd.s32 %s21, 1
    %s23 = scalar_select %p20, %s21, %s22
    %p26 = pneg %p20
    %p27 = scmp.eq.s32.totalorder %s11, 1
    %p28 = por %p26, %p27
    %p29 = scmp.ne.s32.totalorder %s21, %s24
    %p30 = scmp.eq.s32.totalorder %s11, 0
    %p31 = por %p29, %p30
    %p32 = scmp.ne.s32.totalorder %s21, %s24
    %p33 = scmp.eq.s32.totalorder %s16, 1
    %p34 = por %p32, %p33
    %p35 = scmp.ne.s32.totalorder %s24, %s25
    %p36 = scmp.eq.s32.totalorder %s16, 0
    %p37 = por %p35, %p36
    %p38 = scmp.ne.s32.totalorder %s24, %s25
    %p39 = scmp.eq.s32.totalorder %s17, 1
    %p40 = por %p38, %p39
    %p42 = scmp.ne.s32.totalorder %s25, %s41
    %p43 = scmp.eq.s32.totalorder %s17, 0
    %p44 = por %p42, %p43
    %s46 = sadd.s32 %s45, 1
    %p49 = scmp.eq.s32.totalorder %s11, 1
    %p50 = scmp.ne.s32.totalorder %s45, %s47
    %p51 = scmp.eq.s32.totalorder %s11, 0
    %p52 = por %p50, %p51
    %p53 = scmp.ne.s32.totalorder %s45, %s47
    %p54 = scmp.eq.s32.totalorder %s16, 1
    %p55 = por %p53, %p54
    %p56 = scmp.ne.s32.totalorder %s47, %s48
    %p57 = scmp.eq.s32.totalorder %s16, 0
    %p58 = por %p56, %p57
    %p59 = scmp.ne.s32.totalorder %s47, %s48
    %p60 = scmp.eq.s32.totalorder %s17, 1
    %p61 = por %p59, %p60
    %p63 = scmp.ne.s32.totalorder %s48, %s62
    %p64 = scmp.eq.s32.totalorder %s17, 0
    %p65 = por %p63, %p64
    %s67 = sadd.s32 %s66, 1
    %p70 = scmp.eq.s32.totalorder %s11, 1
    %p71 = scmp.ne.s32.totalorder %s66, %s68
    %p72 = scmp.eq.s32.totalorder %s11, 0
    %p73 = por %p71, %p72
    %p74 = scmp.ne.s32.totalorder %s66, %s68
    %p75 = scmp.eq.s32.totalorder %s16, 1
    %p76 = por %p74, %p75
    %p77 = scmp.ne.s32.totalorder %s68, %s69
    %p78 = scmp.eq.s32.totalorder %s16, 0
    %p79 = por %p77, %p78
    %p80 = scmp.ne.s32.totalorder %s68, %s69
    %p81 = scmp.eq.s32.totalorder %s17, 1
    %p82 = por %p80, %p81
    %p84 = scmp.ne.s32.totalorder %s69, %s83
    %p85 = scmp.eq.s32.totalorder %s17, 0
    %p86 = por %p84, %p85
    %s88 = sadd.s32 %s87, 1
    %p91 = scmp.eq.s32.totalorder %s11, 1
    %p92 = scmp.ne.s32.totalorder %s87, %s89
    %p93 = scmp.eq.s32.totalorder %s11, 0
    %p94 = por %p92, %p93
    %p95 = scmp.ne.s32.totalorder %s87, %s89
    %p96 = scmp.eq.s32.totalorder %s16, 1
    %p97 = por %p95, %p96
    %p98 = scmp.ne.s32.totalorder %s89, %s90
    %p99 = scmp.eq.s32.totalorder %s16, 0
    %p100 = por %p98, %p99
    %p101 = scmp.ne.s32.totalorder %s89, %s90
    %p102 = scmp.eq.s32.totalorder %s17, 1
    %p103 = por %p101, %p102
    %p105 = scmp.ne.s32.totalorder %s90, %s104
    %p106 = scmp.eq.s32.totalorder %s17, 0
    %p107 = por %p105, %p106
    %s109 = sadd.s32 %s108, 1
    %p112 = scmp.eq.s32.totalorder %s11, 1
    %p113 = scmp.ne.s32.totalorder %s108, %s110
    %p114 = scmp.eq.s32.totalorder %s11, 0
    %p115 = por %p113, %p114
    %p116 = scmp.ne.s32.totalorder %s108, %s110
    %p117 = scmp.eq.s32.totalorder %s16, 1
    %p118 = por %p116, %p117
    %p119 = scmp.ne.s32.totalorder %s110, %s111
    %p120 = scmp.eq.s32.totalorder %s16, 0
    %p121 = por %p119, %p120
    %p122 = scmp.ne.s32.totalorder %s110, %s111
    %p123 = scmp.eq.s32.totalorder %s17, 1
    %p124 = por %p122, %p123
    %p126 = scmp.ne.s32.totalorder %s111, %s125
    %p127 = scmp.eq.s32.totalorder %s17, 0
    %p128 = por %p126, %p127
    %s129 = ssub.s32 %s11, %s18
    %p130 = scmp.eq.s32.totalorder %s129, 0
    %s132 = sadd.s32 %s131, 1
    %s133 = scalar_select %p130, %s131, %s132
    %p136 = pneg %p130
    %p137 = scmp.eq.s32.totalorder %s11, 1
    %p138 = por %p136, %p137
    %p139 = scmp.ne.s32.totalorder %s131, %s134
    %p140 = scmp.eq.s32.totalorder %s11, 0
    %p141 = por %p139, %p140
    %p142 = scmp.ne.s32.totalorder %s131, %s134
    %p143 = scmp.eq.s32.totalorder %s16, 1
    %p144 = por %p142, %p143
    %p145 = scmp.ne.s32.totalorder %s134, %s135
    %p146 = scmp.eq.s32.totalorder %s16, 0
    %p147 = por %p145, %p146
    %p148 = scmp.ne.s32.totalorder %s134, %s135
    %p149 = scmp.eq.s32.totalorder %s17, 1
    %p150 = por %p148, %p149
    %p152 = scmp.ne.s32.totalorder %s135, %s151
    %p153 = scmp.eq.s32.totalorder %s17, 0
    %p154 = por %p152, %p153
    %p155 = scmp.le.s32.totalorder 1, %s11
    %p156 = scmp.lt.s32.totalorder %s11, 3
    %p157 = pnand %p155, %p156
    %p158 = pneg %p157
    // Predicated region
    $region9: #{tpu_custom_call.1} parent=5 // pred_check
      _
    $region10: #{tpu_custom_call.1} parent=5 // pred_check_branch
      %160 = sbr.rel (%p157) target = $region12
    $region11: #{tpu_custom_call.1} parent=5 // pred_region
      %s161 = ssub.s32 %s11, 1
      // Predicated region
      $region13: #{tpu_custom_call.1} parent=11 // pred_check
        %p162 = pneg %p58
      $region14: #{tpu_custom_call.1} parent=11 // pred_check_branch
        %164 = sbr.rel (%p162) target = $region16
      $region15: #{tpu_custom_call.1} parent=11 // pred_region
        _
      $region16: #{tpu_custom_call.1} parent=11 // pred_fallthru
        _
      // Predicated region
      $region17: #{tpu_custom_call.1} parent=11 // pred_check
        %p165 = pneg %p79
      $region18: #{tpu_custom_call.1} parent=11 // pred_check_branch
        %167 = sbr.rel (%p165) target = $region20
      $region19: #{tpu_custom_call.1} parent=11 // pred_region
        _
      $region20: #{tpu_custom_call.1} parent=11 // pred_fallthru
        _
      // Predicated region
      $region21: #{tpu_custom_call.1} parent=11 // pred_check
        %p168 = pneg %p100
      $region22: #{tpu_custom_call.1} parent=11 // pred_check_branch
        %170 = sbr.rel (%p168) target = $region24
      $region23: #{tpu_custom_call.1} parent=11 // pred_region
        _
      $region24: #{tpu_custom_call.1} parent=11 // pred_fallthru
        _
      // Predicated region
      $region25: #{tpu_custom_call.1} parent=11 // pred_check
        %p171 = pneg %p121
      $region26: #{tpu_custom_call.1} parent=11 // pred_check_branch
        %173 = sbr.rel (%p171) target = $region28
      $region27: #{tpu_custom_call.1} parent=11 // pred_region
        _
      $region28: #{tpu_custom_call.1} parent=11 // pred_fallthru
        _
    $region12: #{tpu_custom_call.1} parent=5 // pred_fallthru
      _
    %p174 = scmp.lt.s32.totalorder %s11, 2
    // Predicated region
    $region29: #{tpu_custom_call.1} parent=5 // pred_check
      %p175 = pneg %p174
    $region30: #{tpu_custom_call.1} parent=5 // pred_check_branch
      %177 = sbr.rel (%p175) target = $region32
    $region31: #{tpu_custom_call.1} parent=5 // pred_region
      // Predicated region
      $region33: #{tpu_custom_call.1} parent=31 // pred_check
        %p178 = pneg %p31
      $region34: #{tpu_custom_call.1} parent=31 // pred_check_branch
        %180 = sbr.rel (%p178) target = $region36
      $region35: #{tpu_custom_call.1} parent=31 // pred_region
        %p181 = scmp.lt.s32.totalorder %s11, 1
        %s182 = scalar_select %p181, %s11, 1
        %s183 = smul.addr %s182, 32
        %s184 = smul.addr %s183, 8
        %s185 = scalar_lea.vmem %s0, %s184
      $region36: #{tpu_custom_call.1} parent=31 // pred_fallthru
        _
    $region32: #{tpu_custom_call.1} parent=5 // pred_fallthru
      _
    %p186 = scmp.le.s32.totalorder 1, %s11
    %p187 = scmp.lt.s32.totalorder %s11, 3
    %p188 = pnand %p186, %p187
    %p189 = pneg %p188
    // Predicated region
    $region37: #{tpu_custom_call.1} parent=5 // pred_check
      _
    $region38: #{tpu_custom_call.1} parent=5 // pred_check_branch
      %191 = sbr.rel (%p188) target = $region40
    $region39: #{tpu_custom_call.1} parent=5 // pred_region
      %s192 = ssub.s32 %s11, 1
      %p193 = scmp.lt.s32.totalorder %s16, 1
      %s194 = scalar_select %p193, %s16, 1
      %s195 = smul.addr %s194, 32
      %s196 = smul.addr %s195, 8
      %s197 = scalar_lea.vmem %s0, %s196
      %p198 = pneg %p37
      %p199 = pneg %p34
      %p200 = pneg %p58
      %p201 = pneg %p55
      %p202 = pneg %p79
      %p203 = pneg %p76
      %p204 = pneg %p100
      %p205 = pneg %p97
      %p206 = pneg %p121
      %p207 = pneg %p118
      %p208 = pneg %p147
      %p209 = pneg %p144
      %p210 = scmp.lt.s32.totalorder %s16, 1
      %s211 = scalar_select %p210, %s16, 1
      %s212 = smul.addr %s211, 32
      %s213 = smul.addr %s212, 8
      %s214 = scalar_lea.vmem %s5, %s213
      %p215 = scmp.lt.s32.totalorder %s16, 1
      %s216 = scalar_select %p215, %s16, 1
      %s217 = smul.addr %s216, 32
      %s218 = smul.addr %s217, 8
      %s219 = scalar_lea.vmem %s0, %s218
      %p220 = scmp.lt.s32.totalorder %s16, 1
      %s221 = scalar_select %p220, %s16, 1
      %s222 = smul.addr %s221, 32
      %s223 = smul.addr %s222, 8
      %s224 = scalar_lea.vmem %s5, %s223
      %v225 = vld [vmem:[%s219] sm:$0xff]
      %v226 = vld [vmem:[%s219 + $0x8] sm:$0xff]
      %v227 = vld [vmem:[%s219 + $0x10] sm:$0xff]
      %v228 = vld [vmem:[%s219 + $0x18] sm:$0xff]
      %v229 = vld [vmem:[%s219 + $0x20] sm:$0xff]
      %v230 = vld [vmem:[%s219 + $0x28] sm:$0xff]
      %v231 = vld [vmem:[%s219 + $0x30] sm:$0xff]
      %v232 = vld [vmem:[%s219 + $0x38] sm:$0xff]
      %v233 = vld [vmem:[%s219 + $0x40] sm:$0xff]
      %v234 = vld [vmem:[%s219 + $0x48] sm:$0xff]
      %v235 = vld [vmem:[%s219 + $0x50] sm:$0xff]
      %v236 = vld [vmem:[%s219 + $0x58] sm:$0xff]
      %v237 = vld [vmem:[%s219 + $0x60] sm:$0xff]
      %v238 = vld [vmem:[%s219 + $0x68] sm:$0xff]
      %v239 = vld [vmem:[%s219 + $0x70] sm:$0xff]
      %v240 = vld [vmem:[%s219 + $0x78] sm:$0xff]
      %v241 = vld [vmem:[%s219 + $0x80] sm:$0xff]
      %v242 = vld [vmem:[%s219 + $0x88] sm:$0xff]
      %v243 = vld [vmem:[%s219 + $0x90] sm:$0xff]
      %v244 = vld [vmem:[%s219 + $0x98] sm:$0xff]
      %v245 = vld [vmem:[%s219 + $0xa0] sm:$0xff]
      %v246 = vld [vmem:[%s219 + $0xa8] sm:$0xff]
      %v247 = vld [vmem:[%s219 + $0xb0] sm:$0xff]
      %v248 = vld [vmem:[%s219 + $0xb8] sm:$0xff]
      %v249 = vld [vmem:[%s219 + $0xc0] sm:$0xff]
      %v250 = vld [vmem:[%s219 + $0xc8] sm:$0xff]
      %v251 = vld [vmem:[%s219 + $0xd0] sm:$0xff]
      %v252 = vld [vmem:[%s219 + $0xd8] sm:$0xff]
      %v253 = vld [vmem:[%s219 + $0xe0] sm:$0xff]
      %v254 = vld [vmem:[%s219 + $0xe8] sm:$0xff]
      %v255 = vld [vmem:[%s219 + $0xf0] sm:$0xff]
      %v256 = vld [vmem:[%s219 + $0xf8] sm:$0xff]
      %s257 = scalar_lea.vmem [#allocation2], 24
      %vm258 = vcmask 31744
      %259 = vst.msk [vmem:[%s257 + $0x1] sm:$0xff] %vm258, %v225
      %260 = vst.msk [vmem:[%s257 + $0x9] sm:$0xff] %vm258, %v226
      %261 = vst.msk [vmem:[%s257 + $0x19] sm:$0xff] %vm258, %v227
      %262 = vst.msk [vmem:[%s257 + $0x21] sm:$0xff] %vm258, %v228
      %263 = vst.msk [vmem:[%s257 + $0x31] sm:$0xff] %vm258, %v229
      %264 = vst.msk [vmem:[%s257 + $0x39] sm:$0xff] %vm258, %v230
      %265 = vst.msk [vmem:[%s257 + $0x49] sm:$0xff] %vm258, %v231
      %266 = vst.msk [vmem:[%s257 + $0x51] sm:$0xff] %vm258, %v232
      %267 = vst.msk [vmem:[%s257 + $0x61] sm:$0xff] %vm258, %v233
      %268 = vst.msk [vmem:[%s257 + $0x69] sm:$0xff] %vm258, %v234
      %269 = vst.msk [vmem:[%s257 + $0x79] sm:$0xff] %vm258, %v235
      %270 = vst.msk [vmem:[%s257 + $0x81] sm:$0xff] %vm258, %v236
      %271 = vst.msk [vmem:[%s257 + $0x91] sm:$0xff] %vm258, %v237
      %272 = vst.msk [vmem:[%s257 + $0x99] sm:$0xff] %vm258, %v238
      %273 = vst.msk [vmem:[%s257 + $0xa9] sm:$0xff] %vm258, %v239
      %274 = vst.msk [vmem:[%s257 + $0xb1] sm:$0xff] %vm258, %v240
      %275 = vst.msk [vmem:[%s257 + $0xc1] sm:$0xff] %vm258, %v241
      %276 = vst.msk [vmem:[%s257 + $0xc9] sm:$0xff] %vm258, %v242
      %277 = vst.msk [vmem:[%s257 + $0xd9] sm:$0xff] %vm258, %v243
      %278 = vst.msk [vmem:[%s257 + $0xe1] sm:$0xff] %vm258, %v244
      %279 = vst.msk [vmem:[%s257 + $0xf1] sm:$0xff] %vm258, %v245
      %280 = vst.msk [vmem:[%s257 + $0xf9] sm:$0xff] %vm258, %v246
      %281 = vst.msk [vmem:[%s257 + $0x109] sm:$0xff] %vm258, %v247
      %282 = vst.msk [vmem:[%s257 + $0x111] sm:$0xff] %vm258, %v248
      %283 = vst.msk [vmem:[%s257 + $0x121] sm:$0xff] %vm258, %v249
      %284 = vst.msk [vmem:[%s257 + $0x129] sm:$0xff] %vm258, %v250
      %285 = vst.msk [vmem:[%s257 + $0x139] sm:$0xff] %vm258, %v251
      %286 = vst.msk [vmem:[%s257 + $0x141] sm:$0xff] %vm258, %v252
      %287 = vst.msk [vmem:[%s257 + $0x151] sm:$0xff] %vm258, %v253
      %288 = vst.msk [vmem:[%s257 + $0x159] sm:$0xff] %vm258, %v254
      %289 = vst.msk [vmem:[%s257 + $0x169] sm:$0xff] %vm258, %v255
      %290 = vst.msk [vmem:[%s257 + $0x171] sm:$0xff] %vm258, %v256
      %291 = vst.msk [vmem:[#allocation2 + $0x1] sm:$0xff] %vm258, %v227
      %292 = vst.msk [vmem:[#allocation2 + $0x9] sm:$0xff] %vm258, %v228
      %s293 = scalar_lea.vmem [#allocation2], 408
      %294 = vst.msk [vmem:[%s293 + $0x1] sm:$0xff] %vm258, %v253
      %295 = vst.msk [vmem:[%s293 + $0x9] sm:$0xff] %vm258, %v254
      %v296 = vld [vmem:[#allocation2 + $0x2] sm:$0x1]
      %v297 = vld [vmem:[#allocation2 + $0x1a] sm:$0x1]
      %v298 = vld [vmem:[#allocation2 + $0x32] sm:$0x1]
      %v299 = vld [vmem:[#allocation2 + $0x4a] sm:$0x1]
      %v300 = vld [vmem:[#allocation2 + $0x62] sm:$0x1]
      %v301 = vld [vmem:[#allocation2 + $0x7a] sm:$0x1]
      %v302 = vld [vmem:[#allocation2 + $0x92] sm:$0x1]
      %v303 = vld [vmem:[#allocation2 + $0xaa] sm:$0x1]
      %v304 = vld [vmem:[#allocation2 + $0xc2] sm:$0x1]
      %v305 = vld [vmem:[#allocation2 + $0xda] sm:$0x1]
      %v306 = vld [vmem:[#allocation2 + $0xf2] sm:$0x1]
      %v307 = vld [vmem:[#allocation2 + $0x10a] sm:$0x1]
      %v308 = vld [vmem:[#allocation2 + $0x122] sm:$0x1]
      %v309 = vld [vmem:[#allocation2 + $0x13a] sm:$0x1]
      %v310 = vld [vmem:[#allocation2 + $0x152] sm:$0x1]
      %v311 = vld [vmem:[#allocation2 + $0x16a] sm:$0x1]
      %v312 = vld [vmem:[#allocation2 + $0x182] sm:$0x1]
      %v313 = vld [vmem:[#allocation2 + $0x19a] sm:$0x1]
      %vm314 = vcmask 24576
      %315 = vst.msk [vmem:[#allocation2] sm:$0x1] %vm314, %v296
      %316 = vst.msk [vmem:[#allocation2 + $0x18] sm:$0x1] %vm314, %v297
      %317 = vst.msk [vmem:[#allocation2 + $0x30] sm:$0x1] %vm314, %v298
      %318 = vst.msk [vmem:[#allocation2 + $0x48] sm:$0x1] %vm314, %v299
      %319 = vst.msk [vmem:[#allocation2 + $0x60] sm:$0x1] %vm314, %v300
      %320 = vst.msk [vmem:[#allocation2 + $0x78] sm:$0x1] %vm314, %v301
      %321 = vst.msk [vmem:[#allocation2 + $0x90] sm:$0x1] %vm314, %v302
      %322 = vst.msk [vmem:[#allocation2 + $0xa8] sm:$0x1] %vm314, %v303
      %323 = vst.msk [vmem:[#allocation2 + $0xc0] sm:$0x1] %vm314, %v304
      %324 = vst.msk [vmem:[#allocation2 + $0xd8] sm:$0x1] %vm314, %v305
      %325 = vst.msk [vmem:[#allocation2 + $0xf0] sm:$0x1] %vm314, %v306
      %326 = vst.msk [vmem:[#allocation2 + $0x108] sm:$0x1] %vm314, %v307
      %327 = vst.msk [vmem:[#allocation2 + $0x120] sm:$0x1] %vm314, %v308
      %328 = vst.msk [vmem:[#allocation2 + $0x138] sm:$0x1] %vm314, %v309
      %329 = vst.msk [vmem:[#allocation2 + $0x150] sm:$0x1] %vm314, %v310
      %330 = vst.msk [vmem:[#allocation2 + $0x168] sm:$0x1] %vm314, %v311
      %331 = vst.msk [vmem:[#allocation2 + $0x180] sm:$0x1] %vm314, %v312
      %332 = vst.msk [vmem:[#allocation2 + $0x198] sm:$0x1] %vm314, %v313
      %v333 = vld [vmem:[#allocation2 + $0xf] sm:$0x1]
      %v334 = vld [vmem:[#allocation2 + $0x27] sm:$0x1]
      %v335 = vld [vmem:[#allocation2 + $0x3f] sm:$0x1]
      %v336 = vld [vmem:[#allocation2 + $0x57] sm:$0x1]
      %v337 = vld [vmem:[#allocation2 + $0x6f] sm:$0x1]
      %v338 = vld [vmem:[#allocation2 + $0x87] sm:$0x1]
      %v339 = vld [vmem:[#allocation2 + $0x9f] sm:$0x1]
      %v340 = vld [vmem:[#allocation2 + $0xb7] sm:$0x1]
      %v341 = vld [vmem:[#allocation2 + $0xcf] sm:$0x1]
      %v342 = vld [vmem:[#allocation2 + $0xe7] sm:$0x1]
      %v343 = vld [vmem:[#allocation2 + $0xff] sm:$0x1]
      %v344 = vld [vmem:[#allocation2 + $0x117] sm:$0x1]
      %v345 = vld [vmem:[#allocation2 + $0x12f] sm:$0x1]
      %v346 = vld [vmem:[#allocation2 + $0x147] sm:$0x1]
      %v347 = vld [vmem:[#allocation2 + $0x15f] sm:$0x1]
      %v348 = vld [vmem:[#allocation2 + $0x177] sm:$0x1]
      %v349 = vld [vmem:[#allocation2 + $0x18f] sm:$0x1]
      %v350 = vld [vmem:[#allocation2 + $0x1a7] sm:$0x1]
      %351 = vst.msk [vmem:[#allocation2 + $0x11] sm:$0x1] %vm314, %v333
      %352 = vst.msk [vmem:[#allocation2 + $0x29] sm:$0x1] %vm314, %v334
      %353 = vst.msk [vmem:[#allocation2 + $0x41] sm:$0x1] %vm314, %v335
      %354 = vst.msk [vmem:[#allocation2 + $0x59] sm:$0x1] %vm314, %v336
      %355 = vst.msk [vmem:[#allocation2 + $0x71] sm:$0x1] %vm314, %v337
      %356 = vst.msk [vmem:[#allocation2 + $0x89] sm:$0x1] %vm314, %v338
      %357 = vst.msk [vmem:[#allocation2 + $0xa1] sm:$0x1] %vm314, %v339
      %358 = vst.msk [vmem:[#allocation2 + $0xb9] sm:$0x1] %vm314, %v340
      %359 = vst.msk [vmem:[#allocation2 + $0xd1] sm:$0x1] %vm314, %v341
      %360 = vst.msk [vmem:[#allocation2 + $0xe9] sm:$0x1] %vm314, %v342
      %361 = vst.msk [vmem:[#allocation2 + $0x101] sm:$0x1] %vm314, %v343
      %362 = vst.msk [vmem:[#allocation2 + $0x119] sm:$0x1] %vm314, %v344
      %363 = vst.msk [vmem:[#allocation2 + $0x131] sm:$0x1] %vm314, %v345
      %364 = vst.msk [vmem:[#allocation2 + $0x149] sm:$0x1] %vm314, %v346
      %365 = vst.msk [vmem:[#allocation2 + $0x161] sm:$0x1] %vm314, %v347
      %366 = vst.msk [vmem:[#allocation2 + $0x179] sm:$0x1] %vm314, %v348
      %367 = vst.msk [vmem:[#allocation2 + $0x191] sm:$0x1] %vm314, %v349
      %368 = vst.msk [vmem:[#allocation2 + $0x1a9] sm:$0x1] %vm314, %v350
      %v369 = vld [vmem:[#allocation2] sm:$0xff]
      %v370 = vld [vmem:[#allocation2 + $0x8] sm:$0xff]
      %v371 = vld [vmem:[#allocation2 + $0x18] sm:$0xff]
      %v372 = vld [vmem:[#allocation2 + $0x20] sm:$0xff]
      %v373 = vld [vmem:[#allocation2 + $0x30] sm:$0xff]
      %v374 = vld [vmem:[#allocation2 + $0x38] sm:$0xff]
      %v375 = vld [vmem:[#allocation2 + $0x48] sm:$0xff]
      %v376 = vld [vmem:[#allocation2 + $0x50] sm:$0xff]
      %v377 = vld [vmem:[#allocation2 + $0x60] sm:$0xff]
      %v378 = vld [vmem:[#allocation2 + $0x68] sm:$0xff]
      %v379 = vld [vmem:[#allocation2 + $0x78] sm:$0xff]
      %v380 = vld [vmem:[#allocation2 + $0x80] sm:$0xff]
      %v381 = vld [vmem:[#allocation2 + $0x90] sm:$0xff]
      %v382 = vld [vmem:[#allocation2 + $0x98] sm:$0xff]
      %v383 = vld [vmem:[#allocation2 + $0xa8] sm:$0xff]
      %v384 = vld [vmem:[#allocation2 + $0xb0] sm:$0xff]
      %v385 = vld [vmem:[#allocation2 + $0xc0] sm:$0xff]
      %v386 = vld [vmem:[#allocation2 + $0xc8] sm:$0xff]
      %v387 = vld [vmem:[#allocation2 + $0xd8] sm:$0xff]
      %v388 = vld [vmem:[#allocation2 + $0xe0] sm:$0xff]
      %v389 = vld [vmem:[#allocation2 + $0xf0] sm:$0xff]
      %v390 = vld [vmem:[#allocation2 + $0xf8] sm:$0xff]
      %v391 = vld [vmem:[#allocation2 + $0x108] sm:$0xff]
      %v392 = vld [vmem:[#allocation2 + $0x110] sm:$0xff]
      %v393 = vld [vmem:[#allocation2 + $0x120] sm:$0xff]
      %v394 = vld [vmem:[#allocation2 + $0x128] sm:$0xff]
      %v395 = vld [vmem:[#allocation2 + $0x138] sm:$0xff]
      %v396 = vld [vmem:[#allocation2 + $0x140] sm:$0xff]
      %v397 = vld [vmem:[#allocation2 + $0x150] sm:$0xff]
      %v398 = vld [vmem:[#allocation2 + $0x158] sm:$0xff]
      %v399 = vld [vmem:[#allocation2 + $0x168] sm:$0xff]
      %v400 = vld [vmem:[#allocation2 + $0x170] sm:$0xff]
      %401 = vst.msk [vmem:[#allocation3] sm:$0xff] %vm258, %v369
      %402 = vst.msk [vmem:[#allocation3 + $0x8] sm:$0xff] %vm258, %v370
      %403 = vst.msk [vmem:[#allocation3 + $0x10] sm:$0xff] %vm258, %v371
      %404 = vst.msk [vmem:[#allocation3 + $0x18] sm:$0xff] %vm258, %v372
      %405 = vst.msk [vmem:[#allocation3 + $0x20] sm:$0xff] %vm258, %v373
      %406 = vst.msk [vmem:[#allocation3 + $0x28] sm:$0xff] %vm258, %v374
      %407 = vst.msk [vmem:[#allocation3 + $0x30] sm:$0xff] %vm258, %v375
      %408 = vst.msk [vmem:[#allocation3 + $0x38] sm:$0xff] %vm258, %v376
      %409 = vst.msk [vmem:[#allocation3 + $0x40] sm:$0xff] %vm258, %v377
      %410 = vst.msk [vmem:[#allocation3 + $0x48] sm:$0xff] %vm258, %v378
      %411 = vst.msk [vmem:[#allocation3 + $0x50] sm:$0xff] %vm258, %v379
      %412 = vst.msk [vmem:[#allocation3 + $0x58] sm:$0xff] %vm258, %v380
      %413 = vst.msk [vmem:[#allocation3 + $0x60] sm:$0xff] %vm258, %v381
      %414 = vst.msk [vmem:[#allocation3 + $0x68] sm:$0xff] %vm258, %v382
      %415 = vst.msk [vmem:[#allocation3 + $0x70] sm:$0xff] %vm258, %v383
      %416 = vst.msk [vmem:[#allocation3 + $0x78] sm:$0xff] %vm258, %v384
      %417 = vst.msk [vmem:[#allocation3 + $0x80] sm:$0xff] %vm258, %v385
      %418 = vst.msk [vmem:[#allocation3 + $0x88] sm:$0xff] %vm258, %v386
      %419 = vst.msk [vmem:[#allocation3 + $0x90] sm:$0xff] %vm258, %v387
      %420 = vst.msk [vmem:[#allocation3 + $0x98] sm:$0xff] %vm258, %v388
      %421 = vst.msk [vmem:[#allocation3 + $0xa0] sm:$0xff] %vm258, %v389
      %422 = vst.msk [vmem:[#allocation3 + $0xa8] sm:$0xff] %vm258, %v390
      %423 = vst.msk [vmem:[#allocation3 + $0xb0] sm:$0xff] %vm258, %v391
      %424 = vst.msk [vmem:[#allocation3 + $0xb8] sm:$0xff] %vm258, %v392
      %425 = vst.msk [vmem:[#allocation3 + $0xc0] sm:$0xff] %vm258, %v393
      %426 = vst.msk [vmem:[#allocation3 + $0xc8] sm:$0xff] %vm258, %v394
      %427 = vst.msk [vmem:[#allocation3 + $0xd0] sm:$0xff] %vm258, %v395
      %428 = vst.msk [vmem:[#allocation3 + $0xd8] sm:$0xff] %vm258, %v396
      %429 = vst.msk [vmem:[#allocation3 + $0xe0] sm:$0xff] %vm258, %v397
      %430 = vst.msk [vmem:[#allocation3 + $0xe8] sm:$0xff] %vm258, %v398
      %431 = vst.msk [vmem:[#allocation3 + $0xf0] sm:$0xff] %vm258, %v399
      %432 = vst.msk [vmem:[#allocation3 + $0xf8] sm:$0xff] %vm258, %v400
      %v433 = vld [vmem:[#allocation2 + $0x1] sm:$0xff]
      %v434 = vld [vmem:[#allocation2 + $0x9] sm:$0xff]
      %v435 = vld [vmem:[#allocation2 + $0x19] sm:$0xff]
      %v436 = vld [vmem:[#allocation2 + $0x21] sm:$0xff]
      %v437 = vld [vmem:[#allocation2 + $0x31] sm:$0xff]
      %v438 = vld [vmem:[#allocation2 + $0x39] sm:$0xff]
      %v439 = vld [vmem:[#allocation2 + $0x49] sm:$0xff]
      %v440 = vld [vmem:[#allocation2 + $0x51] sm:$0xff]
      %v441 = vld [vmem:[#allocation2 + $0x61] sm:$0xff]
      %v442 = vld [vmem:[#allocation2 + $0x69] sm:$0xff]
      %v443 = vld [vmem:[#allocation2 + $0x79] sm:$0xff]
      %v444 = vld [vmem:[#allocation2 + $0x81] sm:$0xff]
      %v445 = vld [vmem:[#allocation2 + $0x91] sm:$0xff]
      %v446 = vld [vmem:[#allocation2 + $0x99] sm:$0xff]
      %v447 = vld [vmem:[#allocation2 + $0xa9] sm:$0xff]
      %v448 = vld [vmem:[#allocation2 + $0xb1] sm:$0xff]
      %v449 = vld [vmem:[#allocation2 + $0xc1] sm:$0xff]
      %v450 = vld [vmem:[#allocation2 + $0xc9] sm:$0xff]
      %v451 = vld [vmem:[#allocation2 + $0xd9] sm:$0xff]
      %v452 = vld [vmem:[#allocation2 + $0xe1] sm:$0xff]
      %v453 = vld [vmem:[#allocation2 + $0xf1] sm:$0xff]
      %v454 = vld [vmem:[#allocation2 + $0xf9] sm:$0xff]
      %v455 = vld [vmem:[#allocation2 + $0x109] sm:$0xff]
      %v456 = vld [vmem:[#allocation2 + $0x111] sm:$0xff]
      %v457 = vld [vmem:[#allocation2 + $0x121] sm:$0xff]
      %v458 = vld [vmem:[#allocation2 + $0x129] sm:$0xff]
      %v459 = vld [vmem:[#allocation2 + $0x139] sm:$0xff]
      %v460 = vld [vmem:[#allocation2 + $0x141] sm:$0xff]
      %v461 = vld [vmem:[#allocation2 + $0x151] sm:$0xff]
      %v462 = vld [vmem:[#allocation2 + $0x159] sm:$0xff]
      %v463 = vld [vmem:[#allocation2 + $0x169] sm:$0xff]
      %v464 = vld [vmem:[#allocation2 + $0x171] sm:$0xff]
      %497 = vrot.lane.b32.xlu0 %v433, 4
      %v498 = vpop.permute.xlu0 %497
      %499 = vrot.lane.b32.xlu0 %v434, 4
      %v500 = vpop.permute.xlu0 %499
      %501 = vrot.lane.b32.xlu0 %v435, 4
      %v502 = vpop.permute.xlu0 %501
      %503 = vrot.lane.b32.xlu0 %v436, 4
      %v504 = vpop.permute.xlu0 %503
      %505 = vrot.lane.b32.xlu0 %v437, 4
      %v506 = vpop.permute.xlu0 %505
      %507 = vrot.lane.b32.xlu0 %v438, 4
      %v508 = vpop.permute.xlu0 %507
      %509 = vrot.lane.b32.xlu0 %v439, 4
      %v510 = vpop.permute.xlu0 %509
      %511 = vrot.lane.b32.xlu0 %v440, 4
      %v512 = vpop.permute.xlu0 %511
      %513 = vrot.lane.b32.xlu0 %v441, 4
      %v514 = vpop.permute.xlu0 %513
      %515 = vrot.lane.b32.xlu0 %v442, 4
      %v516 = vpop.permute.xlu0 %515
      %517 = vrot.lane.b32.xlu0 %v443, 4
      %v518 = vpop.permute.xlu0 %517
      %519 = vrot.lane.b32.xlu0 %v444, 4
      %v520 = vpop.permute.xlu0 %519
      %521 = vrot.lane.b32.xlu0 %v445, 4
      %v522 = vpop.permute.xlu0 %521
      %523 = vrot.lane.b32.xlu0 %v446, 4
      %v524 = vpop.permute.xlu0 %523
      %525 = vrot.lane.b32.xlu0 %v447, 4
      %v526 = vpop.permute.xlu0 %525
      %527 = vrot.lane.b32.xlu0 %v448, 4
      %v528 = vpop.permute.xlu0 %527
      %529 = vrot.lane.b32.xlu0 %v449, 4
      %v530 = vpop.permute.xlu0 %529
      %531 = vrot.lane.b32.xlu0 %v450, 4
      %v532 = vpop.permute.xlu0 %531
      %533 = vrot.lane.b32.xlu0 %v451, 4
      %v534 = vpop.permute.xlu0 %533
      %535 = vrot.lane.b32.xlu0 %v452, 4
      %v536 = vpop.permute.xlu0 %535
      %537 = vrot.lane.b32.xlu0 %v453, 4
      %v538 = vpop.permute.xlu0 %537
      %539 = vrot.lane.b32.xlu0 %v454, 4
      %v540 = vpop.permute.xlu0 %539
      %541 = vrot.lane.b32.xlu0 %v455, 4
      %v542 = vpop.permute.xlu0 %541
      %543 = vrot.lane.b32.xlu0 %v456, 4
      %v544 = vpop.permute.xlu0 %543
      %545 = vrot.lane.b32.xlu0 %v457, 4
      %v546 = vpop.permute.xlu0 %545
      %547 = vrot.lane.b32.xlu0 %v458, 4
      %v548 = vpop.permute.xlu0 %547
      %549 = vrot.lane.b32.xlu0 %v459, 4
      %v550 = vpop.permute.xlu0 %549
      %551 = vrot.lane.b32.xlu0 %v460, 4
      %v552 = vpop.permute.xlu0 %551
      %553 = vrot.lane.b32.xlu0 %v461, 4
      %v554 = vpop.permute.xlu0 %553
      %555 = vrot.lane.b32.xlu0 %v462, 4
      %v556 = vpop.permute.xlu0 %555
      %557 = vrot.lane.b32.xlu0 %v463, 4
      %v558 = vpop.permute.xlu0 %557
      %559 = vrot.lane.b32.xlu0 %v464, 4
      %v560 = vpop.permute.xlu0 %559
      %vm593 = vcmask 64544
      %594 = vst.msk [vmem:[#allocation3] sm:$0xff] %vm593, %v498
      %595 = vst.msk [vmem:[#allocation3 + $0x8] sm:$0xff] %vm593, %v500
      %596 = vst.msk [vmem:[#allocation3 + $0x10] sm:$0xff] %vm593, %v502
      %597 = vst.msk [vmem:[#allocation3 + $0x18] sm:$0xff] %vm593, %v504
      %598 = vst.msk [vmem:[#allocation3 + $0x20] sm:$0xff] %vm593, %v506
      %599 = vst.msk [vmem:[#allocation3 + $0x28] sm:$0xff] %vm593, %v508
      %600 = vst.msk [vmem:[#allocation3 + $0x30] sm:$0xff] %vm593, %v510
      %601 = vst.msk [vmem:[#allocation3 + $0x38] sm:$0xff] %vm593, %v512
      %602 = vst.msk [vmem:[#allocation3 + $0x40] sm:$0xff] %vm593, %v514
      %603 = vst.msk [vmem:[#allocation3 + $0x48] sm:$0xff] %vm593, %v516
      %604 = vst.msk [vmem:[#allocation3 + $0x50] sm:$0xff] %vm593, %v518
      %605 = vst.msk [vmem:[#allocation3 + $0x58] sm:$0xff] %vm593, %v520
      %606 = vst.msk [vmem:[#allocation3 + $0x60] sm:$0xff] %vm593, %v522
      %607 = vst.msk [vmem:[#allocation3 + $0x68] sm:$0xff] %vm593, %v524
      %608 = vst.msk [vmem:[#allocation3 + $0x70] sm:$0xff] %vm593, %v526
      %609 = vst.msk [vmem:[#allocation3 + $0x78] sm:$0xff] %vm593, %v528
      %610 = vst.msk [vmem:[#allocation3 + $0x80] sm:$0xff] %vm593, %v530
      %611 = vst.msk [vmem:[#allocation3 + $0x88] sm:$0xff] %vm593, %v532
      %612 = vst.msk [vmem:[#allocation3 + $0x90] sm:$0xff] %vm593, %v534
      %613 = vst.msk [vmem:[#allocation3 + $0x98] sm:$0xff] %vm593, %v536
      %614 = vst.msk [vmem:[#allocation3 + $0xa0] sm:$0xff] %vm593, %v538
      %615 = vst.msk [vmem:[#allocation3 + $0xa8] sm:$0xff] %vm593, %v540
      %616 = vst.msk [vmem:[#allocation3 + $0xb0] sm:$0xff] %vm593, %v542
      %617 = vst.msk [vmem:[#allocation3 + $0xb8] sm:$0xff] %vm593, %v544
      %618 = vst.msk [vmem:[#allocation3 + $0xc0] sm:$0xff] %vm593, %v546
      %619 = vst.msk [vmem:[#allocation3 + $0xc8] sm:$0xff] %vm593, %v548
      %620 = vst.msk [vmem:[#allocation3 + $0xd0] sm:$0xff] %vm593, %v550
      %621 = vst.msk [vmem:[#allocation3 + $0xd8] sm:$0xff] %vm593, %v552
      %622 = vst.msk [vmem:[#allocation3 + $0xe0] sm:$0xff] %vm593, %v554
      %623 = vst.msk [vmem:[#allocation3 + $0xe8] sm:$0xff] %vm593, %v556
      %624 = vst.msk [vmem:[#allocation3 + $0xf0] sm:$0xff] %vm593, %v558
      %625 = vst.msk [vmem:[#allocation3 + $0xf8] sm:$0xff] %vm593, %v560
      %v626 = vld [vmem:[#allocation2 + $0x2] sm:$0xff]
      %v627 = vld [vmem:[#allocation2 + $0xa] sm:$0xff]
      %v628 = vld [vmem:[#allocation2 + $0x1a] sm:$0xff]
      %v629 = vld [vmem:[#allocation2 + $0x22] sm:$0xff]
      %v630 = vld [vmem:[#allocation2 + $0x32] sm:$0xff]
      %v631 = vld [vmem:[#allocation2 + $0x3a] sm:$0xff]
      %v632 = vld [vmem:[#allocation2 + $0x4a] sm:$0xff]
      %v633 = vld [vmem:[#allocation2 + $0x52] sm:$0xff]
      %v634 = vld [vmem:[#allocation2 + $0x62] sm:$0xff]
      %v635 = vld [vmem:[#allocation2 + $0x6a] sm:$0xff]
      %v636 = vld [vmem:[#allocation2 + $0x7a] sm:$0xff]
      %v637 = vld [vmem:[#allocation2 + $0x82] sm:$0xff]
      %v638 = vld [vmem:[#allocation2 + $0x92] sm:$0xff]
      %v639 = vld [vmem:[#allocation2 + $0x9a] sm:$0xff]
      %v640 = vld [vmem:[#allocation2 + $0xaa] sm:$0xff]
      %v641 = vld [vmem:[#allocation2 + $0xb2] sm:$0xff]
      %v642 = vld [vmem:[#allocation2 + $0xc2] sm:$0xff]
      %v643 = vld [vmem:[#allocation2 + $0xca] sm:$0xff]
      %v644 = vld [vmem:[#allocation2 + $0xda] sm:$0xff]
      %v645 = vld [vmem:[#allocation2 + $0xe2] sm:$0xff]
      %v646 = vld [vmem:[#allocation2 + $0xf2] sm:$0xff]
      %v647 = vld [vmem:[#allocation2 + $0xfa] sm:$0xff]
      %v648 = vld [vmem:[#allocation2 + $0x10a] sm:$0xff]
      %v649 = vld [vmem:[#allocation2 + $0x112] sm:$0xff]
      %v650 = vld [vmem:[#allocation2 + $0x122] sm:$0xff]
      %v651 = vld [vmem:[#allocation2 + $0x12a] sm:$0xff]
      %v652 = vld [vmem:[#allocation2 + $0x13a] sm:$0xff]
      %v653 = vld [vmem:[#allocation2 + $0x142] sm:$0xff]
      %v654 = vld [vmem:[#allocation2 + $0x152] sm:$0xff]
      %v655 = vld [vmem:[#allocation2 + $0x15a] sm:$0xff]
      %v656 = vld [vmem:[#allocation2 + $0x16a] sm:$0xff]
      %v657 = vld [vmem:[#allocation2 + $0x172] sm:$0xff]
      %690 = vrot.lane.b32.xlu0 %v626, 8
      %v691 = vpop.permute.xlu0 %690
      %692 = vrot.lane.b32.xlu0 %v627, 8
      %v693 = vpop.permute.xlu0 %692
      %694 = vrot.lane.b32.xlu0 %v628, 8
      %v695 = vpop.permute.xlu0 %694
      %696 = vrot.lane.b32.xlu0 %v629, 8
      %v697 = vpop.permute.xlu0 %696
      %698 = vrot.lane.b32.xlu0 %v630, 8
      %v699 = vpop.permute.xlu0 %698
      %700 = vrot.lane.b32.xlu0 %v631, 8
      %v701 = vpop.permute.xlu0 %700
      %702 = vrot.lane.b32.xlu0 %v632, 8
      %v703 = vpop.permute.xlu0 %702
      %704 = vrot.lane.b32.xlu0 %v633, 8
      %v705 = vpop.permute.xlu0 %704
      %706 = vrot.lane.b32.xlu0 %v634, 8
      %v707 = vpop.permute.xlu0 %706
      %708 = vrot.lane.b32.xlu0 %v635, 8
      %v709 = vpop.permute.xlu0 %708
      %710 = vrot.lane.b32.xlu0 %v636, 8
      %v711 = vpop.permute.xlu0 %710
      %712 = vrot.lane.b32.xlu0 %v637, 8
      %v713 = vpop.permute.xlu0 %712
      %714 = vrot.lane.b32.xlu0 %v638, 8
      %v715 = vpop.permute.xlu0 %714
      %716 = vrot.lane.b32.xlu0 %v639, 8
      %v717 = vpop.permute.xlu0 %716
      %718 = vrot.lane.b32.xlu0 %v640, 8
      %v719 = vpop.permute.xlu0 %718
      %720 = vrot.lane.b32.xlu0 %v641, 8
      %v721 = vpop.permute.xlu0 %720
      %722 = vrot.lane.b32.xlu0 %v642, 8
      %v723 = vpop.permute.xlu0 %722
      %724 = vrot.lane.b32.xlu0 %v643, 8
      %v725 = vpop.permute.xlu0 %724
      %726 = vrot.lane.b32.xlu0 %v644, 8
      %v727 = vpop.permute.xlu0 %726
      %728 = vrot.lane.b32.xlu0 %v645, 8
      %v729 = vpop.permute.xlu0 %728
      %730 = vrot.lane.b32.xlu0 %v646, 8
      %v731 = vpop.permute.xlu0 %730
      %732 = vrot.lane.b32.xlu0 %v647, 8
      %v733 = vpop.permute.xlu0 %732
      %734 = vrot.lane.b32.xlu0 %v648, 8
      %v735 = vpop.permute.xlu0 %734
      %736 = vrot.lane.b32.xlu0 %v649, 8
      %v737 = vpop.permute.xlu0 %736
      %738 = vrot.lane.b32.xlu0 %v650, 8
      %v739 = vpop.permute.xlu0 %738
      %740 = vrot.lane.b32.xlu0 %v651, 8
      %v741 = vpop.permute.xlu0 %740
      %742 = vrot.lane.b32.xlu0 %v652, 8
      %v743 = vpop.permute.xlu0 %742
      %744 = vrot.lane.b32.xlu0 %v653, 8
      %v745 = vpop.permute.xlu0 %744
      %746 = vrot.lane.b32.xlu0 %v654, 8
      %v747 = vpop.permute.xlu0 %746
      %748 = vrot.lane.b32.xlu0 %v655, 8
      %v749 = vpop.permute.xlu0 %748
      %750 = vrot.lane.b32.xlu0 %v656, 8
      %v751 = vpop.permute.xlu0 %750
      %752 = vrot.lane.b32.xlu0 %v657, 8
      %v753 = vpop.permute.xlu0 %752
      %vm786 = vcmask 97344
      %787 = vst.msk [vmem:[#allocation3] sm:$0xff] %vm786, %v691
      %788 = vst.msk [vmem:[#allocation3 + $0x8] sm:$0xff] %vm786, %v693
      %789 = vst.msk [vmem:[#allocation3 + $0x10] sm:$0xff] %vm786, %v695
      %790 = vst.msk [vmem:[#allocation3 + $0x18] sm:$0xff] %vm786, %v697
      %791 = vst.msk [vmem:[#allocation3 + $0x20] sm:$0xff] %vm786, %v699
      %792 = vst.msk [vmem:[#allocation3 + $0x28] sm:$0xff] %vm786, %v701
      %793 = vst.msk [vmem:[#allocation3 + $0x30] sm:$0xff] %vm786, %v703
      %794 = vst.msk [vmem:[#allocation3 + $0x38] sm:$0xff] %vm786, %v705
      %795 = vst.msk [vmem:[#allocation3 + $0x40] sm:$0xff] %vm786, %v707
      %796 = vst.msk [vmem:[#allocation3 + $0x48] sm:$0xff] %vm786, %v709
      %797 = vst.msk [vmem:[#allocation3 + $0x50] sm:$0xff] %vm786, %v711
      %798 = vst.msk [vmem:[#allocation3 + $0x58] sm:$0xff] %vm786, %v713
      %799 = vst.msk [vmem:[#allocation3 + $0x60] sm:$0xff] %vm786, %v715
      %800 = vst.msk [vmem:[#allocation3 + $0x68] sm:$0xff] %vm786, %v717
      %801 = vst.msk [vmem:[#allocation3 + $0x70] sm:$0xff] %vm786, %v719
      %802 = vst.msk [vmem:[#allocation3 + $0x78] sm:$0xff] %vm786, %v721
      %803 = vst.msk [vmem:[#allocation3 + $0x80] sm:$0xff] %vm786, %v723
      %804 = vst.msk [vmem:[#allocation3 + $0x88] sm:$0xff] %vm786, %v725
      %805 = vst.msk [vmem:[#allocation3 + $0x90] sm:$0xff] %vm786, %v727
      %806 = vst.msk [vmem:[#allocation3 + $0x98] sm:$0xff] %vm786, %v729
      %807 = vst.msk [vmem:[#allocation3 + $0xa0] sm:$0xff] %vm786, %v731
      %808 = vst.msk [vmem:[#allocation3 + $0xa8] sm:$0xff] %vm786, %v733
      %809 = vst.msk [vmem:[#allocation3 + $0xb0] sm:$0xff] %vm786, %v735
      %810 = vst.msk [vmem:[#allocation3 + $0xb8] sm:$0xff] %vm786, %v737
      %811 = vst.msk [vmem:[#allocation3 + $0xc0] sm:$0xff] %vm786, %v739
      %812 = vst.msk [vmem:[#allocation3 + $0xc8] sm:$0xff] %vm786, %v741
      %813 = vst.msk [vmem:[#allocation3 + $0xd0] sm:$0xff] %vm786, %v743
      %814 = vst.msk [vmem:[#allocation3 + $0xd8] sm:$0xff] %vm786, %v745
      %815 = vst.msk [vmem:[#allocation3 + $0xe0] sm:$0xff] %vm786, %v747
      %816 = vst.msk [vmem:[#allocation3 + $0xe8] sm:$0xff] %vm786, %v749
      %817 = vst.msk [vmem:[#allocation3 + $0xf0] sm:$0xff] %vm786, %v751
      %818 = vst.msk [vmem:[#allocation3 + $0xf8] sm:$0xff] %vm786, %v753
      %v819 = vld [vmem:[%s257] sm:$0xff]
      %v820 = vld [vmem:[%s257 + $0x8] sm:$0xff]
      %v821 = vld [vmem:[%s257 + $0x18] sm:$0xff]
      %v822 = vld [vmem:[%s257 + $0x20] sm:$0xff]
      %v823 = vld [vmem:[%s257 + $0x30] sm:$0xff]
      %v824 = vld [vmem:[%s257 + $0x38] sm:$0xff]
      %v825 = vld [vmem:[%s257 + $0x48] sm:$0xff]
      %v826 = vld [vmem:[%s257 + $0x50] sm:$0xff]
      %v827 = vld [vmem:[%s257 + $0x60] sm:$0xff]
      %v828 = vld [vmem:[%s257 + $0x68] sm:$0xff]
      %v829 = vld [vmem:[%s257 + $0x78] sm:$0xff]
      %v830 = vld [vmem:[%s257 + $0x80] sm:$0xff]
      %v831 = vld [vmem:[%s257 + $0x90] sm:$0xff]
      %v832 = vld [vmem:[%s257 + $0x98] sm:$0xff]
      %v833 = vld [vmem:[%s257 + $0xa8] sm:$0xff]
      %v834 = vld [vmem:[%s257 + $0xb0] sm:$0xff]
      %v835 = vld [vmem:[%s257 + $0xc0] sm:$0xff]
      %v836 = vld [vmem:[%s257 + $0xc8] sm:$0xff]
      %v837 = vld [vmem:[%s257 + $0xd8] sm:$0xff]
      %v838 = vld [vmem:[%s257 + $0xe0] sm:$0xff]
      %v839 = vld [vmem:[%s257 + $0xf0] sm:$0xff]
      %v840 = vld [vmem:[%s257 + $0xf8] sm:$0xff]
      %v841 = vld [vmem:[%s257 + $0x108] sm:$0xff]
      %v842 = vld [vmem:[%s257 + $0x110] sm:$0xff]
      %v843 = vld [vmem:[%s257 + $0x120] sm:$0xff]
      %v844 = vld [vmem:[%s257 + $0x128] sm:$0xff]
      %v845 = vld [vmem:[%s257 + $0x138] sm:$0xff]
      %v846 = vld [vmem:[%s257 + $0x140] sm:$0xff]
      %v847 = vld [vmem:[%s257 + $0x150] sm:$0xff]
      %v848 = vld [vmem:[%s257 + $0x158] sm:$0xff]
      %v849 = vld [vmem:[%s257 + $0x168] sm:$0xff]
      %v850 = vld [vmem:[%s257 + $0x170] sm:$0xff]
      %883 = vrot.lane.b32.xlu0 %v819, 12
      %v884 = vpop.permute.xlu0 %883
      %885 = vrot.lane.b32.xlu0 %v820, 12
      %v886 = vpop.permute.xlu0 %885
      %887 = vrot.lane.b32.xlu0 %v821, 12
      %v888 = vpop.permute.xlu0 %887
      %889 = vrot.lane.b32.xlu0 %v822, 12
      %v890 = vpop.permute.xlu0 %889
      %891 = vrot.lane.b32.xlu0 %v823, 12
      %v892 = vpop.permute.xlu0 %891
      %893 = vrot.lane.b32.xlu0 %v824, 12
      %v894 = vpop.permute.xlu0 %893
      %895 = vrot.lane.b32.xlu0 %v825, 12
      %v896 = vpop.permute.xlu0 %895
      %897 = vrot.lane.b32.xlu0 %v826, 12
      %v898 = vpop.permute.xlu0 %897
      %899 = vrot.lane.b32.xlu0 %v827, 12
      %v900 = vpop.permute.xlu0 %899
      %901 = vrot.lane.b32.xlu0 %v828, 12
      %v902 = vpop.permute.xlu0 %901
      %903 = vrot.lane.b32.xlu0 %v829, 12
      %v904 = vpop.permute.xlu0 %903
      %905 = vrot.lane.b32.xlu0 %v830, 12
      %v906 = vpop.permute.xlu0 %905
      %907 = vrot.lane.b32.xlu0 %v831, 12
      %v908 = vpop.permute.xlu0 %907
      %909 = vrot.lane.b32.xlu0 %v832, 12
      %v910 = vpop.permute.xlu0 %909
      %911 = vrot.lane.b32.xlu0 %v833, 12
      %v912 = vpop.permute.xlu0 %911
      %913 = vrot.lane.b32.xlu0 %v834, 12
      %v914 = vpop.permute.xlu0 %913
      %915 = vrot.lane.b32.xlu0 %v835, 12
      %v916 = vpop.permute.xlu0 %915
      %917 = vrot.lane.b32.xlu0 %v836, 12
      %v918 = vpop.permute.xlu0 %917
      %919 = vrot.lane.b32.xlu0 %v837, 12
      %v920 = vpop.permute.xlu0 %919
      %921 = vrot.lane.b32.xlu0 %v838, 12
      %v922 = vpop.permute.xlu0 %921
      %923 = vrot.lane.b32.xlu0 %v839, 12
      %v924 = vpop.permute.xlu0 %923
      %925 = vrot.lane.b32.xlu0 %v840, 12
      %v926 = vpop.permute.xlu0 %925
      %927 = vrot.lane.b32.xlu0 %v841, 12
      %v928 = vpop.permute.xlu0 %927
      %929 = vrot.lane.b32.xlu0 %v842, 12
      %v930 = vpop.permute.xlu0 %929
      %931 = vrot.lane.b32.xlu0 %v843, 12
      %v932 = vpop.permute.xlu0 %931
      %933 = vrot.lane.b32.xlu0 %v844, 12
      %v934 = vpop.permute.xlu0 %933
      %935 = vrot.lane.b32.xlu0 %v845, 12
      %v936 = vpop.permute.xlu0 %935
      %937 = vrot.lane.b32.xlu0 %v846, 12
      %v938 = vpop.permute.xlu0 %937
      %939 = vrot.lane.b32.xlu0 %v847, 12
      %v940 = vpop.permute.xlu0 %939
      %941 = vrot.lane.b32.xlu0 %v848, 12
      %v942 = vpop.permute.xlu0 %941
      %943 = vrot.lane.b32.xlu0 %v849, 12
      %v944 = vpop.permute.xlu0 %943
      %945 = vrot.lane.b32.xlu0 %v850, 12
      %v946 = vpop.permute.xlu0 %945
      %vm979 = vcmask 130144
      %980 = vst.msk [vmem:[#allocation3] sm:$0xff] %vm979, %v884
      %981 = vst.msk [vmem:[#allocation3 + $0x8] sm:$0xff] %vm979, %v886
      %982 = vst.msk [vmem:[#allocation3 + $0x10] sm:$0xff] %vm979, %v888
      %983 = vst.msk [vmem:[#allocation3 + $0x18] sm:$0xff] %vm979, %v890
      %984 = vst.msk [vmem:[#allocation3 + $0x20] sm:$0xff] %vm979, %v892
      %985 = vst.msk [vmem:[#allocation3 + $0x28] sm:$0xff] %vm979, %v894
      %986 = vst.msk [vmem:[#allocation3 + $0x30] sm:$0xff] %vm979, %v896
      %987 = vst.msk [vmem:[#allocation3 + $0x38] sm:$0xff] %vm979, %v898
      %988 = vst.msk [vmem:[#allocation3 + $0x40] sm:$0xff] %vm979, %v900
      %989 = vst.msk [vmem:[#allocation3 + $0x48] sm:$0xff] %vm979, %v902
      %990 = vst.msk [vmem:[#allocation3 + $0x50] sm:$0xff] %vm979, %v904
      %991 = vst.msk [vmem:[#allocation3 + $0x58] sm:$0xff] %vm979, %v906
      %992 = vst.msk [vmem:[#allocation3 + $0x60] sm:$0xff] %vm979, %v908
      %993 = vst.msk [vmem:[#allocation3 + $0x68] sm:$0xff] %vm979, %v910
      %994 = vst.msk [vmem:[#allocation3 + $0x70] sm:$0xff] %vm979, %v912
      %995 = vst.msk [vmem:[#allocation3 + $0x78] sm:$0xff] %vm979, %v914
      %996 = vst.msk [vmem:[#allocation3 + $0x80] sm:$0xff] %vm979, %v916
      %997 = vst.msk [vmem:[#allocation3 + $0x88] sm:$0xff] %vm979, %v918
      %998 = vst.msk [vmem:[#allocation3 + $0x90] sm:$0xff] %vm979, %v920
      %999 = vst.msk [vmem:[#allocation3 + $0x98] sm:$0xff] %vm979, %v922
      %1000 = vst.msk [vmem:[#allocation3 + $0xa0] sm:$0xff] %vm979, %v924
      %1001 = vst.msk [vmem:[#allocation3 + $0xa8] sm:$0xff] %vm979, %v926
      %1002 = vst.msk [vmem:[#allocation3 + $0xb0] sm:$0xff] %vm979, %v928
      %1003 = vst.msk [vmem:[#allocation3 + $0xb8] sm:$0xff] %vm979, %v930
      %1004 = vst.msk [vmem:[#allocation3 + $0xc0] sm:$0xff] %vm979, %v932
      %1005 = vst.msk [vmem:[#allocation3 + $0xc8] sm:$0xff] %vm979, %v934
      %1006 = vst.msk [vmem:[#allocation3 + $0xd0] sm:$0xff] %vm979, %v936
      %1007 = vst.msk [vmem:[#allocation3 + $0xd8] sm:$0xff] %vm979, %v938
      %1008 = vst.msk [vmem:[#allocation3 + $0xe0] sm:$0xff] %vm979, %v940
      %1009 = vst.msk [vmem:[#allocation3 + $0xe8] sm:$0xff] %vm979, %v942
      %1010 = vst.msk [vmem:[#allocation3 + $0xf0] sm:$0xff] %vm979, %v944
      %1011 = vst.msk [vmem:[#allocation3 + $0xf8] sm:$0xff] %vm979, %v946
      %v1012 = vld [vmem:[%s257 + $0x1] sm:$0xff]
      %v1013 = vld [vmem:[%s257 + $0x9] sm:$0xff]
      %v1014 = vld [vmem:[%s257 + $0x19] sm:$0xff]
      %v1015 = vld [vmem:[%s257 + $0x21] sm:$0xff]
      %v1016 = vld [vmem:[%s257 + $0x31] sm:$0xff]
      %v1017 = vld [vmem:[%s257 + $0x39] sm:$0xff]
      %v1018 = vld [vmem:[%s257 + $0x49] sm:$0xff]
      %v1019 = vld [vmem:[%s257 + $0x51] sm:$0xff]
      %v1020 = vld [vmem:[%s257 + $0x61] sm:$0xff]
      %v1021 = vld [vmem:[%s257 + $0x69] sm:$0xff]
      %v1022 = vld [vmem:[%s257 + $0x79] sm:$0xff]
      %v1023 = vld [vmem:[%s257 + $0x81] sm:$0xff]
      %v1024 = vld [vmem:[%s257 + $0x91] sm:$0xff]
      %v1025 = vld [vmem:[%s257 + $0x99] sm:$0xff]
      %v1026 = vld [vmem:[%s257 + $0xa9] sm:$0xff]
      %v1027 = vld [vmem:[%s257 + $0xb1] sm:$0xff]
      %v1028 = vld [vmem:[%s257 + $0xc1] sm:$0xff]
      %v1029 = vld [vmem:[%s257 + $0xc9] sm:$0xff]
      %v1030 = vld [vmem:[%s257 + $0xd9] sm:$0xff]
      %v1031 = vld [vmem:[%s257 + $0xe1] sm:$0xff]
      %v1032 = vld [vmem:[%s257 + $0xf1] sm:$0xff]
      %v1033 = vld [vmem:[%s257 + $0xf9] sm:$0xff]
      %v1034 = vld [vmem:[%s257 + $0x109] sm:$0xff]
      %v1035 = vld [vmem:[%s257 + $0x111] sm:$0xff]
      %v1036 = vld [vmem:[%s257 + $0x121] sm:$0xff]
      %v1037 = vld [vmem:[%s257 + $0x129] sm:$0xff]
      %v1038 = vld [vmem:[%s257 + $0x139] sm:$0xff]
      %v1039 = vld [vmem:[%s257 + $0x141] sm:$0xff]
      %v1040 = vld [vmem:[%s257 + $0x151] sm:$0xff]
      %v1041 = vld [vmem:[%s257 + $0x159] sm:$0xff]
      %v1042 = vld [vmem:[%s257 + $0x169] sm:$0xff]
      %v1043 = vld [vmem:[%s257 + $0x171] sm:$0xff]
      %1076 = vrot.lane.b32.xlu0 %v1012, 16
      %v1077 = vpop.permute.xlu0 %1076
      %1078 = vrot.lane.b32.xlu0 %v1013, 16
      %v1079 = vpop.permute.xlu0 %1078
      %1080 = vrot.lane.b32.xlu0 %v1014, 16
      %v1081 = vpop.permute.xlu0 %1080
      %1082 = vrot.lane.b32.xlu0 %v1015, 16
      %v1083 = vpop.permute.xlu0 %1082
      %1084 = vrot.lane.b32.xlu0 %v1016, 16
      %v1085 = vpop.permute.xlu0 %1084
      %1086 = vrot.lane.b32.xlu0 %v1017, 16
      %v1087 = vpop.permute.xlu0 %1086
      %1088 = vrot.lane.b32.xlu0 %v1018, 16
      %v1089 = vpop.permute.xlu0 %1088
      %1090 = vrot.lane.b32.xlu0 %v1019, 16
      %v1091 = vpop.permute.xlu0 %1090
      %1092 = vrot.lane.b32.xlu0 %v1020, 16
      %v1093 = vpop.permute.xlu0 %1092
      %1094 = vrot.lane.b32.xlu0 %v1021, 16
      %v1095 = vpop.permute.xlu0 %1094
      %1096 = vrot.lane.b32.xlu0 %v1022, 16
      %v1097 = vpop.permute.xlu0 %1096
      %1098 = vrot.lane.b32.xlu0 %v1023, 16
      %v1099 = vpop.permute.xlu0 %1098
      %1100 = vrot.lane.b32.xlu0 %v1024, 16
      %v1101 = vpop.permute.xlu0 %1100
      %1102 = vrot.lane.b32.xlu0 %v1025, 16
      %v1103 = vpop.permute.xlu0 %1102
      %1104 = vrot.lane.b32.xlu0 %v1026, 16
      %v1105 = vpop.permute.xlu0 %1104
      %1106 = vrot.lane.b32.xlu0 %v1027, 16
      %v1107 = vpop.permute.xlu0 %1106
      %1108 = vrot.lane.b32.xlu0 %v1028, 16
      %v1109 = vpop.permute.xlu0 %1108
      %1110 = vrot.lane.b32.xlu0 %v1029, 16
      %v1111 = vpop.permute.xlu0 %1110
      %1112 = vrot.lane.b32.xlu0 %v1030, 16
      %v1113 = vpop.permute.xlu0 %1112
      %1114 = vrot.lane.b32.xlu0 %v1031, 16
      %v1115 = vpop.permute.xlu0 %1114
      %1116 = vrot.lane.b32.xlu0 %v1032, 16
      %v1117 = vpop.permute.xlu0 %1116
      %1118 = vrot.lane.b32.xlu0 %v1033, 16
      %v1119 = vpop.permute.xlu0 %1118
      %1120 = vrot.lane.b32.xlu0 %v1034, 16
      %v1121 = vpop.permute.xlu0 %1120
      %1122 = vrot.lane.b32.xlu0 %v1035, 16
      %v1123 = vpop.permute.xlu0 %1122
      %1124 = vrot.lane.b32.xlu0 %v1036, 16
      %v1125 = vpop.permute.xlu0 %1124
      %1126 = vrot.lane.b32.xlu0 %v1037, 16
      %v1127 = vpop.permute.xlu0 %1126
      %1128 = vrot.lane.b32.xlu0 %v1038, 16
      %v1129 = vpop.permute.xlu0 %1128
      %1130 = vrot.lane.b32.xlu0 %v1039, 16
      %v1131 = vpop.permute.xlu0 %1130
      %1132 = vrot.lane.b32.xlu0 %v1040, 16
      %v1133 = vpop.permute.xlu0 %1132
      %1134 = vrot.lane.b32.xlu0 %v1041, 16
      %v1135 = vpop.permute.xlu0 %1134
      %1136 = vrot.lane.b32.xlu0 %v1042, 16
      %v1137 = vpop.permute.xlu0 %1136
      %1138 = vrot.lane.b32.xlu0 %v1043, 16
      %v1139 = vpop.permute.xlu0 %1138
      %vm1172 = vcmask 162944
      %1173 = vst.msk [vmem:[#allocation3] sm:$0xff] %vm1172, %v1077
      %1174 = vst.msk [vmem:[#allocation3 + $0x8] sm:$0xff] %vm1172, %v1079
      %1175 = vst.msk [vmem:[#allocation3 + $0x10] sm:$0xff] %vm1172, %v1081
      %1176 = vst.msk [vmem:[#allocation3 + $0x18] sm:$0xff] %vm1172, %v1083
      %1177 = vst.msk [vmem:[#allocation3 + $0x20] sm:$0xff] %vm1172, %v1085
      %1178 = vst.msk [vmem:[#allocation3 + $0x28] sm:$0xff] %vm1172, %v1087
      %1179 = vst.msk [vmem:[#allocation3 + $0x30] sm:$0xff] %vm1172, %v1089
      %1180 = vst.msk [vmem:[#allocation3 + $0x38] sm:$0xff] %vm1172, %v1091
      %1181 = vst.msk [vmem:[#allocation3 + $0x40] sm:$0xff] %vm1172, %v1093
      %1182 = vst.msk [vmem:[#allocation3 + $0x48] sm:$0xff] %vm1172, %v1095
      %1183 = vst.msk [vmem:[#allocation3 + $0x50] sm:$0xff] %vm1172, %v1097
      %1184 = vst.msk [vmem:[#allocation3 + $0x58] sm:$0xff] %vm1172, %v1099
      %1185 = vst.msk [vmem:[#allocation3 + $0x60] sm:$0xff] %vm1172, %v1101
      %1186 = vst.msk [vmem:[#allocation3 + $0x68] sm:$0xff] %vm1172, %v1103
      %1187 = vst.msk [vmem:[#allocation3 + $0x70] sm:$0xff] %vm1172, %v1105
      %1188 = vst.msk [vmem:[#allocation3 + $0x78] sm:$0xff] %vm1172, %v1107
      %1189 = vst.msk [vmem:[#allocation3 + $0x80] sm:$0xff] %vm1172, %v1109
      %1190 = vst.msk [vmem:[#allocation3 + $0x88] sm:$0xff] %vm1172, %v1111
      %1191 = vst.msk [vmem:[#allocation3 + $0x90] sm:$0xff] %vm1172, %v1113
      %1192 = vst.msk [vmem:[#allocation3 + $0x98] sm:$0xff] %vm1172, %v1115
      %1193 = vst.msk [vmem:[#allocation3 + $0xa0] sm:$0xff] %vm1172, %v1117
      %1194 = vst.msk [vmem:[#allocation3 + $0xa8] sm:$0xff] %vm1172, %v1119
      %1195 = vst.msk [vmem:[#allocation3 + $0xb0] sm:$0xff] %vm1172, %v1121
      %1196 = vst.msk [vmem:[#allocation3 + $0xb8] sm:$0xff] %vm1172, %v1123
      %1197 = vst.msk [vmem:[#allocation3 + $0xc0] sm:$0xff] %vm1172, %v1125
      %1198 = vst.msk [vmem:[#allocation3 + $0xc8] sm:$0xff] %vm1172, %v1127
      %1199 = vst.msk [vmem:[#allocation3 + $0xd0] sm:$0xff] %vm1172, %v1129
      %1200 = vst.msk [vmem:[#allocation3 + $0xd8] sm:$0xff] %vm1172, %v1131
      %1201 = vst.msk [vmem:[#allocation3 + $0xe0] sm:$0xff] %vm1172, %v1133
      %1202 = vst.msk [vmem:[#allocation3 + $0xe8] sm:$0xff] %vm1172, %v1135
      %1203 = vst.msk [vmem:[#allocation3 + $0xf0] sm:$0xff] %vm1172, %v1137
      %1204 = vst.msk [vmem:[#allocation3 + $0xf8] sm:$0xff] %vm1172, %v1139
      %v1205 = vld [vmem:[%s257 + $0x2] sm:$0xff]
      %v1206 = vld [vmem:[%s257 + $0xa] sm:$0xff]
      %v1207 = vld [vmem:[%s257 + $0x1a] sm:$0xff]
      %v1208 = vld [vmem:[%s257 + $0x22] sm:$0xff]
      %v1209 = vld [vmem:[%s257 + $0x32] sm:$0xff]
      %v1210 = vld [vmem:[%s257 + $0x3a] sm:$0xff]
      %v1211 = vld [vmem:[%s257 + $0x4a] sm:$0xff]
      %v1212 = vld [vmem:[%s257 + $0x52] sm:$0xff]
      %v1213 = vld [vmem:[%s257 + $0x62] sm:$0xff]
      %v1214 = vld [vmem:[%s257 + $0x6a] sm:$0xff]
      %v1215 = vld [vmem:[%s257 + $0x7a] sm:$0xff]
      %v1216 = vld [vmem:[%s257 + $0x82] sm:$0xff]
      %v1217 = vld [vmem:[%s257 + $0x92] sm:$0xff]
      %v1218 = vld [vmem:[%s257 + $0x9a] sm:$0xff]
      %v1219 = vld [vmem:[%s257 + $0xaa] sm:$0xff]
      %v1220 = vld [vmem:[%s257 + $0xb2] sm:$0xff]
      %v1221 = vld [vmem:[%s257 + $0xc2] sm:$0xff]
      %v1222 = vld [vmem:[%s257 + $0xca] sm:$0xff]
      %v1223 = vld [vmem:[%s257 + $0xda] sm:$0xff]
      %v1224 = vld [vmem:[%s257 + $0xe2] sm:$0xff]
      %v1225 = vld [vmem:[%s257 + $0xf2] sm:$0xff]
      %v1226 = vld [vmem:[%s257 + $0xfa] sm:$0xff]
      %v1227 = vld [vmem:[%s257 + $0x10a] sm:$0xff]
      %v1228 = vld [vmem:[%s257 + $0x112] sm:$0xff]
      %v1229 = vld [vmem:[%s257 + $0x122] sm:$0xff]
      %v1230 = vld [vmem:[%s257 + $0x12a] sm:$0xff]
      %v1231 = vld [vmem:[%s257 + $0x13a] sm:$0xff]
      %v1232 = vld [vmem:[%s257 + $0x142] sm:$0xff]
      %v1233 = vld [vmem:[%s257 + $0x152] sm:$0xff]
      %v1234 = vld [vmem:[%s257 + $0x15a] sm:$0xff]
      %v1235 = vld [vmem:[%s257 + $0x16a] sm:$0xff]
      %v1236 = vld [vmem:[%s257 + $0x172] sm:$0xff]
      %1269 = vrot.lane.b32.xlu0 %v1205, 20
      %v1270 = vpop.permute.xlu0 %1269
      %1271 = vrot.lane.b32.xlu0 %v1206, 20
      %v1272 = vpop.permute.xlu0 %1271
      %1273 = vrot.lane.b32.xlu0 %v1207, 20
      %v1274 = vpop.permute.xlu0 %1273
      %1275 = vrot.lane.b32.xlu0 %v1208, 20
      %v1276 = vpop.permute.xlu0 %1275
      %1277 = vrot.lane.b32.xlu0 %v1209, 20
      %v1278 = vpop.permute.xlu0 %1277
      %1279 = vrot.lane.b32.xlu0 %v1210, 20
      %v1280 = vpop.permute.xlu0 %1279
      %1281 = vrot.lane.b32.xlu0 %v1211, 20
      %v1282 = vpop.permute.xlu0 %1281
      %1283 = vrot.lane.b32.xlu0 %v1212, 20
      %v1284 = vpop.permute.xlu0 %1283
      %1285 = vrot.lane.b32.xlu0 %v1213, 20
      %v1286 = vpop.permute.xlu0 %1285
      %1287 = vrot.lane.b32.xlu0 %v1214, 20
      %v1288 = vpop.permute.xlu0 %1287
      %1289 = vrot.lane.b32.xlu0 %v1215, 20
      %v1290 = vpop.permute.xlu0 %1289
      %1291 = vrot.lane.b32.xlu0 %v1216, 20
      %v1292 = vpop.permute.xlu0 %1291
      %1293 = vrot.lane.b32.xlu0 %v1217, 20
      %v1294 = vpop.permute.xlu0 %1293
      %1295 = vrot.lane.b32.xlu0 %v1218, 20
      %v1296 = vpop.permute.xlu0 %1295
      %1297 = vrot.lane.b32.xlu0 %v1219, 20
      %v1298 = vpop.permute.xlu0 %1297
      %1299 = vrot.lane.b32.xlu0 %v1220, 20
      %v1300 = vpop.permute.xlu0 %1299
      %1301 = vrot.lane.b32.xlu0 %v1221, 20
      %v1302 = vpop.permute.xlu0 %1301
      %1303 = vrot.lane.b32.xlu0 %v1222, 20
      %v1304 = vpop.permute.xlu0 %1303
      %1305 = vrot.lane.b32.xlu0 %v1223, 20
      %v1306 = vpop.permute.xlu0 %1305
      %1307 = vrot.lane.b32.xlu0 %v1224, 20
      %v1308 = vpop.permute.xlu0 %1307
      %1309 = vrot.lane.b32.xlu0 %v1225, 20
      %v1310 = vpop.permute.xlu0 %1309
      %1311 = vrot.lane.b32.xlu0 %v1226, 20
      %v1312 = vpop.permute.xlu0 %1311
      %1313 = vrot.lane.b32.xlu0 %v1227, 20
      %v1314 = vpop.permute.xlu0 %1313
      %1315 = vrot.lane.b32.xlu0 %v1228, 20
      %v1316 = vpop.permute.xlu0 %1315
      %1317 = vrot.lane.b32.xlu0 %v1229, 20
      %v1318 = vpop.permute.xlu0 %1317
      %1319 = vrot.lane.b32.xlu0 %v1230, 20
      %v1320 = vpop.permute.xlu0 %1319
      %1321 = vrot.lane.b32.xlu0 %v1231, 20
      %v1322 = vpop.permute.xlu0 %1321
      %1323 = vrot.lane.b32.xlu0 %v1232, 20
      %v1324 = vpop.permute.xlu0 %1323
      %1325 = vrot.lane.b32.xlu0 %v1233, 20
      %v1326 = vpop.permute.xlu0 %1325
      %1327 = vrot.lane.b32.xlu0 %v1234, 20
      %v1328 = vpop.permute.xlu0 %1327
      %1329 = vrot.lane.b32.xlu0 %v1235, 20
      %v1330 = vpop.permute.xlu0 %1329
      %1331 = vrot.lane.b32.xlu0 %v1236, 20
      %v1332 = vpop.permute.xlu0 %1331
      %vm1365 = vcmask 195744
      %1366 = vst.msk [vmem:[#allocation3] sm:$0xff] %vm1365, %v1270
      %1367 = vst.msk [vmem:[#allocation3 + $0x8] sm:$0xff] %vm1365, %v1272
      %1368 = vst.msk [vmem:[#allocation3 + $0x10] sm:$0xff] %vm1365, %v1274
      %1369 = vst.msk [vmem:[#allocation3 + $0x18] sm:$0xff] %vm1365, %v1276
      %1370 = vst.msk [vmem:[#allocation3 + $0x20] sm:$0xff] %vm1365, %v1278
      %1371 = vst.msk [vmem:[#allocation3 + $0x28] sm:$0xff] %vm1365, %v1280
      %1372 = vst.msk [vmem:[#allocation3 + $0x30] sm:$0xff] %vm1365, %v1282
      %1373 = vst.msk [vmem:[#allocation3 + $0x38] sm:$0xff] %vm1365, %v1284
      %1374 = vst.msk [vmem:[#allocation3 + $0x40] sm:$0xff] %vm1365, %v1286
      %1375 = vst.msk [vmem:[#allocation3 + $0x48] sm:$0xff] %vm1365, %v1288
      %1376 = vst.msk [vmem:[#allocation3 + $0x50] sm:$0xff] %vm1365, %v1290
      %1377 = vst.msk [vmem:[#allocation3 + $0x58] sm:$0xff] %vm1365, %v1292
      %1378 = vst.msk [vmem:[#allocation3 + $0x60] sm:$0xff] %vm1365, %v1294
      %1379 = vst.msk [vmem:[#allocation3 + $0x68] sm:$0xff] %vm1365, %v1296
      %1380 = vst.msk [vmem:[#allocation3 + $0x70] sm:$0xff] %vm1365, %v1298
      %1381 = vst.msk [vmem:[#allocation3 + $0x78] sm:$0xff] %vm1365, %v1300
      %1382 = vst.msk [vmem:[#allocation3 + $0x80] sm:$0xff] %vm1365, %v1302
      %1383 = vst.msk [vmem:[#allocation3 + $0x88] sm:$0xff] %vm1365, %v1304
      %1384 = vst.msk [vmem:[#allocation3 + $0x90] sm:$0xff] %vm1365, %v1306
      %1385 = vst.msk [vmem:[#allocation3 + $0x98] sm:$0xff] %vm1365, %v1308
      %1386 = vst.msk [vmem:[#allocation3 + $0xa0] sm:$0xff] %vm1365, %v1310
      %1387 = vst.msk [vmem:[#allocation3 + $0xa8] sm:$0xff] %vm1365, %v1312
      %1388 = vst.msk [vmem:[#allocation3 + $0xb0] sm:$0xff] %vm1365, %v1314
      %1389 = vst.msk [vmem:[#allocation3 + $0xb8] sm:$0xff] %vm1365, %v1316
      %1390 = vst.msk [vmem:[#allocation3 + $0xc0] sm:$0xff] %vm1365, %v1318
      %1391 = vst.msk [vmem:[#allocation3 + $0xc8] sm:$0xff] %vm1365, %v1320
      %1392 = vst.msk [vmem:[#allocation3 + $0xd0] sm:$0xff] %vm1365, %v1322
      %1393 = vst.msk [vmem:[#allocation3 + $0xd8] sm:$0xff] %vm1365, %v1324
      %1394 = vst.msk [vmem:[#allocation3 + $0xe0] sm:$0xff] %vm1365, %v1326
      %1395 = vst.msk [vmem:[#allocation3 + $0xe8] sm:$0xff] %vm1365, %v1328
      %1396 = vst.msk [vmem:[#allocation3 + $0xf0] sm:$0xff] %vm1365, %v1330
      %1397 = vst.msk [vmem:[#allocation3 + $0xf8] sm:$0xff] %vm1365, %v1332
      %s1398 = scalar_lea.vmem [#allocation2], 48
      %v1399 = vld [vmem:[%s1398] sm:$0xff]
      %v1400 = vld [vmem:[%s1398 + $0x8] sm:$0xff]
      %v1401 = vld [vmem:[%s1398 + $0x18] sm:$0xff]
      %v1402 = vld [vmem:[%s1398 + $0x20] sm:$0xff]
      %v1403 = vld [vmem:[%s1398 + $0x30] sm:$0xff]
      %v1404 = vld [vmem:[%s1398 + $0x38] sm:$0xff]
      %v1405 = vld [vmem:[%s1398 + $0x48] sm:$0xff]
      %v1406 = vld [vmem:[%s1398 + $0x50] sm:$0xff]
      %v1407 = vld [vmem:[%s1398 + $0x60] sm:$0xff]
      %v1408 = vld [vmem:[%s1398 + $0x68] sm:$0xff]
      %v1409 = vld [vmem:[%s1398 + $0x78] sm:$0xff]
      %v1410 = vld [vmem:[%s1398 + $0x80] sm:$0xff]
      %v1411 = vld [vmem:[%s1398 + $0x90] sm:$0xff]
      %v1412 = vld [vmem:[%s1398 + $0x98] sm:$0xff]
      %v1413 = vld [vmem:[%s1398 + $0xa8] sm:$0xff]
      %v1414 = vld [vmem:[%s1398 + $0xb0] sm:$0xff]
      %v1415 = vld [vmem:[%s1398 + $0xc0] sm:$0xff]
      %v1416 = vld [vmem:[%s1398 + $0xc8] sm:$0xff]
      %v1417 = vld [vmem:[%s1398 + $0xd8] sm:$0xff]
      %v1418 = vld [vmem:[%s1398 + $0xe0] sm:$0xff]
      %v1419 = vld [vmem:[%s1398 + $0xf0] sm:$0xff]
      %v1420 = vld [vmem:[%s1398 + $0xf8] sm:$0xff]
      %v1421 = vld [vmem:[%s1398 + $0x108] sm:$0xff]
      %v1422 = vld [vmem:[%s1398 + $0x110] sm:$0xff]
      %v1423 = vld [vmem:[%s1398 + $0x120] sm:$0xff]
      %v1424 = vld [vmem:[%s1398 + $0x128] sm:$0xff]
      %v1425 = vld [vmem:[%s1398 + $0x138] sm:$0xff]
      %v1426 = vld [vmem:[%s1398 + $0x140] sm:$0xff]
      %v1427 = vld [vmem:[%s1398 + $0x150] sm:$0xff]
      %v1428 = vld [vmem:[%s1398 + $0x158] sm:$0xff]
      %v1429 = vld [vmem:[%s1398 + $0x168] sm:$0xff]
      %v1430 = vld [vmem:[%s1398 + $0x170] sm:$0xff]
      %1463 = vrot.lane.b32.xlu0 %v1399, 24
      %v1464 = vpop.permute.xlu0 %1463
      %1465 = vrot.lane.b32.xlu0 %v1400, 24
      %v1466 = vpop.permute.xlu0 %1465
      %1467 = vrot.lane.b32.xlu0 %v1401, 24
      %v1468 = vpop.permute.xlu0 %1467
      %1469 = vrot.lane.b32.xlu0 %v1402, 24
      %v1470 = vpop.permute.xlu0 %1469
      %1471 = vrot.lane.b32.xlu0 %v1403, 24
      %v1472 = vpop.permute.xlu0 %1471
      %1473 = vrot.lane.b32.xlu0 %v1404, 24
      %v1474 = vpop.permute.xlu0 %1473
      %1475 = vrot.lane.b32.xlu0 %v1405, 24
      %v1476 = vpop.permute.xlu0 %1475
      %1477 = vrot.lane.b32.xlu0 %v1406, 24
      %v1478 = vpop.permute.xlu0 %1477
      %1479 = vrot.lane.b32.xlu0 %v1407, 24
      %v1480 = vpop.permute.xlu0 %1479
      %1481 = vrot.lane.b32.xlu0 %v1408, 24
      %v1482 = vpop.permute.xlu0 %1481
      %1483 = vrot.lane.b32.xlu0 %v1409, 24
      %v1484 = vpop.permute.xlu0 %1483
      %1485 = vrot.lane.b32.xlu0 %v1410, 24
      %v1486 = vpop.permute.xlu0 %1485
      %1487 = vrot.lane.b32.xlu0 %v1411, 24
      %v1488 = vpop.permute.xlu0 %1487
      %1489 = vrot.lane.b32.xlu0 %v1412, 24
      %v1490 = vpop.permute.xlu0 %1489
      %1491 = vrot.lane.b32.xlu0 %v1413, 24
      %v1492 = vpop.permute.xlu0 %1491
      %1493 = vrot.lane.b32.xlu0 %v1414, 24
      %v1494 = vpop.permute.xlu0 %1493
      %1495 = vrot.lane.b32.xlu0 %v1415, 24
      %v1496 = vpop.permute.xlu0 %1495
      %1497 = vrot.lane.b32.xlu0 %v1416, 24
      %v1498 = vpop.permute.xlu0 %1497
      %1499 = vrot.lane.b32.xlu0 %v1417, 24
      %v1500 = vpop.permute.xlu0 %1499
      %1501 = vrot.lane.b32.xlu0 %v1418, 24
      %v1502 = vpop.permute.xlu0 %1501
      %1503 = vrot.lane.b32.xlu0 %v1419, 24
      %v1504 = vpop.permute.xlu0 %1503
      %1505 = vrot.lane.b32.xlu0 %v1420, 24
      %v1506 = vpop.permute.xlu0 %1505
      %1507 = vrot.lane.b32.xlu0 %v1421, 24
      %v1508 = vpop.permute.xlu0 %1507
      %1509 = vrot.lane.b32.xlu0 %v1422, 24
      %v1510 = vpop.permute.xlu0 %1509
      %1511 = vrot.lane.b32.xlu0 %v1423, 24
      %v1512 = vpop.permute.xlu0 %1511
      %1513 = vrot.lane.b32.xlu0 %v1424, 24
      %v1514 = vpop.permute.xlu0 %1513
      %1515 = vrot.lane.b32.xlu0 %v1425, 24
      %v1516 = vpop.permute.xlu0 %1515
      %1517 = vrot.lane.b32.xlu0 %v1426, 24
      %v1518 = vpop.permute.xlu0 %1517
      %1519 = vrot.lane.b32.xlu0 %v1427, 24
      %v1520 = vpop.permute.xlu0 %1519
      %1521 = vrot.lane.b32.xlu0 %v1428, 24
      %v1522 = vpop.permute.xlu0 %1521
      %1523 = vrot.lane.b32.xlu0 %v1429, 24
      %v1524 = vpop.permute.xlu0 %1523
      %1525 = vrot.lane.b32.xlu0 %v1430, 24
      %v1526 = vpop.permute.xlu0 %1525
      %vm1559 = vcmask 228544
      %1560 = vst.msk [vmem:[#allocation3] sm:$0xff] %vm1559, %v1464
      %1561 = vst.msk [vmem:[#allocation3 + $0x8] sm:$0xff] %vm1559, %v1466
      %1562 = vst.msk [vmem:[#allocation3 + $0x10] sm:$0xff] %vm1559, %v1468
      %1563 = vst.msk [vmem:[#allocation3 + $0x18] sm:$0xff] %vm1559, %v1470
      %1564 = vst.msk [vmem:[#allocation3 + $0x20] sm:$0xff] %vm1559, %v1472
      %1565 = vst.msk [vmem:[#allocation3 + $0x28] sm:$0xff] %vm1559, %v1474
      %1566 = vst.msk [vmem:[#allocation3 + $0x30] sm:$0xff] %vm1559, %v1476
      %1567 = vst.msk [vmem:[#allocation3 + $0x38] sm:$0xff] %vm1559, %v1478
      %1568 = vst.msk [vmem:[#allocation3 + $0x40] sm:$0xff] %vm1559, %v1480
      %1569 = vst.msk [vmem:[#allocation3 + $0x48] sm:$0xff] %vm1559, %v1482
      %1570 = vst.msk [vmem:[#allocation3 + $0x50] sm:$0xff] %vm1559, %v1484
      %1571 = vst.msk [vmem:[#allocation3 + $0x58] sm:$0xff] %vm1559, %v1486
      %1572 = vst.msk [vmem:[#allocation3 + $0x60] sm:$0xff] %vm1559, %v1488
      %1573 = vst.msk [vmem:[#allocation3 + $0x68] sm:$0xff] %vm1559, %v1490
      %1574 = vst.msk [vmem:[#allocation3 + $0x70] sm:$0xff] %vm1559, %v1492
      %1575 = vst.msk [vmem:[#allocation3 + $0x78] sm:$0xff] %vm1559, %v1494
      %1576 = vst.msk [vmem:[#allocation3 + $0x80] sm:$0xff] %vm1559, %v1496
      %1577 = vst.msk [vmem:[#allocation3 + $0x88] sm:$0xff] %vm1559, %v1498
      %1578 = vst.msk [vmem:[#allocation3 + $0x90] sm:$0xff] %vm1559, %v1500
      %1579 = vst.msk [vmem:[#allocation3 + $0x98] sm:$0xff] %vm1559, %v1502
      %1580 = vst.msk [vmem:[#allocation3 + $0xa0] sm:$0xff] %vm1559, %v1504
      %1581 = vst.msk [vmem:[#allocation3 + $0xa8] sm:$0xff] %vm1559, %v1506
      %1582 = vst.msk [vmem:[#allocation3 + $0xb0] sm:$0xff] %vm1559, %v1508
      %1583 = vst.msk [vmem:[#allocation3 + $0xb8] sm:$0xff] %vm1559, %v1510
      %1584 = vst.msk [vmem:[#allocation3 + $0xc0] sm:$0xff] %vm1559, %v1512
      %1585 = vst.msk [vmem:[#allocation3 + $0xc8] sm:$0xff] %vm1559, %v1514
      %1586 = vst.msk [vmem:[#allocation3 + $0xd0] sm:$0xff] %vm1559, %v1516
      %1587 = vst.msk [vmem:[#allocation3 + $0xd8] sm:$0xff] %vm1559, %v1518
      %1588 = vst.msk [vmem:[#allocation3 + $0xe0] sm:$0xff] %vm1559, %v1520
      %1589 = vst.msk [vmem:[#allocation3 + $0xe8] sm:$0xff] %vm1559, %v1522
      %1590 = vst.msk [vmem:[#allocation3 + $0xf0] sm:$0xff] %vm1559, %v1524
      %1591 = vst.msk [vmem:[#allocation3 + $0xf8] sm:$0xff] %vm1559, %v1526
      %v1592 = vld [vmem:[%s1398 + $0x1] sm:$0xff]
      %v1593 = vld [vmem:[%s1398 + $0x9] sm:$0xff]
      %v1594 = vld [vmem:[%s1398 + $0x19] sm:$0xff]
      %v1595 = vld [vmem:[%s1398 + $0x21] sm:$0xff]
      %v1596 = vld [vmem:[%s1398 + $0x31] sm:$0xff]
      %v1597 = vld [vmem:[%s1398 + $0x39] sm:$0xff]
      %v1598 = vld [vmem:[%s1398 + $0x49] sm:$0xff]
      %v1599 = vld [vmem:[%s1398 + $0x51] sm:$0xff]
      %v1600 = vld [vmem:[%s1398 + $0x61] sm:$0xff]
      %v1601 = vld [vmem:[%s1398 + $0x69] sm:$0xff]
      %v1602 = vld [vmem:[%s1398 + $0x79] sm:$0xff]
      %v1603 = vld [vmem:[%s1398 + $0x81] sm:$0xff]
      %v1604 = vld [vmem:[%s1398 + $0x91] sm:$0xff]
      %v1605 = vld [vmem:[%s1398 + $0x99] sm:$0xff]
      %v1606 = vld [vmem:[%s1398 + $0xa9] sm:$0xff]
      %v1607 = vld [vmem:[%s1398 + $0xb1] sm:$0xff]
      %v1608 = vld [vmem:[%s1398 + $0xc1] sm:$0xff]
      %v1609 = vld [vmem:[%s1398 + $0xc9] sm:$0xff]
      %v1610 = vld [vmem:[%s1398 + $0xd9] sm:$0xff]
      %v1611 = vld [vmem:[%s1398 + $0xe1] sm:$0xff]
      %v1612 = vld [vmem:[%s1398 + $0xf1] sm:$0xff]
      %v1613 = vld [vmem:[%s1398 + $0xf9] sm:$0xff]
      %v1614 = vld [vmem:[%s1398 + $0x109] sm:$0xff]
      %v1615 = vld [vmem:[%s1398 + $0x111] sm:$0xff]
      %v1616 = vld [vmem:[%s1398 + $0x121] sm:$0xff]
      %v1617 = vld [vmem:[%s1398 + $0x129] sm:$0xff]
      %v1618 = vld [vmem:[%s1398 + $0x139] sm:$0xff]
      %v1619 = vld [vmem:[%s1398 + $0x141] sm:$0xff]
      %v1620 = vld [vmem:[%s1398 + $0x151] sm:$0xff]
      %v1621 = vld [vmem:[%s1398 + $0x159] sm:$0xff]
      %v1622 = vld [vmem:[%s1398 + $0x169] sm:$0xff]
      %v1623 = vld [vmem:[%s1398 + $0x171] sm:$0xff]
      %1656 = vrot.lane.b32.xlu0 %v1592, 28
      %v1657 = vpop.permute.xlu0 %1656
      %1658 = vrot.lane.b32.xlu0 %v1593, 28
      %v1659 = vpop.permute.xlu0 %1658
      %1660 = vrot.lane.b32.xlu0 %v1594, 28
      %v1661 = vpop.permute.xlu0 %1660
      %1662 = vrot.lane.b32.xlu0 %v1595, 28
      %v1663 = vpop.permute.xlu0 %1662
      %1664 = vrot.lane.b32.xlu0 %v1596, 28
      %v1665 = vpop.permute.xlu0 %1664
      %1666 = vrot.lane.b32.xlu0 %v1597, 28
      %v1667 = vpop.permute.xlu0 %1666
      %1668 = vrot.lane.b32.xlu0 %v1598, 28
      %v1669 = vpop.permute.xlu0 %1668
      %1670 = vrot.lane.b32.xlu0 %v1599, 28
      %v1671 = vpop.permute.xlu0 %1670
      %1672 = vrot.lane.b32.xlu0 %v1600, 28
      %v1673 = vpop.permute.xlu0 %1672
      %1674 = vrot.lane.b32.xlu0 %v1601, 28
      %v1675 = vpop.permute.xlu0 %1674
      %1676 = vrot.lane.b32.xlu0 %v1602, 28
      %v1677 = vpop.permute.xlu0 %1676
      %1678 = vrot.lane.b32.xlu0 %v1603, 28
      %v1679 = vpop.permute.xlu0 %1678
      %1680 = vrot.lane.b32.xlu0 %v1604, 28
      %v1681 = vpop.permute.xlu0 %1680
      %1682 = vrot.lane.b32.xlu0 %v1605, 28
      %v1683 = vpop.permute.xlu0 %1682
      %1684 = vrot.lane.b32.xlu0 %v1606, 28
      %v1685 = vpop.permute.xlu0 %1684
      %1686 = vrot.lane.b32.xlu0 %v1607, 28
      %v1687 = vpop.permute.xlu0 %1686
      %1688 = vrot.lane.b32.xlu0 %v1608, 28
      %v1689 = vpop.permute.xlu0 %1688
      %1690 = vrot.lane.b32.xlu0 %v1609, 28
      %v1691 = vpop.permute.xlu0 %1690
      %1692 = vrot.lane.b32.xlu0 %v1610, 28
      %v1693 = vpop.permute.xlu0 %1692
      %1694 = vrot.lane.b32.xlu0 %v1611, 28
      %v1695 = vpop.permute.xlu0 %1694
      %1696 = vrot.lane.b32.xlu0 %v1612, 28
      %v1697 = vpop.permute.xlu0 %1696
      %1698 = vrot.lane.b32.xlu0 %v1613, 28
      %v1699 = vpop.permute.xlu0 %1698
      %1700 = vrot.lane.b32.xlu0 %v1614, 28
      %v1701 = vpop.permute.xlu0 %1700
      %1702 = vrot.lane.b32.xlu0 %v1615, 28
      %v1703 = vpop.permute.xlu0 %1702
      %1704 = vrot.lane.b32.xlu0 %v1616, 28
      %v1705 = vpop.permute.xlu0 %1704
      %1706 = vrot.lane.b32.xlu0 %v1617, 28
      %v1707 = vpop.permute.xlu0 %1706
      %1708 = vrot.lane.b32.xlu0 %v1618, 28
      %v1709 = vpop.permute.xlu0 %1708
      %1710 = vrot.lane.b32.xlu0 %v1619, 28
      %v1711 = vpop.permute.xlu0 %1710
      %1712 = vrot.lane.b32.xlu0 %v1620, 28
      %v1713 = vpop.permute.xlu0 %1712
      %1714 = vrot.lane.b32.xlu0 %v1621, 28
      %v1715 = vpop.permute.xlu0 %1714
      %1716 = vrot.lane.b32.xlu0 %v1622, 28
      %v1717 = vpop.permute.xlu0 %1716
      %1718 = vrot.lane.b32.xlu0 %v1623, 28
      %v1719 = vpop.permute.xlu0 %1718
      %vm1752 = vcmask 261344
      %1753 = vst.msk [vmem:[#allocation3] sm:$0xff] %vm1752, %v1657
      %1754 = vst.msk [vmem:[#allocation3 + $0x8] sm:$0xff] %vm1752, %v1659
      %1755 = vst.msk [vmem:[#allocation3 + $0x10] sm:$0xff] %vm1752, %v1661
      %1756 = vst.msk [vmem:[#allocation3 + $0x18] sm:$0xff] %vm1752, %v1663
      %1757 = vst.msk [vmem:[#allocation3 + $0x20] sm:$0xff] %vm1752, %v1665
      %1758 = vst.msk [vmem:[#allocation3 + $0x28] sm:$0xff] %vm1752, %v1667
      %1759 = vst.msk [vmem:[#allocation3 + $0x30] sm:$0xff] %vm1752, %v1669
      %1760 = vst.msk [vmem:[#allocation3 + $0x38] sm:$0xff] %vm1752, %v1671
      %1761 = vst.msk [vmem:[#allocation3 + $0x40] sm:$0xff] %vm1752, %v1673
      %1762 = vst.msk [vmem:[#allocation3 + $0x48] sm:$0xff] %vm1752, %v1675
      %1763 = vst.msk [vmem:[#allocation3 + $0x50] sm:$0xff] %vm1752, %v1677
      %1764 = vst.msk [vmem:[#allocation3 + $0x58] sm:$0xff] %vm1752, %v1679
      %1765 = vst.msk [vmem:[#allocation3 + $0x60] sm:$0xff] %vm1752, %v1681
      %1766 = vst.msk [vmem:[#allocation3 + $0x68] sm:$0xff] %vm1752, %v1683
      %1767 = vst.msk [vmem:[#allocation3 + $0x70] sm:$0xff] %vm1752, %v1685
      %1768 = vst.msk [vmem:[#allocation3 + $0x78] sm:$0xff] %vm1752, %v1687
      %1769 = vst.msk [vmem:[#allocation3 + $0x80] sm:$0xff] %vm1752, %v1689
      %1770 = vst.msk [vmem:[#allocation3 + $0x88] sm:$0xff] %vm1752, %v1691
      %1771 = vst.msk [vmem:[#allocation3 + $0x90] sm:$0xff] %vm1752, %v1693
      %1772 = vst.msk [vmem:[#allocation3 + $0x98] sm:$0xff] %vm1752, %v1695
      %1773 = vst.msk [vmem:[#allocation3 + $0xa0] sm:$0xff] %vm1752, %v1697
      %1774 = vst.msk [vmem:[#allocation3 + $0xa8] sm:$0xff] %vm1752, %v1699
      %1775 = vst.msk [vmem:[#allocation3 + $0xb0] sm:$0xff] %vm1752, %v1701
      %1776 = vst.msk [vmem:[#allocation3 + $0xb8] sm:$0xff] %vm1752, %v1703
      %1777 = vst.msk [vmem:[#allocation3 + $0xc0] sm:$0xff] %vm1752, %v1705
      %1778 = vst.msk [vmem:[#allocation3 + $0xc8] sm:$0xff] %vm1752, %v1707
      %1779 = vst.msk [vmem:[#allocation3 + $0xd0] sm:$0xff] %vm1752, %v1709
      %1780 = vst.msk [vmem:[#allocation3 + $0xd8] sm:$0xff] %vm1752, %v1711
      %1781 = vst.msk [vmem:[#allocation3 + $0xe0] sm:$0xff] %vm1752, %v1713
      %1782 = vst.msk [vmem:[#allocation3 + $0xe8] sm:$0xff] %vm1752, %v1715
      %1783 = vst.msk [vmem:[#allocation3 + $0xf0] sm:$0xff] %vm1752, %v1717
      %1784 = vst.msk [vmem:[#allocation3 + $0xf8] sm:$0xff] %vm1752, %v1719
      %v1785 = vld [vmem:[%s1398 + $0x2] sm:$0xff]
      %v1786 = vld [vmem:[%s1398 + $0xa] sm:$0xff]
      %v1787 = vld [vmem:[%s1398 + $0x1a] sm:$0xff]
      %v1788 = vld [vmem:[%s1398 + $0x22] sm:$0xff]
      %v1789 = vld [vmem:[%s1398 + $0x32] sm:$0xff]
      %v1790 = vld [vmem:[%s1398 + $0x3a] sm:$0xff]
      %v1791 = vld [vmem:[%s1398 + $0x4a] sm:$0xff]
      %v1792 = vld [vmem:[%s1398 + $0x52] sm:$0xff]
      %v1793 = vld [vmem:[%s1398 + $0x62] sm:$0xff]
      %v1794 = vld [vmem:[%s1398 + $0x6a] sm:$0xff]
      %v1795 = vld [vmem:[%s1398 + $0x7a] sm:$0xff]
      %v1796 = vld [vmem:[%s1398 + $0x82] sm:$0xff]
      %v1797 = vld [vmem:[%s1398 + $0x92] sm:$0xff]
      %v1798 = vld [vmem:[%s1398 + $0x9a] sm:$0xff]
      %v1799 = vld [vmem:[%s1398 + $0xaa] sm:$0xff]
      %v1800 = vld [vmem:[%s1398 + $0xb2] sm:$0xff]
      %v1801 = vld [vmem:[%s1398 + $0xc2] sm:$0xff]
      %v1802 = vld [vmem:[%s1398 + $0xca] sm:$0xff]
      %v1803 = vld [vmem:[%s1398 + $0xda] sm:$0xff]
      %v1804 = vld [vmem:[%s1398 + $0xe2] sm:$0xff]
      %v1805 = vld [vmem:[%s1398 + $0xf2] sm:$0xff]
      %v1806 = vld [vmem:[%s1398 + $0xfa] sm:$0xff]
      %v1807 = vld [vmem:[%s1398 + $0x10a] sm:$0xff]
      %v1808 = vld [vmem:[%s1398 + $0x112] sm:$0xff]
      %v1809 = vld [vmem:[%s1398 + $0x122] sm:$0xff]
      %v1810 = vld [vmem:[%s1398 + $0x12a] sm:$0xff]
      %v1811 = vld [vmem:[%s1398 + $0x13a] sm:$0xff]
      %v1812 = vld [vmem:[%s1398 + $0x142] sm:$0xff]
      %v1813 = vld [vmem:[%s1398 + $0x152] sm:$0xff]
      %v1814 = vld [vmem:[%s1398 + $0x15a] sm:$0xff]
      %v1815 = vld [vmem:[%s1398 + $0x16a] sm:$0xff]
      %v1816 = vld [vmem:[%s1398 + $0x172] sm:$0xff]
      %1849 = vrot.lane.b32.xlu0 %v1785, 32
      %v1850 = vpop.permute.xlu0 %1849
      %1851 = vrot.lane.b32.xlu0 %v1786, 32
      %v1852 = vpop.permute.xlu0 %1851
      %1853 = vrot.lane.b32.xlu0 %v1787, 32
      %v1854 = vpop.permute.xlu0 %1853
      %1855 = vrot.lane.b32.xlu0 %v1788, 32
      %v1856 = vpop.permute.xlu0 %1855
      %1857 = vrot.lane.b32.xlu0 %v1789, 32
      %v1858 = vpop.permute.xlu0 %1857
      %1859 = vrot.lane.b32.xlu0 %v1790, 32
      %v1860 = vpop.permute.xlu0 %1859
      %1861 = vrot.lane.b32.xlu0 %v1791, 32
      %v1862 = vpop.permute.xlu0 %1861
      %1863 = vrot.lane.b32.xlu0 %v1792, 32
      %v1864 = vpop.permute.xlu0 %1863
      %1865 = vrot.lane.b32.xlu0 %v1793, 32
      %v1866 = vpop.permute.xlu0 %1865
      %1867 = vrot.lane.b32.xlu0 %v1794, 32
      %v1868 = vpop.permute.xlu0 %1867
      %1869 = vrot.lane.b32.xlu0 %v1795, 32
      %v1870 = vpop.permute.xlu0 %1869
      %1871 = vrot.lane.b32.xlu0 %v1796, 32
      %v1872 = vpop.permute.xlu0 %1871
      %1873 = vrot.lane.b32.xlu0 %v1797, 32
      %v1874 = vpop.permute.xlu0 %1873
      %1875 = vrot.lane.b32.xlu0 %v1798, 32
      %v1876 = vpop.permute.xlu0 %1875
      %1877 = vrot.lane.b32.xlu0 %v1799, 32
      %v1878 = vpop.permute.xlu0 %1877
      %1879 = vrot.lane.b32.xlu0 %v1800, 32
      %v1880 = vpop.permute.xlu0 %1879
      %1881 = vrot.lane.b32.xlu0 %v1801, 32
      %v1882 = vpop.permute.xlu0 %1881
      %1883 = vrot.lane.b32.xlu0 %v1802, 32
      %v1884 = vpop.permute.xlu0 %1883
      %1885 = vrot.lane.b32.xlu0 %v1803, 32
      %v1886 = vpop.permute.xlu0 %1885
      %1887 = vrot.lane.b32.xlu0 %v1804, 32
      %v1888 = vpop.permute.xlu0 %1887
      %1889 = vrot.lane.b32.xlu0 %v1805, 32
      %v1890 = vpop.permute.xlu0 %1889
      %1891 = vrot.lane.b32.xlu0 %v1806, 32
      %v1892 = vpop.permute.xlu0 %1891
      %1893 = vrot.lane.b32.xlu0 %v1807, 32
      %v1894 = vpop.permute.xlu0 %1893
      %1895 = vrot.lane.b32.xlu0 %v1808, 32
      %v1896 = vpop.permute.xlu0 %1895
      %1897 = vrot.lane.b32.xlu0 %v1809, 32
      %v1898 = vpop.permute.xlu0 %1897
      %1899 = vrot.lane.b32.xlu0 %v1810, 32
      %v1900 = vpop.permute.xlu0 %1899
      %1901 = vrot.lane.b32.xlu0 %v1811, 32
      %v1902 = vpop.permute.xlu0 %1901
      %1903 = vrot.lane.b32.xlu0 %v1812, 32
      %v1904 = vpop.permute.xlu0 %1903
      %1905 = vrot.lane.b32.xlu0 %v1813, 32
      %v1906 = vpop.permute.xlu0 %1905
      %1907 = vrot.lane.b32.xlu0 %v1814, 32
      %v1908 = vpop.permute.xlu0 %1907
      %1909 = vrot.lane.b32.xlu0 %v1815, 32
      %v1910 = vpop.permute.xlu0 %1909
      %1911 = vrot.lane.b32.xlu0 %v1816, 32
      %v1912 = vpop.permute.xlu0 %1911
      %vm1945 = vcmask 294144
      %1946 = vst.msk [vmem:[#allocation3] sm:$0xff] %vm1945, %v1850
      %1947 = vst.msk [vmem:[#allocation3 + $0x8] sm:$0xff] %vm1945, %v1852
      %1948 = vst.msk [vmem:[#allocation3 + $0x10] sm:$0xff] %vm1945, %v1854
      %1949 = vst.msk [vmem:[#allocation3 + $0x18] sm:$0xff] %vm1945, %v1856
      %1950 = vst.msk [vmem:[#allocation3 + $0x20] sm:$0xff] %vm1945, %v1858
      %1951 = vst.msk [vmem:[#allocation3 + $0x28] sm:$0xff] %vm1945, %v1860
      %1952 = vst.msk [vmem:[#allocation3 + $0x30] sm:$0xff] %vm1945, %v1862
      %1953 = vst.msk [vmem:[#allocation3 + $0x38] sm:$0xff] %vm1945, %v1864
      %1954 = vst.msk [vmem:[#allocation3 + $0x40] sm:$0xff] %vm1945, %v1866
      %1955 = vst.msk [vmem:[#allocation3 + $0x48] sm:$0xff] %vm1945, %v1868
      %1956 = vst.msk [vmem:[#allocation3 + $0x50] sm:$0xff] %vm1945, %v1870
      %1957 = vst.msk [vmem:[#allocation3 + $0x58] sm:$0xff] %vm1945, %v1872
      %1958 = vst.msk [vmem:[#allocation3 + $0x60] sm:$0xff] %vm1945, %v1874
      %1959 = vst.msk [vmem:[#allocation3 + $0x68] sm:$0xff] %vm1945, %v1876
      %1960 = vst.msk [vmem:[#allocation3 + $0x70] sm:$0xff] %vm1945, %v1878
      %1961 = vst.msk [vmem:[#allocation3 + $0x78] sm:$0xff] %vm1945, %v1880
      %1962 = vst.msk [vmem:[#allocation3 + $0x80] sm:$0xff] %vm1945, %v1882
      %1963 = vst.msk [vmem:[#allocation3 + $0x88] sm:$0xff] %vm1945, %v1884
      %1964 = vst.msk [vmem:[#allocation3 + $0x90] sm:$0xff] %vm1945, %v1886
      %1965 = vst.msk [vmem:[#allocation3 + $0x98] sm:$0xff] %vm1945, %v1888
      %1966 = vst.msk [vmem:[#allocation3 + $0xa0] sm:$0xff] %vm1945, %v1890
      %1967 = vst.msk [vmem:[#allocation3 + $0xa8] sm:$0xff] %vm1945, %v1892
      %1968 = vst.msk [vmem:[#allocation3 + $0xb0] sm:$0xff] %vm1945, %v1894
      %1969 = vst.msk [vmem:[#allocation3 + $0xb8] sm:$0xff] %vm1945, %v1896
      %1970 = vst.msk [vmem:[#allocation3 + $0xc0] sm:$0xff] %vm1945, %v1898
      %1971 = vst.msk [vmem:[#allocation3 + $0xc8] sm:$0xff] %vm1945, %v1900
      %1972 = vst.msk [vmem:[#allocation3 + $0xd0] sm:$0xff] %vm1945, %v1902
      %1973 = vst.msk [vmem:[#allocation3 + $0xd8] sm:$0xff] %vm1945, %v1904
      %1974 = vst.msk [vmem:[#allocation3 + $0xe0] sm:$0xff] %vm1945, %v1906
      %1975 = vst.msk [vmem:[#allocation3 + $0xe8] sm:$0xff] %vm1945, %v1908
      %1976 = vst.msk [vmem:[#allocation3 + $0xf0] sm:$0xff] %vm1945, %v1910
      %1977 = vst.msk [vmem:[#allocation3 + $0xf8] sm:$0xff] %vm1945, %v1912
      %v1978 = vld [vmem:[#allocation3] sm:$0xff]
      %v1979 = vld [vmem:[#allocation3 + $0x8] sm:$0xff]
      %v1980 = vld [vmem:[#allocation3 + $0x10] sm:$0xff]
      %v1981 = vld [vmem:[#allocation3 + $0x18] sm:$0xff]
      %v1982 = vld [vmem:[#allocation3 + $0x20] sm:$0xff]
      %v1983 = vld [vmem:[#allocation3 + $0x28] sm:$0xff]
      %v1984 = vld [vmem:[#allocation3 + $0x30] sm:$0xff]
      %v1985 = vld [vmem:[#allocation3 + $0x38] sm:$0xff]
      %v1986 = vld [vmem:[#allocation3 + $0x40] sm:$0xff]
      %v1987 = vld [vmem:[#allocation3 + $0x48] sm:$0xff]
      %v1988 = vld [vmem:[#allocation3 + $0x50] sm:$0xff]
      %v1989 = vld [vmem:[#allocation3 + $0x58] sm:$0xff]
      %v1990 = vld [vmem:[#allocation3 + $0x60] sm:$0xff]
      %v1991 = vld [vmem:[#allocation3 + $0x68] sm:$0xff]
      %v1992 = vld [vmem:[#allocation3 + $0x70] sm:$0xff]
      %v1993 = vld [vmem:[#allocation3 + $0x78] sm:$0xff]
      %v1994 = vld [vmem:[#allocation3 + $0x80] sm:$0xff]
      %v1995 = vld [vmem:[#allocation3 + $0x88] sm:$0xff]
      %v1996 = vld [vmem:[#allocation3 + $0x90] sm:$0xff]
      %v1997 = vld [vmem:[#allocation3 + $0x98] sm:$0xff]
      %v1998 = vld [vmem:[#allocation3 + $0xa0] sm:$0xff]
      %v1999 = vld [vmem:[#allocation3 + $0xa8] sm:$0xff]
      %v2000 = vld [vmem:[#allocation3 + $0xb0] sm:$0xff]
      %v2001 = vld [vmem:[#allocation3 + $0xb8] sm:$0xff]
      %v2002 = vld [vmem:[#allocation3 + $0xc0] sm:$0xff]
      %v2003 = vld [vmem:[#allocation3 + $0xc8] sm:$0xff]
      %v2004 = vld [vmem:[#allocation3 + $0xd0] sm:$0xff]
      %v2005 = vld [vmem:[#allocation3 + $0xd8] sm:$0xff]
      %v2006 = vld [vmem:[#allocation3 + $0xe0] sm:$0xff]
      %v2007 = vld [vmem:[#allocation3 + $0xe8] sm:$0xff]
      %v2008 = vld [vmem:[#allocation3 + $0xf0] sm:$0xff]
      %v2009 = vld [vmem:[#allocation3 + $0xf8] sm:$0xff]
      %v2010 = vld [vmem:[%s1] sm:$0xff]
      %v2011 = vld [vmem:[%s1 + $0x8] sm:$0xff]
      %v2012 = vld [vmem:[%s1 + $0x10] sm:$0xff]
      %v2013 = vld [vmem:[%s1 + $0x18] sm:$0xff]
      %v2014 = vld [vmem:[%s1 + $0x20] sm:$0xf]
      %v2015 = vld [vmem:[%s2] sm:$0x1]
      %v2017 = vperm.slane %v2015, 0
      %vm2019 = vcmask 293888
      %v2021 = vsel %vm2019, %v1978, 0
      %v2024 = vsel %vm2019, %v1979, 0
      %v2027 = vsel %vm2019, %v1980, 0
      %v2030 = vsel %vm2019, %v1981, 0
      %v2033 = vsel %vm2019, %v1982, 0
      %v2036 = vsel %vm2019, %v1983, 0
      %v2039 = vsel %vm2019, %v1984, 0
      %v2042 = vsel %vm2019, %v1985, 0
      %v2045 = vsel %vm2019, %v1986, 0
      %v2048 = vsel %vm2019, %v1987, 0
      %v2051 = vsel %vm2019, %v1988, 0
      %v2054 = vsel %vm2019, %v1989, 0
      %v2057 = vsel %vm2019, %v1990, 0
      %v2060 = vsel %vm2019, %v1991, 0
      %v2063 = vsel %vm2019, %v1992, 0
      %v2066 = vsel %vm2019, %v1993, 0
      %v2069 = vsel %vm2019, %v1994, 0
      %v2072 = vsel %vm2019, %v1995, 0
      %v2075 = vsel %vm2019, %v1996, 0
      %v2078 = vsel %vm2019, %v1997, 0
      %v2081 = vsel %vm2019, %v1998, 0
      %v2084 = vsel %vm2019, %v1999, 0
      %v2087 = vsel %vm2019, %v2000, 0
      %v2090 = vsel %vm2019, %v2001, 0
      %v2093 = vsel %vm2019, %v2002, 0
      %v2096 = vsel %vm2019, %v2003, 0
      %v2099 = vsel %vm2019, %v2004, 0
      %v2102 = vsel %vm2019, %v2005, 0
      %v2105 = vsel %vm2019, %v2006, 0
      %v2108 = vsel %vm2019, %v2007, 0
      %v2111 = vsel %vm2019, %v2008, 0
      %v2114 = vsel %vm2019, %v2009, 0
      %vm2116 = vcmask 1043456
      %v2118 = vsel %vm2116, %v2014, 0
      %2120 = vmatpush.msra.mxu0 0.0
      %2121 = vmatpush.msra.mxu0 0.0
      %2122 = vmatpush.msra.mxu0 0.0
      %2123 = vmatpush.msra.mxu0 0.0
      %2124 = vmatpush.msra.mxu0 0.0
      %2125 = vmatpush.msra.mxu0 0.0
      %2126 = vmatpush.msra.mxu0 0.0
      %2127 = vmatpush.msra.mxu0 0.0
      %2128 = vmatpush.msra.mxu0 0.0
      %2129 = vmatpush.msra.mxu0 0.0
      %2130 = vmatpush.msra.mxu0 0.0
      %2131 = vmatpush.msra.mxu0 %v2118
      %2132 = vmatpush.msra.mxu0 %v2013
      %2133 = vmatpush.msra.mxu0 %v2012
      %2134 = vmatpush.msra.mxu0 %v2011
      %2135 = vmatpush.msra.mxu0 %v2010
      %2136 = vmatmul.f32.gmra.mxu0 %v2021
      %v2137 = vpop.f32.mrf.mxu0
      %v2138 = vadd.f32 %v2017, %v2137
      %2139 = vmatmul.f32.gmra.mxu0 %v2024
      %v2140 = vpop.f32.mrf.mxu0
      %v2141 = vadd.f32 %v2017, %v2140
      %2142 = vmatmul.f32.gmra.mxu0 %v2027
      %v2143 = vpop.f32.mrf.mxu0
      %v2144 = vadd.f32 %v2017, %v2143
      %2145 = vmatmul.f32.gmra.mxu0 %v2030
      %v2146 = vpop.f32.mrf.mxu0
      %v2147 = vadd.f32 %v2017, %v2146
      %2148 = vmatmul.f32.gmra.mxu0 %v2033
      %v2149 = vpop.f32.mrf.mxu0
      %v2150 = vadd.f32 %v2017, %v2149
      %2151 = vmatmul.f32.gmra.mxu0 %v2036
      %v2152 = vpop.f32.mrf.mxu0
      %v2153 = vadd.f32 %v2017, %v2152
      %2154 = vmatmul.f32.gmra.mxu0 %v2039
      %v2155 = vpop.f32.mrf.mxu0
      %v2156 = vadd.f32 %v2017, %v2155
      %2157 = vmatmul.f32.gmra.mxu0 %v2042
      %v2158 = vpop.f32.mrf.mxu0
      %v2159 = vadd.f32 %v2017, %v2158
      %2160 = vmatmul.f32.gmra.mxu0 %v2045
      %v2161 = vpop.f32.mrf.mxu0
      %v2162 = vadd.f32 %v2017, %v2161
      %2163 = vmatmul.f32.gmra.mxu0 %v2048
      %v2164 = vpop.f32.mrf.mxu0
      %v2165 = vadd.f32 %v2017, %v2164
      %2166 = vmatmul.f32.gmra.mxu0 %v2051
      %v2167 = vpop.f32.mrf.mxu0
      %v2168 = vadd.f32 %v2017, %v2167
      %2169 = vmatmul.f32.gmra.mxu0 %v2054
      %v2170 = vpop.f32.mrf.mxu0
      %v2171 = vadd.f32 %v2017, %v2170
      %2172 = vmatmul.f32.gmra.mxu0 %v2057
      %v2173 = vpop.f32.mrf.mxu0
      %v2174 = vadd.f32 %v2017, %v2173
      %2175 = vmatmul.f32.gmra.mxu0 %v2060
      %v2176 = vpop.f32.mrf.mxu0
      %v2177 = vadd.f32 %v2017, %v2176
      %2178 = vmatmul.f32.gmra.mxu0 %v2063
      %v2179 = vpop.f32.mrf.mxu0
      %v2180 = vadd.f32 %v2017, %v2179
      %2181 = vmatmul.f32.gmra.mxu0 %v2066
      %v2182 = vpop.f32.mrf.mxu0
      %v2183 = vadd.f32 %v2017, %v2182
      %2184 = vmatmul.f32.gmra.mxu0 %v2069
      %v2185 = vpop.f32.mrf.mxu0
      %v2186 = vadd.f32 %v2017, %v2185
      %2187 = vmatmul.f32.gmra.mxu0 %v2072
      %v2188 = vpop.f32.mrf.mxu0
      %v2189 = vadd.f32 %v2017, %v2188
      %2190 = vmatmul.f32.gmra.mxu0 %v2075
      %v2191 = vpop.f32.mrf.mxu0
      %v2192 = vadd.f32 %v2017, %v2191
      %2193 = vmatmul.f32.gmra.mxu0 %v2078
      %v2194 = vpop.f32.mrf.mxu0
      %v2195 = vadd.f32 %v2017, %v2194
      %2196 = vmatmul.f32.gmra.mxu0 %v2081
      %v2197 = vpop.f32.mrf.mxu0
      %v2198 = vadd.f32 %v2017, %v2197
      %2199 = vmatmul.f32.gmra.mxu0 %v2084
      %v2200 = vpop.f32.mrf.mxu0
      %v2201 = vadd.f32 %v2017, %v2200
      %2202 = vmatmul.f32.gmra.mxu0 %v2087
      %v2203 = vpop.f32.mrf.mxu0
      %v2204 = vadd.f32 %v2017, %v2203
      %2205 = vmatmul.f32.gmra.mxu0 %v2090
      %v2206 = vpop.f32.mrf.mxu0
      %v2207 = vadd.f32 %v2017, %v2206
      %2208 = vmatmul.f32.gmra.mxu0 %v2093
      %v2209 = vpop.f32.mrf.mxu0
      %v2210 = vadd.f32 %v2017, %v2209
      %2211 = vmatmul.f32.gmra.mxu0 %v2096
      %v2212 = vpop.f32.mrf.mxu0
      %v2213 = vadd.f32 %v2017, %v2212
      %2214 = vmatmul.f32.gmra.mxu0 %v2099
      %v2215 = vpop.f32.mrf.mxu0
      %v2216 = vadd.f32 %v2017, %v2215
      %2217 = vmatmul.f32.gmra.mxu0 %v2102
      %v2218 = vpop.f32.mrf.mxu0
      %v2219 = vadd.f32 %v2017, %v2218
      %2220 = vmatmul.f32.gmra.mxu0 %v2105
      %v2221 = vpop.f32.mrf.mxu0
      %v2222 = vadd.f32 %v2017, %v2221
      %2223 = vmatmul.f32.gmra.mxu0 %v2108
      %v2224 = vpop.f32.mrf.mxu0
      %v2225 = vadd.f32 %v2017, %v2224
      %2226 = vmatmul.f32.gmra.mxu0 %v2111
      %v2227 = vpop.f32.mrf.mxu0
      %v2228 = vadd.f32 %v2017, %v2227
      %2229 = vmatmul.f32.gmra.mxu0 %v2114
      %v2230 = vpop.f32.mrf.mxu0
      %v2231 = vadd.f32 %v2017, %v2230
      %2232 = vdwg.mxu0
      %v2233 = vmax.f32 %v2138, 0.0
      %v2234 = vmax.f32 %v2141, 0.0
      %v2235 = vmax.f32 %v2144, 0.0
      %v2236 = vmax.f32 %v2147, 0.0
      %v2237 = vmax.f32 %v2150, 0.0
      %v2238 = vmax.f32 %v2153, 0.0
      %v2239 = vmax.f32 %v2156, 0.0
      %v2240 = vmax.f32 %v2159, 0.0
      %v2241 = vmax.f32 %v2162, 0.0
      %v2242 = vmax.f32 %v2165, 0.0
      %v2243 = vmax.f32 %v2168, 0.0
      %v2244 = vmax.f32 %v2171, 0.0
      %v2245 = vmax.f32 %v2174, 0.0
      %v2246 = vmax.f32 %v2177, 0.0
      %v2247 = vmax.f32 %v2180, 0.0
      %v2248 = vmax.f32 %v2183, 0.0
      %v2249 = vmax.f32 %v2186, 0.0
      %v2250 = vmax.f32 %v2189, 0.0
      %v2251 = vmax.f32 %v2192, 0.0
      %v2252 = vmax.f32 %v2195, 0.0
      %v2253 = vmax.f32 %v2198, 0.0
      %v2254 = vmax.f32 %v2201, 0.0
      %v2255 = vmax.f32 %v2204, 0.0
      %v2256 = vmax.f32 %v2207, 0.0
      %v2257 = vmax.f32 %v2210, 0.0
      %v2258 = vmax.f32 %v2213, 0.0
      %v2259 = vmax.f32 %v2216, 0.0
      %v2260 = vmax.f32 %v2219, 0.0
      %v2261 = vmax.f32 %v2222, 0.0
      %v2262 = vmax.f32 %v2225, 0.0
      %v2263 = vmax.f32 %v2228, 0.0
      %v2264 = vmax.f32 %v2231, 0.0
      %2265 = vst.msk [vmem:[%s257 + $0x1] sm:$0xff] %vm258, %v2233
      %2266 = vst.msk [vmem:[%s257 + $0x9] sm:$0xff] %vm258, %v2234
      %2267 = vst.msk [vmem:[%s257 + $0x19] sm:$0xff] %vm258, %v2235
      %2268 = vst.msk [vmem:[%s257 + $0x21] sm:$0xff] %vm258, %v2236
      %2269 = vst.msk [vmem:[%s257 + $0x31] sm:$0xff] %vm258, %v2237
      %2270 = vst.msk [vmem:[%s257 + $0x39] sm:$0xff] %vm258, %v2238
      %2271 = vst.msk [vmem:[%s257 + $0x49] sm:$0xff] %vm258, %v2239
      %2272 = vst.msk [vmem:[%s257 + $0x51] sm:$0xff] %vm258, %v2240
      %2273 = vst.msk [vmem:[%s257 + $0x61] sm:$0xff] %vm258, %v2241
      %2274 = vst.msk [vmem:[%s257 + $0x69] sm:$0xff] %vm258, %v2242
      %2275 = vst.msk [vmem:[%s257 + $0x79] sm:$0xff] %vm258, %v2243
      %2276 = vst.msk [vmem:[%s257 + $0x81] sm:$0xff] %vm258, %v2244
      %2277 = vst.msk [vmem:[%s257 + $0x91] sm:$0xff] %vm258, %v2245
      %2278 = vst.msk [vmem:[%s257 + $0x99] sm:$0xff] %vm258, %v2246
      %2279 = vst.msk [vmem:[%s257 + $0xa9] sm:$0xff] %vm258, %v2247
      %2280 = vst.msk [vmem:[%s257 + $0xb1] sm:$0xff] %vm258, %v2248
      %2281 = vst.msk [vmem:[%s257 + $0xc1] sm:$0xff] %vm258, %v2249
      %2282 = vst.msk [vmem:[%s257 + $0xc9] sm:$0xff] %vm258, %v2250
      %2283 = vst.msk [vmem:[%s257 + $0xd9] sm:$0xff] %vm258, %v2251
      %2284 = vst.msk [vmem:[%s257 + $0xe1] sm:$0xff] %vm258, %v2252
      %2285 = vst.msk [vmem:[%s257 + $0xf1] sm:$0xff] %vm258, %v2253
      %2286 = vst.msk [vmem:[%s257 + $0xf9] sm:$0xff] %vm258, %v2254
      %2287 = vst.msk [vmem:[%s257 + $0x109] sm:$0xff] %vm258, %v2255
      %2288 = vst.msk [vmem:[%s257 + $0x111] sm:$0xff] %vm258, %v2256
      %2289 = vst.msk [vmem:[%s257 + $0x121] sm:$0xff] %vm258, %v2257
      %2290 = vst.msk [vmem:[%s257 + $0x129] sm:$0xff] %vm258, %v2258
      %2291 = vst.msk [vmem:[%s257 + $0x139] sm:$0xff] %vm258, %v2259
      %2292 = vst.msk [vmem:[%s257 + $0x141] sm:$0xff] %vm258, %v2260
      %2293 = vst.msk [vmem:[%s257 + $0x151] sm:$0xff] %vm258, %v2261
      %2294 = vst.msk [vmem:[%s257 + $0x159] sm:$0xff] %vm258, %v2262
      %2295 = vst.msk [vmem:[%s257 + $0x169] sm:$0xff] %vm258, %v2263
      %2296 = vst.msk [vmem:[%s257 + $0x171] sm:$0xff] %vm258, %v2264
      %2297 = vst.msk [vmem:[#allocation2 + $0x1] sm:$0xff] %vm258, %v2235
      %2298 = vst.msk [vmem:[#allocation2 + $0x9] sm:$0xff] %vm258, %v2236
      %2299 = vst.msk [vmem:[%s293 + $0x1] sm:$0xff] %vm258, %v2261
      %2300 = vst.msk [vmem:[%s293 + $0x9] sm:$0xff] %vm258, %v2262
      %v2301 = vld [vmem:[#allocation2 + $0x2] sm:$0x1]
      %v2302 = vld [vmem:[#allocation2 + $0x1a] sm:$0x1]
      %v2303 = vld [vmem:[#allocation2 + $0x32] sm:$0x1]
      %v2304 = vld [vmem:[#allocation2 + $0x4a] sm:$0x1]
      %v2305 = vld [vmem:[#allocation2 + $0x62] sm:$0x1]
      %v2306 = vld [vmem:[#allocation2 + $0x7a] sm:$0x1]
      %v2307 = vld [vmem:[#allocation2 + $0x92] sm:$0x1]
      %v2308 = vld [vmem:[#allocation2 + $0xaa] sm:$0x1]
      %v2309 = vld [vmem:[#allocation2 + $0xc2] sm:$0x1]
      %v2310 = vld [vmem:[#allocation2 + $0xda] sm:$0x1]
      %v2311 = vld [vmem:[#allocation2 + $0xf2] sm:$0x1]
      %v2312 = vld [vmem:[#allocation2 + $0x10a] sm:$0x1]
      %v2313 = vld [vmem:[#allocation2 + $0x122] sm:$0x1]
      %v2314 = vld [vmem:[#allocation2 + $0x13a] sm:$0x1]
      %v2315 = vld [vmem:[#allocation2 + $0x152] sm:$0x1]
      %v2316 = vld [vmem:[#allocation2 + $0x16a] sm:$0x1]
      %v2317 = vld [vmem:[#allocation2 + $0x182] sm:$0x1]
      %v2318 = vld [vmem:[#allocation2 + $0x19a] sm:$0x1]
      %2319 = vst.msk [vmem:[#allocation2] sm:$0x1] %vm314, %v2301
      %2320 = vst.msk [vmem:[#allocation2 + $0x18] sm:$0x1] %vm314, %v2302
      %2321 = vst.msk [vmem:[#allocation2 + $0x30] sm:$0x1] %vm314, %v2303
      %2322 = vst.msk [vmem:[#allocation2 + $0x48] sm:$0x1] %vm314, %v2304
      %2323 = vst.msk [vmem:[#allocation2 + $0x60] sm:$0x1] %vm314, %v2305
      %2324 = vst.msk [vmem:[#allocation2 + $0x78] sm:$0x1] %vm314, %v2306
      %2325 = vst.msk [vmem:[#allocation2 + $0x90] sm:$0x1] %vm314, %v2307
      %2326 = vst.msk [vmem:[#allocation2 + $0xa8] sm:$0x1] %vm314, %v2308
      %2327 = vst.msk [vmem:[#allocation2 + $0xc0] sm:$0x1] %vm314, %v2309
      %2328 = vst.msk [vmem:[#allocation2 + $0xd8] sm:$0x1] %vm314, %v2310
      %2329 = vst.msk [vmem:[#allocation2 + $0xf0] sm:$0x1] %vm314, %v2311
      %2330 = vst.msk [vmem:[#allocation2 + $0x108] sm:$0x1] %vm314, %v2312
      %2331 = vst.msk [vmem:[#allocation2 + $0x120] sm:$0x1] %vm314, %v2313
      %2332 = vst.msk [vmem:[#allocation2 + $0x138] sm:$0x1] %vm314, %v2314
      %2333 = vst.msk [vmem:[#allocation2 + $0x150] sm:$0x1] %vm314, %v2315
      %2334 = vst.msk [vmem:[#allocation2 + $0x168] sm:$0x1] %vm314, %v2316
      %2335 = vst.msk [vmem:[#allocation2 + $0x180] sm:$0x1] %vm314, %v2317
      %2336 = vst.msk [vmem:[#allocation2 + $0x198] sm:$0x1] %vm314, %v2318
      %v2337 = vld [vmem:[#allocation2 + $0xf] sm:$0x1]
      %v2338 = vld [vmem:[#allocation2 + $0x27] sm:$0x1]
      %v2339 = vld [vmem:[#allocation2 + $0x3f] sm:$0x1]
      %v2340 = vld [vmem:[#allocation2 + $0x57] sm:$0x1]
      %v2341 = vld [vmem:[#allocation2 + $0x6f] sm:$0x1]
      %v2342 = vld [vmem:[#allocation2 + $0x87] sm:$0x1]
      %v2343 = vld [vmem:[#allocation2 + $0x9f] sm:$0x1]
      %v2344 = vld [vmem:[#allocation2 + $0xb7] sm:$0x1]
      %v2345 = vld [vmem:[#allocation2 + $0xcf] sm:$0x1]
      %v2346 = vld [vmem:[#allocation2 + $0xe7] sm:$0x1]
      %v2347 = vld [vmem:[#allocation2 + $0xff] sm:$0x1]
      %v2348 = vld [vmem:[#allocation2 + $0x117] sm:$0x1]
      %v2349 = vld [vmem:[#allocation2 + $0x12f] sm:$0x1]
      %v2350 = vld [vmem:[#allocation2 + $0x147] sm:$0x1]
      %v2351 = vld [vmem:[#allocation2 + $0x15f] sm:$0x1]
      %v2352 = vld [vmem:[#allocation2 + $0x177] sm:$0x1]
      %v2353 = vld [vmem:[#allocation2 + $0x18f] sm:$0x1]
      %v2354 = vld [vmem:[#allocation2 + $0x1a7] sm:$0x1]
      %2355 = vst.msk [vmem:[#allocation2 + $0x11] sm:$0x1] %vm314, %v2337
      %2356 = vst.msk [vmem:[#allocation2 + $0x29] sm:$0x1] %vm314, %v2338
      %2357 = vst.msk [vmem:[#allocation2 + $0x41] sm:$0x1] %vm314, %v2339
      %2358 = vst.msk [vmem:[#allocation2 + $0x59] sm:$0x1] %vm314, %v2340
      %2359 = vst.msk [vmem:[#allocation2 + $0x71] sm:$0x1] %vm314, %v2341
      %2360 = vst.msk [vmem:[#allocation2 + $0x89] sm:$0x1] %vm314, %v2342
      %2361 = vst.msk [vmem:[#allocation2 + $0xa1] sm:$0x1] %vm314, %v2343
      %2362 = vst.msk [vmem:[#allocation2 + $0xb9] sm:$0x1] %vm314, %v2344
      %2363 = vst.msk [vmem:[#allocation2 + $0xd1] sm:$0x1] %vm314, %v2345
      %2364 = vst.msk [vmem:[#allocation2 + $0xe9] sm:$0x1] %vm314, %v2346
      %2365 = vst.msk [vmem:[#allocation2 + $0x101] sm:$0x1] %vm314, %v2347
      %2366 = vst.msk [vmem:[#allocation2 + $0x119] sm:$0x1] %vm314, %v2348
      %2367 = vst.msk [vmem:[#allocation2 + $0x131] sm:$0x1] %vm314, %v2349
      %2368 = vst.msk [vmem:[#allocation2 + $0x149] sm:$0x1] %vm314, %v2350
      %2369 = vst.msk [vmem:[#allocation2 + $0x161] sm:$0x1] %vm314, %v2351
      %2370 = vst.msk [vmem:[#allocation2 + $0x179] sm:$0x1] %vm314, %v2352
      %2371 = vst.msk [vmem:[#allocation2 + $0x191] sm:$0x1] %vm314, %v2353
      %2372 = vst.msk [vmem:[#allocation2 + $0x1a9] sm:$0x1] %vm314, %v2354
      %v2373 = vld [vmem:[#allocation2] sm:$0xff]
      %v2374 = vld [vmem:[#allocation2 + $0x8] sm:$0xff]
      %v2375 = vld [vmem:[#allocation2 + $0x18] sm:$0xff]
      %v2376 = vld [vmem:[#allocation2 + $0x20] sm:$0xff]
      %v2377 = vld [vmem:[#allocation2 + $0x30] sm:$0xff]
      %v2378 = vld [vmem:[#allocation2 + $0x38] sm:$0xff]
      %v2379 = vld [vmem:[#allocation2 + $0x48] sm:$0xff]
      %v2380 = vld [vmem:[#allocation2 + $0x50] sm:$0xff]
      %v2381 = vld [vmem:[#allocation2 + $0x60] sm:$0xff]
      %v2382 = vld [vmem:[#allocation2 + $0x68] sm:$0xff]
      %v2383 = vld [vmem:[#allocation2 + $0x78] sm:$0xff]
      %v2384 = vld [vmem:[#allocation2 + $0x80] sm:$0xff]
      %v2385 = vld [vmem:[#allocation2 + $0x90] sm:$0xff]
      %v2386 = vld [vmem:[#allocation2 + $0x98] sm:$0xff]
      %v2387 = vld [vmem:[#allocation2 + $0xa8] sm:$0xff]
      %v2388 = vld [vmem:[#allocation2 + $0xb0] sm:$0xff]
      %v2389 = vld [vmem:[#allocation2 + $0xc0] sm:$0xff]
      %v2390 = vld [vmem:[#allocation2 + $0xc8] sm:$0xff]
      %v2391 = vld [vmem:[#allocation2 + $0xd8] sm:$0xff]
      %v2392 = vld [vmem:[#allocation2 + $0xe0] sm:$0xff]
      %v2393 = vld [vmem:[#allocation2 + $0xf0] sm:$0xff]
      %v2394 = vld [vmem:[#allocation2 + $0xf8] sm:$0xff]
      %v2395 = vld [vmem:[#allocation2 + $0x108] sm:$0xff]
      %v2396 = vld [vmem:[#allocation2 + $0x110] sm:$0xff]
      %v2397 = vld [vmem:[#allocation2 + $0x120] sm:$0xff]
      %v2398 = vld [vmem:[#allocation2 + $0x128] sm:$0xff]
      %v2399 = vld [vmem:[#allocation2 + $0x138] sm:$0xff]
      %v2400 = vld [vmem:[#allocation2 + $0x140] sm:$0xff]
      %v2401 = vld [vmem:[#allocation2 + $0x150] sm:$0xff]
      %v2402 = vld [vmem:[#allocation2 + $0x158] sm:$0xff]
      %v2403 = vld [vmem:[#allocation2 + $0x168] sm:$0xff]
      %v2404 = vld [vmem:[#allocation2 + $0x170] sm:$0xff]
      %2405 = vst.msk [vmem:[#allocation3] sm:$0xff] %vm258, %v2373
      %2406 = vst.msk [vmem:[#allocation3 + $0x8] sm:$0xff] %vm258, %v2374
      %2407 = vst.msk [vmem:[#allocation3 + $0x10] sm:$0xff] %vm258, %v2375
      %2408 = vst.msk [vmem:[#allocation3 + $0x18] sm:$0xff] %vm258, %v2376
      %2409 = vst.msk [vmem:[#allocation3 + $0x20] sm:$0xff] %vm258, %v2377
      %2410 = vst.msk [vmem:[#allocation3 + $0x28] sm:$0xff] %vm258, %v2378
      %2411 = vst.msk [vmem:[#allocation3 + $0x30] sm:$0xff] %vm258, %v2379
      %2412 = vst.msk [vmem:[#allocation3 + $0x38] sm:$0xff] %vm258, %v2380
      %2413 = vst.msk [vmem:[#allocation3 + $0x40] sm:$0xff] %vm258, %v2381
      %2414 = vst.msk [vmem:[#allocation3 + $0x48] sm:$0xff] %vm258, %v2382
      %2415 = vst.msk [vmem:[#allocation3 + $0x50] sm:$0xff] %vm258, %v2383
      %2416 = vst.msk [vmem:[#allocation3 + $0x58] sm:$0xff] %vm258, %v2384
      %2417 = vst.msk [vmem:[#allocation3 + $0x60] sm:$0xff] %vm258, %v2385
      %2418 = vst.msk [vmem:[#allocation3 + $0x68] sm:$0xff] %vm258, %v2386
      %2419 = vst.msk [vmem:[#allocation3 + $0x70] sm:$0xff] %vm258, %v2387
      %2420 = vst.msk [vmem:[#allocation3 + $0x78] sm:$0xff] %vm258, %v2388
      %2421 = vst.msk [vmem:[#allocation3 + $0x80] sm:$0xff] %vm258, %v2389
      %2422 = vst.msk [vmem:[#allocation3 + $0x88] sm:$0xff] %vm258, %v2390
      %2423 = vst.msk [vmem:[#allocation3 + $0x90] sm:$0xff] %vm258, %v2391
      %2424 = vst.msk [vmem:[#allocation3 + $0x98] sm:$0xff] %vm258, %v2392
      %2425 = vst.msk [vmem:[#allocation3 + $0xa0] sm:$0xff] %vm258, %v2393
      %2426 = vst.msk [vmem:[#allocation3 + $0xa8] sm:$0xff] %vm258, %v2394
      %2427 = vst.msk [vmem:[#allocation3 + $0xb0] sm:$0xff] %vm258, %v2395
      %2428 = vst.msk [vmem:[#allocation3 + $0xb8] sm:$0xff] %vm258, %v2396
      %2429 = vst.msk [vmem:[#allocation3 + $0xc0] sm:$0xff] %vm258, %v2397
      %2430 = vst.msk [vmem:[#allocation3 + $0xc8] sm:$0xff] %vm258, %v2398
      %2431 = vst.msk [vmem:[#allocation3 + $0xd0] sm:$0xff] %vm258, %v2399
      %2432 = vst.msk [vmem:[#allocation3 + $0xd8] sm:$0xff] %vm258, %v2400
      %2433 = vst.msk [vmem:[#allocation3 + $0xe0] sm:$0xff] %vm258, %v2401
      %2434 = vst.msk [vmem:[#allocation3 + $0xe8] sm:$0xff] %vm258, %v2402
      %2435 = vst.msk [vmem:[#allocation3 + $0xf0] sm:$0xff] %vm258, %v2403
      %2436 = vst.msk [vmem:[#allocation3 + $0xf8] sm:$0xff] %vm258, %v2404
      %v2437 = vld [vmem:[#allocation2 + $0x1] sm:$0xff]
      %v2438 = vld [vmem:[#allocation2 + $0x9] sm:$0xff]
      %v2439 = vld [vmem:[#allocation2 + $0x19] sm:$0xff]
      %v2440 = vld [vmem:[#allocation2 + $0x21] sm:$0xff]
      %v2441 = vld [vmem:[#allocation2 + $0x31] sm:$0xff]
      %v2442 = vld [vmem:[#allocation2 + $0x39] sm:$0xff]
      %v2443 = vld [vmem:[#allocation2 + $0x49] sm:$0xff]
      %v2444 = vld [vmem:[#allocation2 + $0x51] sm:$0xff]
      %v2445 = vld [vmem:[#allocation2 + $0x61] sm:$0xff]
      %v2446 = vld [vmem:[#allocation2 + $0x69] sm:$0xff]
      %v2447 = vld [vmem:[#allocation2 + $0x79] sm:$0xff]
      %v2448 = vld [vmem:[#allocation2 + $0x81] sm:$0xff]
      %v2449 = vld [vmem:[#allocation2 + $0x91] sm:$0xff]
      %v2450 = vld [vmem:[#allocation2 + $0x99] sm:$0xff]
      %v2451 = vld [vmem:[#allocation2 + $0xa9] sm:$0xff]
      %v2452 = vld [vmem:[#allocation2 + $0xb1] sm:$0xff]
      %v2453 = vld [vmem:[#allocation2 + $0xc1] sm:$0xff]
      %v2454 = vld [vmem:[#allocation2 + $0xc9] sm:$0xff]
      %v2455 = vld [vmem:[#allocation2 + $0xd9] sm:$0xff]
      %v2456 = vld [vmem:[#allocation2 + $0xe1] sm:$0xff]
      %v2457 = vld [vmem:[#allocation2 + $0xf1] sm:$0xff]
      %v2458 = vld [vmem:[#allocation2 + $0xf9] sm:$0xff]
      %v2459 = vld [vmem:[#allocation2 + $0x109] sm:$0xff]
      %v2460 = vld [vmem:[#allocation2 + $0x111] sm:$0xff]
      %v2461 = vld [vmem:[#allocation2 + $0x121] sm:$0xff]
      %v2462 = vld [vmem:[#allocation2 + $0x129] sm:$0xff]
      %v2463 = vld [vmem:[#allocation2 + $0x139] sm:$0xff]
      %v2464 = vld [vmem:[#allocation2 + $0x141] sm:$0xff]
      %v2465 = vld [vmem:[#allocation2 + $0x151] sm:$0xff]
      %v2466 = vld [vmem:[#allocation2 + $0x159] sm:$0xff]
      %v2467 = vld [vmem:[#allocation2 + $0x169] sm:$0xff]
      %v2468 = vld [vmem:[#allocation2 + $0x171] sm:$0xff]
      %2501 = vrot.lane.b32.xlu0 %v2437, 4
      %v2502 = vpop.permute.xlu0 %2501
      %2503 = vrot.lane.b32.xlu0 %v2438, 4
      %v2504 = vpop.permute.xlu0 %2503
      %2505 = vrot.lane.b32.xlu0 %v2439, 4
      %v2506 = vpop.permute.xlu0 %2505
      %2507 = vrot.lane.b32.xlu0 %v2440, 4
      %v2508 = vpop.permute.xlu0 %2507
      %2509 = vrot.lane.b32.xlu0 %v2441, 4
      %v2510 = vpop.permute.xlu0 %2509
      %2511 = vrot.lane.b32.xlu0 %v2442, 4
      %v2512 = vpop.permute.xlu0 %2511
      %2513 = vrot.lane.b32.xlu0 %v2443, 4
      %v2514 = vpop.permute.xlu0 %2513
      %2515 = vrot.lane.b32.xlu0 %v2444, 4
      %v2516 = vpop.permute.xlu0 %2515
      %2517 = vrot.lane.b32.xlu0 %v2445, 4
      %v2518 = vpop.permute.xlu0 %2517
      %2519 = vrot.lane.b32.xlu0 %v2446, 4
      %v2520 = vpop.permute.xlu0 %2519
      %2521 = vrot.lane.b32.xlu0 %v2447, 4
      %v2522 = vpop.permute.xlu0 %2521
      %2523 = vrot.lane.b32.xlu0 %v2448, 4
      %v2524 = vpop.permute.xlu0 %2523
      %2525 = vrot.lane.b32.xlu0 %v2449, 4
      %v2526 = vpop.permute.xlu0 %2525
      %2527 = vrot.lane.b32.xlu0 %v2450, 4
      %v2528 = vpop.permute.xlu0 %2527
      %2529 = vrot.lane.b32.xlu0 %v2451, 4
      %v2530 = vpop.permute.xlu0 %2529
      %2531 = vrot.lane.b32.xlu0 %v2452, 4
      %v2532 = vpop.permute.xlu0 %2531
      %2533 = vrot.lane.b32.xlu0 %v2453, 4
      %v2534 = vpop.permute.xlu0 %2533
      %2535 = vrot.lane.b32.xlu0 %v2454, 4
      %v2536 = vpop.permute.xlu0 %2535
      %2537 = vrot.lane.b32.xlu0 %v2455, 4
      %v2538 = vpop.permute.xlu0 %2537
      %2539 = vrot.lane.b32.xlu0 %v2456, 4
      %v2540 = vpop.permute.xlu0 %2539
      %2541 = vrot.lane.b32.xlu0 %v2457, 4
      %v2542 = vpop.permute.xlu0 %2541
      %2543 = vrot.lane.b32.xlu0 %v2458, 4
      %v2544 = vpop.permute.xlu0 %2543
      %2545 = vrot.lane.b32.xlu0 %v2459, 4
      %v2546 = vpop.permute.xlu0 %2545
      %2547 = vrot.lane.b32.xlu0 %v2460, 4
      %v2548 = vpop.permute.xlu0 %2547
      %2549 = vrot.lane.b32.xlu0 %v2461, 4
      %v2550 = vpop.permute.xlu0 %2549
      %2551 = vrot.lane.b32.xlu0 %v2462, 4
      %v2552 = vpop.permute.xlu0 %2551
      %2553 = vrot.lane.b32.xlu0 %v2463, 4
      %v2554 = vpop.permute.xlu0 %2553
      %2555 = vrot.lane.b32.xlu0 %v2464, 4
      %v2556 = vpop.permute.xlu0 %2555
      %2557 = vrot.lane.b32.xlu0 %v2465, 4
      %v2558 = vpop.permute.xlu0 %2557
      %2559 = vrot.lane.b32.xlu0 %v2466, 4
      %v2560 = vpop.permute.xlu0 %2559
      %2561 = vrot.lane.b32.xlu0 %v2467, 4
      %v2562 = vpop.permute.xlu0 %2561
      %2563 = vrot.lane.b32.xlu0 %v2468, 4
      %v2564 = vpop.permute.xlu0 %2563
      %2597 = vst.msk [vmem:[#allocation3] sm:$0xff] %vm593, %v2502
      %2598 = vst.msk [vmem:[#allocation3 + $0x8] sm:$0xff] %vm593, %v2504
      %2599 = vst.msk [vmem:[#allocation3 + $0x10] sm:$0xff] %vm593, %v2506
      %2600 = vst.msk [vmem:[#allocation3 + $0x18] sm:$0xff] %vm593, %v2508
      %2601 = vst.msk [vmem:[#allocation3 + $0x20] sm:$0xff] %vm593, %v2510
      %2602 = vst.msk [vmem:[#allocation3 + $0x28] sm:$0xff] %vm593, %v2512
      %2603 = vst.msk [vmem:[#allocation3 + $0x30] sm:$0xff] %vm593, %v2514
      %2604 = vst.msk [vmem:[#allocation3 + $0x38] sm:$0xff] %vm593, %v2516
      %2605 = vst.msk [vmem:[#allocation3 + $0x40] sm:$0xff] %vm593, %v2518
      %2606 = vst.msk [vmem:[#allocation3 + $0x48] sm:$0xff] %vm593, %v2520
      %2607 = vst.msk [vmem:[#allocation3 + $0x50] sm:$0xff] %vm593, %v2522
      %2608 = vst.msk [vmem:[#allocation3 + $0x58] sm:$0xff] %vm593, %v2524
      %2609 = vst.msk [vmem:[#allocation3 + $0x60] sm:$0xff] %vm593, %v2526
      %2610 = vst.msk [vmem:[#allocation3 + $0x68] sm:$0xff] %vm593, %v2528
      %2611 = vst.msk [vmem:[#allocation3 + $0x70] sm:$0xff] %vm593, %v2530
      %2612 = vst.msk [vmem:[#allocation3 + $0x78] sm:$0xff] %vm593, %v2532
      %2613 = vst.msk [vmem:[#allocation3 + $0x80] sm:$0xff] %vm593, %v2534
      %2614 = vst.msk [vmem:[#allocation3 + $0x88] sm:$0xff] %vm593, %v2536
      %2615 = vst.msk [vmem:[#allocation3 + $0x90] sm:$0xff] %vm593, %v2538
      %2616 = vst.msk [vmem:[#allocation3 + $0x98] sm:$0xff] %vm593, %v2540
      %2617 = vst.msk [vmem:[#allocation3 + $0xa0] sm:$0xff] %vm593, %v2542
      %2618 = vst.msk [vmem:[#allocation3 + $0xa8] sm:$0xff] %vm593, %v2544
      %2619 = vst.msk [vmem:[#allocation3 + $0xb0] sm:$0xff] %vm593, %v2546
      %2620 = vst.msk [vmem:[#allocation3 + $0xb8] sm:$0xff] %vm593, %v2548
      %2621 = vst.msk [vmem:[#allocation3 + $0xc0] sm:$0xff] %vm593, %v2550
      %2622 = vst.msk [vmem:[#allocation3 + $0xc8] sm:$0xff] %vm593, %v2552
      %2623 = vst.msk [vmem:[#allocation3 + $0xd0] sm:$0xff] %vm593, %v2554
      %2624 = vst.msk [vmem:[#allocation3 + $0xd8] sm:$0xff] %vm593, %v2556
      %2625 = vst.msk [vmem:[#allocation3 + $0xe0] sm:$0xff] %vm593, %v2558
      %2626 = vst.msk [vmem:[#allocation3 + $0xe8] sm:$0xff] %vm593, %v2560
      %2627 = vst.msk [vmem:[#allocation3 + $0xf0] sm:$0xff] %vm593, %v2562
      %2628 = vst.msk [vmem:[#allocation3 + $0xf8] sm:$0xff] %vm593, %v2564
      %v2629 = vld [vmem:[#allocation2 + $0x2] sm:$0xff]
      %v2630 = vld [vmem:[#allocation2 + $0xa] sm:$0xff]
      %v2631 = vld [vmem:[#allocation2 + $0x1a] sm:$0xff]
      %v2632 = vld [vmem:[#allocation2 + $0x22] sm:$0xff]
      %v2633 = vld [vmem:[#allocation2 + $0x32] sm:$0xff]
      %v2634 = vld [vmem:[#allocation2 + $0x3a] sm:$0xff]
      %v2635 = vld [vmem:[#allocation2 + $0x4a] sm:$0xff]
      %v2636 = vld [vmem:[#allocation2 + $0x52] sm:$0xff]
      %v2637 = vld [vmem:[#allocation2 + $0x62] sm:$0xff]
      %v2638 = vld [vmem:[#allocation2 + $0x6a] sm:$0xff]
      %v2639 = vld [vmem:[#allocation2 + $0x7a] sm:$0xff]
      %v2640 = vld [vmem:[#allocation2 + $0x82] sm:$0xff]
      %v2641 = vld [vmem:[#allocation2 + $0x92] sm:$0xff]
      %v2642 = vld [vmem:[#allocation2 + $0x9a] sm:$0xff]
      %v2643 = vld [vmem:[#allocation2 + $0xaa] sm:$0xff]
      %v2644 = vld [vmem:[#allocation2 + $0xb2] sm:$0xff]
      %v2645 = vld [vmem:[#allocation2 + $0xc2] sm:$0xff]
      %v2646 = vld [vmem:[#allocation2 + $0xca] sm:$0xff]
      %v2647 = vld [vmem:[#allocation2 + $0xda] sm:$0xff]
      %v2648 = vld [vmem:[#allocation2 + $0xe2] sm:$0xff]
      %v2649 = vld [vmem:[#allocation2 + $0xf2] sm:$0xff]
      %v2650 = vld [vmem:[#allocation2 + $0xfa] sm:$0xff]
      %v2651 = vld [vmem:[#allocation2 + $0x10a] sm:$0xff]
      %v2652 = vld [vmem:[#allocation2 + $0x112] sm:$0xff]
      %v2653 = vld [vmem:[#allocation2 + $0x122] sm:$0xff]
      %v2654 = vld [vmem:[#allocation2 + $0x12a] sm:$0xff]
      %v2655 = vld [vmem:[#allocation2 + $0x13a] sm:$0xff]
      %v2656 = vld [vmem:[#allocation2 + $0x142] sm:$0xff]
      %v2657 = vld [vmem:[#allocation2 + $0x152] sm:$0xff]
      %v2658 = vld [vmem:[#allocation2 + $0x15a] sm:$0xff]
      %v2659 = vld [vmem:[#allocation2 + $0x16a] sm:$0xff]
      %v2660 = vld [vmem:[#allocation2 + $0x172] sm:$0xff]
      %2693 = vrot.lane.b32.xlu0 %v2629, 8
      %v2694 = vpop.permute.xlu0 %2693
      %2695 = vrot.lane.b32.xlu0 %v2630, 8
      %v2696 = vpop.permute.xlu0 %2695
      %2697 = vrot.lane.b32.xlu0 %v2631, 8
      %v2698 = vpop.permute.xlu0 %2697
      %2699 = vrot.lane.b32.xlu0 %v2632, 8
      %v2700 = vpop.permute.xlu0 %2699
      %2701 = vrot.lane.b32.xlu0 %v2633, 8
      %v2702 = vpop.permute.xlu0 %2701
      %2703 = vrot.lane.b32.xlu0 %v2634, 8
      %v2704 = vpop.permute.xlu0 %2703
      %2705 = vrot.lane.b32.xlu0 %v2635, 8
      %v2706 = vpop.permute.xlu0 %2705
      %2707 = vrot.lane.b32.xlu0 %v2636, 8
      %v2708 = vpop.permute.xlu0 %2707
      %2709 = vrot.lane.b32.xlu0 %v2637, 8
      %v2710 = vpop.permute.xlu0 %2709
      %2711 = vrot.lane.b32.xlu0 %v2638, 8
      %v2712 = vpop.permute.xlu0 %2711
      %2713 = vrot.lane.b32.xlu0 %v2639, 8
      %v2714 = vpop.permute.xlu0 %2713
      %2715 = vrot.lane.b32.xlu0 %v2640, 8
      %v2716 = vpop.permute.xlu0 %2715
      %2717 = vrot.lane.b32.xlu0 %v2641, 8
      %v2718 = vpop.permute.xlu0 %2717
      %2719 = vrot.lane.b32.xlu0 %v2642, 8
      %v2720 = vpop.permute.xlu0 %2719
      %2721 = vrot.lane.b32.xlu0 %v2643, 8
      %v2722 = vpop.permute.xlu0 %2721
      %2723 = vrot.lane.b32.xlu0 %v2644, 8
      %v2724 = vpop.permute.xlu0 %2723
      %2725 = vrot.lane.b32.xlu0 %v2645, 8
      %v2726 = vpop.permute.xlu0 %2725
      %2727 = vrot.lane.b32.xlu0 %v2646, 8
      %v2728 = vpop.permute.xlu0 %2727
      %2729 = vrot.lane.b32.xlu0 %v2647, 8
      %v2730 = vpop.permute.xlu0 %2729
      %2731 = vrot.lane.b32.xlu0 %v2648, 8
      %v2732 = vpop.permute.xlu0 %2731
      %2733 = vrot.lane.b32.xlu0 %v2649, 8
      %v2734 = vpop.permute.xlu0 %2733
      %2735 = vrot.lane.b32.xlu0 %v2650, 8
      %v2736 = vpop.permute.xlu0 %2735
      %2737 = vrot.lane.b32.xlu0 %v2651, 8
      %v2738 = vpop.permute.xlu0 %2737
      %2739 = vrot.lane.b32.xlu0 %v2652, 8
      %v2740 = vpop.permute.xlu0 %2739
      %2741 = vrot.lane.b32.xlu0 %v2653, 8
      %v2742 = vpop.permute.xlu0 %2741
      %2743 = vrot.lane.b32.xlu0 %v2654, 8
      %v2744 = vpop.permute.xlu0 %2743
      %2745 = vrot.lane.b32.xlu0 %v2655, 8
      %v2746 = vpop.permute.xlu0 %2745
      %2747 = vrot.lane.b32.xlu0 %v2656, 8
      %v2748 = vpop.permute.xlu0 %2747
      %2749 = vrot.lane.b32.xlu0 %v2657, 8
      %v2750 = vpop.permute.xlu0 %2749
      %2751 = vrot.lane.b32.xlu0 %v2658, 8
      %v2752 = vpop.permute.xlu0 %2751
      %2753 = vrot.lane.b32.xlu0 %v2659, 8
      %v2754 = vpop.permute.xlu0 %2753
      %2755 = vrot.lane.b32.xlu0 %v2660, 8
      %v2756 = vpop.permute.xlu0 %2755
      %2789 = vst.msk [vmem:[#allocation3] sm:$0xff] %vm786, %v2694
      %2790 = vst.msk [vmem:[#allocation3 + $0x8] sm:$0xff] %vm786, %v2696
      %2791 = vst.msk [vmem:[#allocation3 + $0x10] sm:$0xff] %vm786, %v2698
      %2792 = vst.msk [vmem:[#allocation3 + $0x18] sm:$0xff] %vm786, %v2700
      %2793 = vst.msk [vmem:[#allocation3 + $0x20] sm:$0xff] %vm786, %v2702
      %2794 = vst.msk [vmem:[#allocation3 + $0x28] sm:$0xff] %vm786, %v2704
      %2795 = vst.msk [vmem:[#allocation3 + $0x30] sm:$0xff] %vm786, %v2706
      %2796 = vst.msk [vmem:[#allocation3 + $0x38] sm:$0xff] %vm786, %v2708
      %2797 = vst.msk [vmem:[#allocation3 + $0x40] sm:$0xff] %vm786, %v2710
      %2798 = vst.msk [vmem:[#allocation3 + $0x48] sm:$0xff] %vm786, %v2712
      %2799 = vst.msk [vmem:[#allocation3 + $0x50] sm:$0xff] %vm786, %v2714
      %2800 = vst.msk [vmem:[#allocation3 + $0x58] sm:$0xff] %vm786, %v2716
      %2801 = vst.msk [vmem:[#allocation3 + $0x60] sm:$0xff] %vm786, %v2718
      %2802 = vst.msk [vmem:[#allocation3 + $0x68] sm:$0xff] %vm786, %v2720
      %2803 = vst.msk [vmem:[#allocation3 + $0x70] sm:$0xff] %vm786, %v2722
      %2804 = vst.msk [vmem:[#allocation3 + $0x78] sm:$0xff] %vm786, %v2724
      %2805 = vst.msk [vmem:[#allocation3 + $0x80] sm:$0xff] %vm786, %v2726
      %2806 = vst.msk [vmem:[#allocation3 + $0x88] sm:$0xff] %vm786, %v2728
      %2807 = vst.msk [vmem:[#allocation3 + $0x90] sm:$0xff] %vm786, %v2730
      %2808 = vst.msk [vmem:[#allocation3 + $0x98] sm:$0xff] %vm786, %v2732
      %2809 = vst.msk [vmem:[#allocation3 + $0xa0] sm:$0xff] %vm786, %v2734
      %2810 = vst.msk [vmem:[#allocation3 + $0xa8] sm:$0xff] %vm786, %v2736
      %2811 = vst.msk [vmem:[#allocation3 + $0xb0] sm:$0xff] %vm786, %v2738
      %2812 = vst.msk [vmem:[#allocation3 + $0xb8] sm:$0xff] %vm786, %v2740
      %2813 = vst.msk [vmem:[#allocation3 + $0xc0] sm:$0xff] %vm786, %v2742
      %2814 = vst.msk [vmem:[#allocation3 + $0xc8] sm:$0xff] %vm786, %v2744
      %2815 = vst.msk [vmem:[#allocation3 + $0xd0] sm:$0xff] %vm786, %v2746
      %2816 = vst.msk [vmem:[#allocation3 + $0xd8] sm:$0xff] %vm786, %v2748
      %2817 = vst.msk [vmem:[#allocation3 + $0xe0] sm:$0xff] %vm786, %v2750
      %2818 = vst.msk [vmem:[#allocation3 + $0xe8] sm:$0xff] %vm786, %v2752
      %2819 = vst.msk [vmem:[#allocation3 + $0xf0] sm:$0xff] %vm786, %v2754
      %2820 = vst.msk [vmem:[#allocation3 + $0xf8] sm:$0xff] %vm786, %v2756
      %v2821 = vld [vmem:[%s257] sm:$0xff]
      %v2822 = vld [vmem:[%s257 + $0x8] sm:$0xff]
      %v2823 = vld [vmem:[%s257 + $0x18] sm:$0xff]
      %v2824 = vld [vmem:[%s257 + $0x20] sm:$0xff]
      %v2825 = vld [vmem:[%s257 + $0x30] sm:$0xff]
      %v2826 = vld [vmem:[%s257 + $0x38] sm:$0xff]
      %v2827 = vld [vmem:[%s257 + $0x48] sm:$0xff]
      %v2828 = vld [vmem:[%s257 + $0x50] sm:$0xff]
      %v2829 = vld [vmem:[%s257 + $0x60] sm:$0xff]
      %v2830 = vld [vmem:[%s257 + $0x68] sm:$0xff]
      %v2831 = vld [vmem:[%s257 + $0x78] sm:$0xff]
      %v2832 = vld [vmem:[%s257 + $0x80] sm:$0xff]
      %v2833 = vld [vmem:[%s257 + $0x90] sm:$0xff]
      %v2834 = vld [vmem:[%s257 + $0x98] sm:$0xff]
      %v2835 = vld [vmem:[%s257 + $0xa8] sm:$0xff]
      %v2836 = vld [vmem:[%s257 + $0xb0] sm:$0xff]
      %v2837 = vld [vmem:[%s257 + $0xc0] sm:$0xff]
      %v2838 = vld [vmem:[%s257 + $0xc8] sm:$0xff]
      %v2839 = vld [vmem:[%s257 + $0xd8] sm:$0xff]
      %v2840 = vld [vmem:[%s257 + $0xe0] sm:$0xff]
      %v2841 = vld [vmem:[%s257 + $0xf0] sm:$0xff]
      %v2842 = vld [vmem:[%s257 + $0xf8] sm:$0xff]
      %v2843 = vld [vmem:[%s257 + $0x108] sm:$0xff]
      %v2844 = vld [vmem:[%s257 + $0x110] sm:$0xff]
      %v2845 = vld [vmem:[%s257 + $0x120] sm:$0xff]
      %v2846 = vld [vmem:[%s257 + $0x128] sm:$0xff]
      %v2847 = vld [vmem:[%s257 + $0x138] sm:$0xff]
      %v2848 = vld [vmem:[%s257 + $0x140] sm:$0xff]
      %v2849 = vld [vmem:[%s257 + $0x150] sm:$0xff]
      %v2850 = vld [vmem:[%s257 + $0x158] sm:$0xff]
      %v2851 = vld [vmem:[%s257 + $0x168] sm:$0xff]
      %v2852 = vld [vmem:[%s257 + $0x170] sm:$0xff]
      %2885 = vrot.lane.b32.xlu0 %v2821, 12
      %v2886 = vpop.permute.xlu0 %2885
      %2887 = vrot.lane.b32.xlu0 %v2822, 12
      %v2888 = vpop.permute.xlu0 %2887
      %2889 = vrot.lane.b32.xlu0 %v2823, 12
      %v2890 = vpop.permute.xlu0 %2889
      %2891 = vrot.lane.b32.xlu0 %v2824, 12
      %v2892 = vpop.permute.xlu0 %2891
      %2893 = vrot.lane.b32.xlu0 %v2825, 12
      %v2894 = vpop.permute.xlu0 %2893
      %2895 = vrot.lane.b32.xlu0 %v2826, 12
      %v2896 = vpop.permute.xlu0 %2895
      %2897 = vrot.lane.b32.xlu0 %v2827, 12
      %v2898 = vpop.permute.xlu0 %2897
      %2899 = vrot.lane.b32.xlu0 %v2828, 12
      %v2900 = vpop.permute.xlu0 %2899
      %2901 = vrot.lane.b32.xlu0 %v2829, 12
      %v2902 = vpop.permute.xlu0 %2901
      %2903 = vrot.lane.b32.xlu0 %v2830, 12
      %v2904 = vpop.permute.xlu0 %2903
      %2905 = vrot.lane.b32.xlu0 %v2831, 12
      %v2906 = vpop.permute.xlu0 %2905
      %2907 = vrot.lane.b32.xlu0 %v2832, 12
      %v2908 = vpop.permute.xlu0 %2907
      %2909 = vrot.lane.b32.xlu0 %v2833, 12
      %v2910 = vpop.permute.xlu0 %2909
      %2911 = vrot.lane.b32.xlu0 %v2834, 12
      %v2912 = vpop.permute.xlu0 %2911
      %2913 = vrot.lane.b32.xlu0 %v2835, 12
      %v2914 = vpop.permute.xlu0 %2913
      %2915 = vrot.lane.b32.xlu0 %v2836, 12
      %v2916 = vpop.permute.xlu0 %2915
      %2917 = vrot.lane.b32.xlu0 %v2837, 12
      %v2918 = vpop.permute.xlu0 %2917
      %2919 = vrot.lane.b32.xlu0 %v2838, 12
      %v2920 = vpop.permute.xlu0 %2919
      %2921 = vrot.lane.b32.xlu0 %v2839, 12
      %v2922 = vpop.permute.xlu0 %2921
      %2923 = vrot.lane.b32.xlu0 %v2840, 12
      %v2924 = vpop.permute.xlu0 %2923
      %2925 = vrot.lane.b32.xlu0 %v2841, 12
      %v2926 = vpop.permute.xlu0 %2925
      %2927 = vrot.lane.b32.xlu0 %v2842, 12
      %v2928 = vpop.permute.xlu0 %2927
      %2929 = vrot.lane.b32.xlu0 %v2843, 12
      %v2930 = vpop.permute.xlu0 %2929
      %2931 = vrot.lane.b32.xlu0 %v2844, 12
      %v2932 = vpop.permute.xlu0 %2931
      %2933 = vrot.lane.b32.xlu0 %v2845, 12
      %v2934 = vpop.permute.xlu0 %2933
      %2935 = vrot.lane.b32.xlu0 %v2846, 12
      %v2936 = vpop.permute.xlu0 %2935
      %2937 = vrot.lane.b32.xlu0 %v2847, 12
      %v2938 = vpop.permute.xlu0 %2937
      %2939 = vrot.lane.b32.xlu0 %v2848, 12
      %v2940 = vpop.permute.xlu0 %2939
      %2941 = vrot.lane.b32.xlu0 %v2849, 12
      %v2942 = vpop.permute.xlu0 %2941
      %2943 = vrot.lane.b32.xlu0 %v2850, 12
      %v2944 = vpop.permute.xlu0 %2943
      %2945 = vrot.lane.b32.xlu0 %v2851, 12
      %v2946 = vpop.permute.xlu0 %2945
      %2947 = vrot.lane.b32.xlu0 %v2852, 12
      %v2948 = vpop.permute.xlu0 %2947
      %2981 = vst.msk [vmem:[#allocation3] sm:$0xff] %vm979, %v2886
      %2982 = vst.msk [vmem:[#allocation3 + $0x8] sm:$0xff] %vm979, %v2888
      %2983 = vst.msk [vmem:[#allocation3 + $0x10] sm:$0xff] %vm979, %v2890
      %2984 = vst.msk [vmem:[#allocation3 + $0x18] sm:$0xff] %vm979, %v2892
      %2985 = vst.msk [vmem:[#allocation3 + $0x20] sm:$0xff] %vm979, %v2894
      %2986 = vst.msk [vmem:[#allocation3 + $0x28] sm:$0xff] %vm979, %v2896
      %2987 = vst.msk [vmem:[#allocation3 + $0x30] sm:$0xff] %vm979, %v2898
      %2988 = vst.msk [vmem:[#allocation3 + $0x38] sm:$0xff] %vm979, %v2900
      %2989 = vst.msk [vmem:[#allocation3 + $0x40] sm:$0xff] %vm979, %v2902
      %2990 = vst.msk [vmem:[#allocation3 + $0x48] sm:$0xff] %vm979, %v2904
      %2991 = vst.msk [vmem:[#allocation3 + $0x50] sm:$0xff] %vm979, %v2906
      %2992 = vst.msk [vmem:[#allocation3 + $0x58] sm:$0xff] %vm979, %v2908
      %2993 = vst.msk [vmem:[#allocation3 + $0x60] sm:$0xff] %vm979, %v2910
      %2994 = vst.msk [vmem:[#allocation3 + $0x68] sm:$0xff] %vm979, %v2912
      %2995 = vst.msk [vmem:[#allocation3 + $0x70] sm:$0xff] %vm979, %v2914
      %2996 = vst.msk [vmem:[#allocation3 + $0x78] sm:$0xff] %vm979, %v2916
      %2997 = vst.msk [vmem:[#allocation3 + $0x80] sm:$0xff] %vm979, %v2918
      %2998 = vst.msk [vmem:[#allocation3 + $0x88] sm:$0xff] %vm979, %v2920
      %2999 = vst.msk [vmem:[#allocation3 + $0x90] sm:$0xff] %vm979, %v2922
      %3000 = vst.msk [vmem:[#allocation3 + $0x98] sm:$0xff] %vm979, %v2924
      %3001 = vst.msk [vmem:[#allocation3 + $0xa0] sm:$0xff] %vm979, %v2926
      %3002 = vst.msk [vmem:[#allocation3 + $0xa8] sm:$0xff] %vm979, %v2928
      %3003 = vst.msk [vmem:[#allocation3 + $0xb0] sm:$0xff] %vm979, %v2930
      %3004 = vst.msk [vmem:[#allocation3 + $0xb8] sm:$0xff] %vm979, %v2932
      %3005 = vst.msk [vmem:[#allocation3 + $0xc0] sm:$0xff] %vm979, %v2934
      %3006 = vst.msk [vmem:[#allocation3 + $0xc8] sm:$0xff] %vm979, %v2936
      %3007 = vst.msk [vmem:[#allocation3 + $0xd0] sm:$0xff] %vm979, %v2938
      %3008 = vst.msk [vmem:[#allocation3 + $0xd8] sm:$0xff] %vm979, %v2940
      %3009 = vst.msk [vmem:[#allocation3 + $0xe0] sm:$0xff] %vm979, %v2942
      %3010 = vst.msk [vmem:[#allocation3 + $0xe8] sm:$0xff] %vm979, %v2944
      %3011 = vst.msk [vmem:[#allocation3 + $0xf0] sm:$0xff] %vm979, %v2946
      %3012 = vst.msk [vmem:[#allocation3 + $0xf8] sm:$0xff] %vm979, %v2948
      %v3013 = vld [vmem:[%s257 + $0x1] sm:$0xff]
      %v3014 = vld [vmem:[%s257 + $0x9] sm:$0xff]
      %v3015 = vld [vmem:[%s257 + $0x19] sm:$0xff]
      %v3016 = vld [vmem:[%s257 + $0x21] sm:$0xff]
      %v3017 = vld [vmem:[%s257 + $0x31] sm:$0xff]
      %v3018 = vld [vmem:[%s257 + $0x39] sm:$0xff]
      %v3019 = vld [vmem:[%s257 + $0x49] sm:$0xff]
      %v3020 = vld [vmem:[%s257 + $0x51] sm:$0xff]
      %v3021 = vld [vmem:[%s257 + $0x61] sm:$0xff]
      %v3022 = vld [vmem:[%s257 + $0x69] sm:$0xff]
      %v3023 = vld [vmem:[%s257 + $0x79] sm:$0xff]
      %v3024 = vld [vmem:[%s257 + $0x81] sm:$0xff]
      %v3025 = vld [vmem:[%s257 + $0x91] sm:$0xff]
      %v3026 = vld [vmem:[%s257 + $0x99] sm:$0xff]
      %v3027 = vld [vmem:[%s257 + $0xa9] sm:$0xff]
      %v3028 = vld [vmem:[%s257 + $0xb1] sm:$0xff]
      %v3029 = vld [vmem:[%s257 + $0xc1] sm:$0xff]
      %v3030 = vld [vmem:[%s257 + $0xc9] sm:$0xff]
      %v3031 = vld [vmem:[%s257 + $0xd9] sm:$0xff]
      %v3032 = vld [vmem:[%s257 + $0xe1] sm:$0xff]
      %v3033 = vld [vmem:[%s257 + $0xf1] sm:$0xff]
      %v3034 = vld [vmem:[%s257 + $0xf9] sm:$0xff]
      %v3035 = vld [vmem:[%s257 + $0x109] sm:$0xff]
      %v3036 = vld [vmem:[%s257 + $0x111] sm:$0xff]
      %v3037 = vld [vmem:[%s257 + $0x121] sm:$0xff]
      %v3038 = vld [vmem:[%s257 + $0x129] sm:$0xff]
      %v3039 = vld [vmem:[%s257 + $0x139] sm:$0xff]
      %v3040 = vld [vmem:[%s257 + $0x141] sm:$0xff]
      %v3041 = vld [vmem:[%s257 + $0x151] sm:$0xff]
      %v3042 = vld [vmem:[%s257 + $0x159] sm:$0xff]
      %v3043 = vld [vmem:[%s257 + $0x169] sm:$0xff]
      %v3044 = vld [vmem:[%s257 + $0x171] sm:$0xff]
      %3077 = vrot.lane.b32.xlu0 %v3013, 16
      %v3078 = vpop.permute.xlu0 %3077
      %3079 = vrot.lane.b32.xlu0 %v3014, 16
      %v3080 = vpop.permute.xlu0 %3079
      %3081 = vrot.lane.b32.xlu0 %v3015, 16
      %v3082 = vpop.permute.xlu0 %3081
      %3083 = vrot.lane.b32.xlu0 %v3016, 16
      %v3084 = vpop.permute.xlu0 %3083
      %3085 = vrot.lane.b32.xlu0 %v3017, 16
      %v3086 = vpop.permute.xlu0 %3085
      %3087 = vrot.lane.b32.xlu0 %v3018, 16
      %v3088 = vpop.permute.xlu0 %3087
      %3089 = vrot.lane.b32.xlu0 %v3019, 16
      %v3090 = vpop.permute.xlu0 %3089
      %3091 = vrot.lane.b32.xlu0 %v3020, 16
      %v3092 = vpop.permute.xlu0 %3091
      %3093 = vrot.lane.b32.xlu0 %v3021, 16
      %v3094 = vpop.permute.xlu0 %3093
      %3095 = vrot.lane.b32.xlu0 %v3022, 16
      %v3096 = vpop.permute.xlu0 %3095
      %3097 = vrot.lane.b32.xlu0 %v3023, 16
      %v3098 = vpop.permute.xlu0 %3097
      %3099 = vrot.lane.b32.xlu0 %v3024, 16
      %v3100 = vpop.permute.xlu0 %3099
      %3101 = vrot.lane.b32.xlu0 %v3025, 16
      %v3102 = vpop.permute.xlu0 %3101
      %3103 = vrot.lane.b32.xlu0 %v3026, 16
      %v3104 = vpop.permute.xlu0 %3103
      %3105 = vrot.lane.b32.xlu0 %v3027, 16
      %v3106 = vpop.permute.xlu0 %3105
      %3107 = vrot.lane.b32.xlu0 %v3028, 16
      %v3108 = vpop.permute.xlu0 %3107
      %3109 = vrot.lane.b32.xlu0 %v3029, 16
      %v3110 = vpop.permute.xlu0 %3109
      %3111 = vrot.lane.b32.xlu0 %v3030, 16
      %v3112 = vpop.permute.xlu0 %3111
      %3113 = vrot.lane.b32.xlu0 %v3031, 16
      %v3114 = vpop.permute.xlu0 %3113
      %3115 = vrot.lane.b32.xlu0 %v3032, 16
      %v3116 = vpop.permute.xlu0 %3115
      %3117 = vrot.lane.b32.xlu0 %v3033, 16
      %v3118 = vpop.permute.xlu0 %3117
      %3119 = vrot.lane.b32.xlu0 %v3034, 16
      %v3120 = vpop.permute.xlu0 %3119
      %3121 = vrot.lane.b32.xlu0 %v3035, 16
      %v3122 = vpop.permute.xlu0 %3121
      %3123 = vrot.lane.b32.xlu0 %v3036, 16
      %v3124 = vpop.permute.xlu0 %3123
      %3125 = vrot.lane.b32.xlu0 %v3037, 16
      %v3126 = vpop.permute.xlu0 %3125
      %3127 = vrot.lane.b32.xlu0 %v3038, 16
      %v3128 = vpop.permute.xlu0 %3127
      %3129 = vrot.lane.b32.xlu0 %v3039, 16
      %v3130 = vpop.permute.xlu0 %3129
      %3131 = vrot.lane.b32.xlu0 %v3040, 16
      %v3132 = vpop.permute.xlu0 %3131
      %3133 = vrot.lane.b32.xlu0 %v3041, 16
      %v3134 = vpop.permute.xlu0 %3133
      %3135 = vrot.lane.b32.xlu0 %v3042, 16
      %v3136 = vpop.permute.xlu0 %3135
      %3137 = vrot.lane.b32.xlu0 %v3043, 16
      %v3138 = vpop.permute.xlu0 %3137
      %3139 = vrot.lane.b32.xlu0 %v3044, 16
      %v3140 = vpop.permute.xlu0 %3139
      %3173 = vst.msk [vmem:[#allocation3] sm:$0xff] %vm1172, %v3078
      %3174 = vst.msk [vmem:[#allocation3 + $0x8] sm:$0xff] %vm1172, %v3080
      %3175 = vst.msk [vmem:[#allocation3 + $0x10] sm:$0xff] %vm1172, %v3082
      %3176 = vst.msk [vmem:[#allocation3 + $0x18] sm:$0xff] %vm1172, %v3084
      %3177 = vst.msk [vmem:[#allocation3 + $0x20] sm:$0xff] %vm1172, %v3086
      %3178 = vst.msk [vmem:[#allocation3 + $0x28] sm:$0xff] %vm1172, %v3088
      %3179 = vst.msk [vmem:[#allocation3 + $0x30] sm:$0xff] %vm1172, %v3090
      %3180 = vst.msk [vmem:[#allocation3 + $0x38] sm:$0xff] %vm1172, %v3092
      %3181 = vst.msk [vmem:[#allocation3 + $0x40] sm:$0xff] %vm1172, %v3094
      %3182 = vst.msk [vmem:[#allocation3 + $0x48] sm:$0xff] %vm1172, %v3096
      %3183 = vst.msk [vmem:[#allocation3 + $0x50] sm:$0xff] %vm1172, %v3098
      %3184 = vst.msk [vmem:[#allocation3 + $0x58] sm:$0xff] %vm1172, %v3100
      %3185 = vst.msk [vmem:[#allocation3 + $0x60] sm:$0xff] %vm1172, %v3102
      %3186 = vst.msk [vmem:[#allocation3 + $0x68] sm:$0xff] %vm1172, %v3104
      %3187 = vst.msk [vmem:[#allocation3 + $0x70] sm:$0xff] %vm1172, %v3106
      %3188 = vst.msk [vmem:[#allocation3 + $0x78] sm:$0xff] %vm1172, %v3108
      %3189 = vst.msk [vmem:[#allocation3 + $0x80] sm:$0xff] %vm1172, %v3110
      %3190 = vst.msk [vmem:[#allocation3 + $0x88] sm:$0xff] %vm1172, %v3112
      %3191 = vst.msk [vmem:[#allocation3 + $0x90] sm:$0xff] %vm1172, %v3114
      %3192 = vst.msk [vmem:[#allocation3 + $0x98] sm:$0xff] %vm1172, %v3116
      %3193 = vst.msk [vmem:[#allocation3 + $0xa0] sm:$0xff] %vm1172, %v3118
      %3194 = vst.msk [vmem:[#allocation3 + $0xa8] sm:$0xff] %vm1172, %v3120
      %3195 = vst.msk [vmem:[#allocation3 + $0xb0] sm:$0xff] %vm1172, %v3122
      %3196 = vst.msk [vmem:[#allocation3 + $0xb8] sm:$0xff] %vm1172, %v3124
      %3197 = vst.msk [vmem:[#allocation3 + $0xc0] sm:$0xff] %vm1172, %v3126
      %3198 = vst.msk [vmem:[#allocation3 + $0xc8] sm:$0xff] %vm1172, %v3128
      %3199 = vst.msk [vmem:[#allocation3 + $0xd0] sm:$0xff] %vm1172, %v3130
      %3200 = vst.msk [vmem:[#allocation3 + $0xd8] sm:$0xff] %vm1172, %v3132
      %3201 = vst.msk [vmem:[#allocation3 + $0xe0] sm:$0xff] %vm1172, %v3134
      %3202 = vst.msk [vmem:[#allocation3 + $0xe8] sm:$0xff] %vm1172, %v3136
      %3203 = vst.msk [vmem:[#allocation3 + $0xf0] sm:$0xff] %vm1172, %v3138
      %3204 = vst.msk [vmem:[#allocation3 + $0xf8] sm:$0xff] %vm1172, %v3140
      %v3205 = vld [vmem:[%s257 + $0x2] sm:$0xff]
      %v3206 = vld [vmem:[%s257 + $0xa] sm:$0xff]
      %v3207 = vld [vmem:[%s257 + $0x1a] sm:$0xff]
      %v3208 = vld [vmem:[%s257 + $0x22] sm:$0xff]
      %v3209 = vld [vmem:[%s257 + $0x32] sm:$0xff]
      %v3210 = vld [vmem:[%s257 + $0x3a] sm:$0xff]
      %v3211 = vld [vmem:[%s257 + $0x4a] sm:$0xff]
      %v3212 = vld [vmem:[%s257 + $0x52] sm:$0xff]
      %v3213 = vld [vmem:[%s257 + $0x62] sm:$0xff]
      %v3214 = vld [vmem:[%s257 + $0x6a] sm:$0xff]
      %v3215 = vld [vmem:[%s257 + $0x7a] sm:$0xff]
      %v3216 = vld [vmem:[%s257 + $0x82] sm:$0xff]
      %v3217 = vld [vmem:[%s257 + $0x92] sm:$0xff]
      %v3218 = vld [vmem:[%s257 + $0x9a] sm:$0xff]
      %v3219 = vld [vmem:[%s257 + $0xaa] sm:$0xff]
      %v3220 = vld [vmem:[%s257 + $0xb2] sm:$0xff]
      %v3221 = vld [vmem:[%s257 + $0xc2] sm:$0xff]
      %v3222 = vld [vmem:[%s257 + $0xca] sm:$0xff]
      %v3223 = vld [vmem:[%s257 + $0xda] sm:$0xff]
      %v3224 = vld [vmem:[%s257 + $0xe2] sm:$0xff]
      %v3225 = vld [vmem:[%s257 + $0xf2] sm:$0xff]
      %v3226 = vld [vmem:[%s257 + $0xfa] sm:$0xff]
      %v3227 = vld [vmem:[%s257 + $0x10a] sm:$0xff]
      %v3228 = vld [vmem:[%s257 + $0x112] sm:$0xff]
      %v3229 = vld [vmem:[%s257 + $0x122] sm:$0xff]
      %v3230 = vld [vmem:[%s257 + $0x12a] sm:$0xff]
      %v3231 = vld [vmem:[%s257 + $0x13a] sm:$0xff]
      %v3232 = vld [vmem:[%s257 + $0x142] sm:$0xff]
      %v3233 = vld [vmem:[%s257 + $0x152] sm:$0xff]
      %v3234 = vld [vmem:[%s257 + $0x15a] sm:$0xff]
      %v3235 = vld [vmem:[%s257 + $0x16a] sm:$0xff]
      %v3236 = vld [vmem:[%s257 + $0x172] sm:$0xff]
      %3269 = vrot.lane.b32.xlu0 %v3205, 20
      %v3270 = vpop.permute.xlu0 %3269
      %3271 = vrot.lane.b32.xlu0 %v3206, 20
      %v3272 = vpop.permute.xlu0 %3271
      %3273 = vrot.lane.b32.xlu0 %v3207, 20
      %v3274 = vpop.permute.xlu0 %3273
      %3275 = vrot.lane.b32.xlu0 %v3208, 20
      %v3276 = vpop.permute.xlu0 %3275
      %3277 = vrot.lane.b32.xlu0 %v3209, 20
      %v3278 = vpop.permute.xlu0 %3277
      %3279 = vrot.lane.b32.xlu0 %v3210, 20
      %v3280 = vpop.permute.xlu0 %3279
      %3281 = vrot.lane.b32.xlu0 %v3211, 20
      %v3282 = vpop.permute.xlu0 %3281
      %3283 = vrot.lane.b32.xlu0 %v3212, 20
      %v3284 = vpop.permute.xlu0 %3283
      %3285 = vrot.lane.b32.xlu0 %v3213, 20
      %v3286 = vpop.permute.xlu0 %3285
      %3287 = vrot.lane.b32.xlu0 %v3214, 20
      %v3288 = vpop.permute.xlu0 %3287
      %3289 = vrot.lane.b32.xlu0 %v3215, 20
      %v3290 = vpop.permute.xlu0 %3289
      %3291 = vrot.lane.b32.xlu0 %v3216, 20
      %v3292 = vpop.permute.xlu0 %3291
      %3293 = vrot.lane.b32.xlu0 %v3217, 20
      %v3294 = vpop.permute.xlu0 %3293
      %3295 = vrot.lane.b32.xlu0 %v3218, 20
      %v3296 = vpop.permute.xlu0 %3295
      %3297 = vrot.lane.b32.xlu0 %v3219, 20
      %v3298 = vpop.permute.xlu0 %3297
      %3299 = vrot.lane.b32.xlu0 %v3220, 20
      %v3300 = vpop.permute.xlu0 %3299
      %3301 = vrot.lane.b32.xlu0 %v3221, 20
      %v3302 = vpop.permute.xlu0 %3301
      %3303 = vrot.lane.b32.xlu0 %v3222, 20
      %v3304 = vpop.permute.xlu0 %3303
      %3305 = vrot.lane.b32.xlu0 %v3223, 20
      %v3306 = vpop.permute.xlu0 %3305
      %3307 = vrot.lane.b32.xlu0 %v3224, 20
      %v3308 = vpop.permute.xlu0 %3307
      %3309 = vrot.lane.b32.xlu0 %v3225, 20
      %v3310 = vpop.permute.xlu0 %3309
      %3311 = vrot.lane.b32.xlu0 %v3226, 20
      %v3312 = vpop.permute.xlu0 %3311
      %3313 = vrot.lane.b32.xlu0 %v3227, 20
      %v3314 = vpop.permute.xlu0 %3313
      %3315 = vrot.lane.b32.xlu0 %v3228, 20
      %v3316 = vpop.permute.xlu0 %3315
      %3317 = vrot.lane.b32.xlu0 %v3229, 20
      %v3318 = vpop.permute.xlu0 %3317
      %3319 = vrot.lane.b32.xlu0 %v3230, 20
      %v3320 = vpop.permute.xlu0 %3319
      %3321 = vrot.lane.b32.xlu0 %v3231, 20
      %v3322 = vpop.permute.xlu0 %3321
      %3323 = vrot.lane.b32.xlu0 %v3232, 20
      %v3324 = vpop.permute.xlu0 %3323
      %3325 = vrot.lane.b32.xlu0 %v3233, 20
      %v3326 = vpop.permute.xlu0 %3325
      %3327 = vrot.lane.b32.xlu0 %v3234, 20
      %v3328 = vpop.permute.xlu0 %3327
      %3329 = vrot.lane.b32.xlu0 %v3235, 20
      %v3330 = vpop.permute.xlu0 %3329
      %3331 = vrot.lane.b32.xlu0 %v3236, 20
      %v3332 = vpop.permute.xlu0 %3331
      %3365 = vst.msk [vmem:[#allocation3] sm:$0xff] %vm1365, %v3270
      %3366 = vst.msk [vmem:[#allocation3 + $0x8] sm:$0xff] %vm1365, %v3272
      %3367 = vst.msk [vmem:[#allocation3 + $0x10] sm:$0xff] %vm1365, %v3274
      %3368 = vst.msk [vmem:[#allocation3 + $0x18] sm:$0xff] %vm1365, %v3276
      %3369 = vst.msk [vmem:[#allocation3 + $0x20] sm:$0xff] %vm1365, %v3278
      %3370 = vst.msk [vmem:[#allocation3 + $0x28] sm:$0xff] %vm1365, %v3280
      %3371 = vst.msk [vmem:[#allocation3 + $0x30] sm:$0xff] %vm1365, %v3282
      %3372 = vst.msk [vmem:[#allocation3 + $0x38] sm:$0xff] %vm1365, %v3284
      %3373 = vst.msk [vmem:[#allocation3 + $0x40] sm:$0xff] %vm1365, %v3286
      %3374 = vst.msk [vmem:[#allocation3 + $0x48] sm:$0xff] %vm1365, %v3288
      %3375 = vst.msk [vmem:[#allocation3 + $0x50] sm:$0xff] %vm1365, %v3290
      %3376 = vst.msk [vmem:[#allocation3 + $0x58] sm:$0xff] %vm1365, %v3292
      %3377 = vst.msk [vmem:[#allocation3 + $0x60] sm:$0xff] %vm1365, %v3294
      %3378 = vst.msk [vmem:[#allocation3 + $0x68] sm:$0xff] %vm1365, %v3296
      %3379 = vst.msk [vmem:[#allocation3 + $0x70] sm:$0xff] %vm1365, %v3298
      %3380 = vst.msk [vmem:[#allocation3 + $0x78] sm:$0xff] %vm1365, %v3300
      %3381 = vst.msk [vmem:[#allocation3 + $0x80] sm:$0xff] %vm1365, %v3302
      %3382 = vst.msk [vmem:[#allocation3 + $0x88] sm:$0xff] %vm1365, %v3304
      %3383 = vst.msk [vmem:[#allocation3 + $0x90] sm:$0xff] %vm1365, %v3306
      %3384 = vst.msk [vmem:[#allocation3 + $0x98] sm:$0xff] %vm1365, %v3308
      %3385 = vst.msk [vmem:[#allocation3 + $0xa0] sm:$0xff] %vm1365, %v3310
      %3386 = vst.msk [vmem:[#allocation3 + $0xa8] sm:$0xff] %vm1365, %v3312
      %3387 = vst.msk [vmem:[#allocation3 + $0xb0] sm:$0xff] %vm1365, %v3314
      %3388 = vst.msk [vmem:[#allocation3 + $0xb8] sm:$0xff] %vm1365, %v3316
      %3389 = vst.msk [vmem:[#allocation3 + $0xc0] sm:$0xff] %vm1365, %v3318
      %3390 = vst.msk [vmem:[#allocation3 + $0xc8] sm:$0xff] %vm1365, %v3320
      %3391 = vst.msk [vmem:[#allocation3 + $0xd0] sm:$0xff] %vm1365, %v3322
      %3392 = vst.msk [vmem:[#allocation3 + $0xd8] sm:$0xff] %vm1365, %v3324
      %3393 = vst.msk [vmem:[#allocation3 + $0xe0] sm:$0xff] %vm1365, %v3326
      %3394 = vst.msk [vmem:[#allocation3 + $0xe8] sm:$0xff] %vm1365, %v3328
      %3395 = vst.msk [vmem:[#allocation3 + $0xf0] sm:$0xff] %vm1365, %v3330
      %3396 = vst.msk [vmem:[#allocation3 + $0xf8] sm:$0xff] %vm1365, %v3332
      %v3397 = vld [vmem:[%s1398] sm:$0xff]
      %v3398 = vld [vmem:[%s1398 + $0x8] sm:$0xff]
      %v3399 = vld [vmem:[%s1398 + $0x18] sm:$0xff]
      %v3400 = vld [vmem:[%s1398 + $0x20] sm:$0xff]
      %v3401 = vld [vmem:[%s1398 + $0x30] sm:$0xff]
      %v3402 = vld [vmem:[%s1398 + $0x38] sm:$0xff]
      %v3403 = vld [vmem:[%s1398 + $0x48] sm:$0xff]
      %v3404 = vld [vmem:[%s1398 + $0x50] sm:$0xff]
      %v3405 = vld [vmem:[%s1398 + $0x60] sm:$0xff]
      %v3406 = vld [vmem:[%s1398 + $0x68] sm:$0xff]
      %v3407 = vld [vmem:[%s1398 + $0x78] sm:$0xff]
      %v3408 = vld [vmem:[%s1398 + $0x80] sm:$0xff]
      %v3409 = vld [vmem:[%s1398 + $0x90] sm:$0xff]
      %v3410 = vld [vmem:[%s1398 + $0x98] sm:$0xff]
      %v3411 = vld [vmem:[%s1398 + $0xa8] sm:$0xff]
      %v3412 = vld [vmem:[%s1398 + $0xb0] sm:$0xff]
      %v3413 = vld [vmem:[%s1398 + $0xc0] sm:$0xff]
      %v3414 = vld [vmem:[%s1398 + $0xc8] sm:$0xff]
      %v3415 = vld [vmem:[%s1398 + $0xd8] sm:$0xff]
      %v3416 = vld [vmem:[%s1398 + $0xe0] sm:$0xff]
      %v3417 = vld [vmem:[%s1398 + $0xf0] sm:$0xff]
      %v3418 = vld [vmem:[%s1398 + $0xf8] sm:$0xff]
      %v3419 = vld [vmem:[%s1398 + $0x108] sm:$0xff]
      %v3420 = vld [vmem:[%s1398 + $0x110] sm:$0xff]
      %v3421 = vld [vmem:[%s1398 + $0x120] sm:$0xff]
      %v3422 = vld [vmem:[%s1398 + $0x128] sm:$0xff]
      %v3423 = vld [vmem:[%s1398 + $0x138] sm:$0xff]
      %v3424 = vld [vmem:[%s1398 + $0x140] sm:$0xff]
      %v3425 = vld [vmem:[%s1398 + $0x150] sm:$0xff]
      %v3426 = vld [vmem:[%s1398 + $0x158] sm:$0xff]
      %v3427 = vld [vmem:[%s1398 + $0x168] sm:$0xff]
      %v3428 = vld [vmem:[%s1398 + $0x170] sm:$0xff]
      %3461 = vrot.lane.b32.xlu0 %v3397, 24
      %v3462 = vpop.permute.xlu0 %3461
      %3463 = vrot.lane.b32.xlu0 %v3398, 24
      %v3464 = vpop.permute.xlu0 %3463
      %3465 = vrot.lane.b32.xlu0 %v3399, 24
      %v3466 = vpop.permute.xlu0 %3465
      %3467 = vrot.lane.b32.xlu0 %v3400, 24
      %v3468 = vpop.permute.xlu0 %3467
      %3469 = vrot.lane.b32.xlu0 %v3401, 24
      %v3470 = vpop.permute.xlu0 %3469
      %3471 = vrot.lane.b32.xlu0 %v3402, 24
      %v3472 = vpop.permute.xlu0 %3471
      %3473 = vrot.lane.b32.xlu0 %v3403, 24
      %v3474 = vpop.permute.xlu0 %3473
      %3475 = vrot.lane.b32.xlu0 %v3404, 24
      %v3476 = vpop.permute.xlu0 %3475
      %3477 = vrot.lane.b32.xlu0 %v3405, 24
      %v3478 = vpop.permute.xlu0 %3477
      %3479 = vrot.lane.b32.xlu0 %v3406, 24
      %v3480 = vpop.permute.xlu0 %3479
      %3481 = vrot.lane.b32.xlu0 %v3407, 24
      %v3482 = vpop.permute.xlu0 %3481
      %3483 = vrot.lane.b32.xlu0 %v3408, 24
      %v3484 = vpop.permute.xlu0 %3483
      %3485 = vrot.lane.b32.xlu0 %v3409, 24
      %v3486 = vpop.permute.xlu0 %3485
      %3487 = vrot.lane.b32.xlu0 %v3410, 24
      %v3488 = vpop.permute.xlu0 %3487
      %3489 = vrot.lane.b32.xlu0 %v3411, 24
      %v3490 = vpop.permute.xlu0 %3489
      %3491 = vrot.lane.b32.xlu0 %v3412, 24
      %v3492 = vpop.permute.xlu0 %3491
      %3493 = vrot.lane.b32.xlu0 %v3413, 24
      %v3494 = vpop.permute.xlu0 %3493
      %3495 = vrot.lane.b32.xlu0 %v3414, 24
      %v3496 = vpop.permute.xlu0 %3495
      %3497 = vrot.lane.b32.xlu0 %v3415, 24
      %v3498 = vpop.permute.xlu0 %3497
      %3499 = vrot.lane.b32.xlu0 %v3416, 24
      %v3500 = vpop.permute.xlu0 %3499
      %3501 = vrot.lane.b32.xlu0 %v3417, 24
      %v3502 = vpop.permute.xlu0 %3501
      %3503 = vrot.lane.b32.xlu0 %v3418, 24
      %v3504 = vpop.permute.xlu0 %3503
      %3505 = vrot.lane.b32.xlu0 %v3419, 24
      %v3506 = vpop.permute.xlu0 %3505
      %3507 = vrot.lane.b32.xlu0 %v3420, 24
      %v3508 = vpop.permute.xlu0 %3507
      %3509 = vrot.lane.b32.xlu0 %v3421, 24
      %v3510 = vpop.permute.xlu0 %3509
      %3511 = vrot.lane.b32.xlu0 %v3422, 24
      %v3512 = vpop.permute.xlu0 %3511
      %3513 = vrot.lane.b32.xlu0 %v3423, 24
      %v3514 = vpop.permute.xlu0 %3513
      %3515 = vrot.lane.b32.xlu0 %v3424, 24
      %v3516 = vpop.permute.xlu0 %3515
      %3517 = vrot.lane.b32.xlu0 %v3425, 24
      %v3518 = vpop.permute.xlu0 %3517
      %3519 = vrot.lane.b32.xlu0 %v3426, 24
      %v3520 = vpop.permute.xlu0 %3519
      %3521 = vrot.lane.b32.xlu0 %v3427, 24
      %v3522 = vpop.permute.xlu0 %3521
      %3523 = vrot.lane.b32.xlu0 %v3428, 24
      %v3524 = vpop.permute.xlu0 %3523
      %3557 = vst.msk [vmem:[#allocation3] sm:$0xff] %vm1559, %v3462
      %3558 = vst.msk [vmem:[#allocation3 + $0x8] sm:$0xff] %vm1559, %v3464
      %3559 = vst.msk [vmem:[#allocation3 + $0x10] sm:$0xff] %vm1559, %v3466
      %3560 = vst.msk [vmem:[#allocation3 + $0x18] sm:$0xff] %vm1559, %v3468
      %3561 = vst.msk [vmem:[#allocation3 + $0x20] sm:$0xff] %vm1559, %v3470
      %3562 = vst.msk [vmem:[#allocation3 + $0x28] sm:$0xff] %vm1559, %v3472
      %3563 = vst.msk [vmem:[#allocation3 + $0x30] sm:$0xff] %vm1559, %v3474
      %3564 = vst.msk [vmem:[#allocation3 + $0x38] sm:$0xff] %vm1559, %v3476
      %3565 = vst.msk [vmem:[#allocation3 + $0x40] sm:$0xff] %vm1559, %v3478
      %3566 = vst.msk [vmem:[#allocation3 + $0x48] sm:$0xff] %vm1559, %v3480
      %3567 = vst.msk [vmem:[#allocation3 + $0x50] sm:$0xff] %vm1559, %v3482
      %3568 = vst.msk [vmem:[#allocation3 + $0x58] sm:$0xff] %vm1559, %v3484
      %3569 = vst.msk [vmem:[#allocation3 + $0x60] sm:$0xff] %vm1559, %v3486
      %3570 = vst.msk [vmem:[#allocation3 + $0x68] sm:$0xff] %vm1559, %v3488
      %3571 = vst.msk [vmem:[#allocation3 + $0x70] sm:$0xff] %vm1559, %v3490
      %3572 = vst.msk [vmem:[#allocation3 + $0x78] sm:$0xff] %vm1559, %v3492
      %3573 = vst.msk [vmem:[#allocation3 + $0x80] sm:$0xff] %vm1559, %v3494
      %3574 = vst.msk [vmem:[#allocation3 + $0x88] sm:$0xff] %vm1559, %v3496
      %3575 = vst.msk [vmem:[#allocation3 + $0x90] sm:$0xff] %vm1559, %v3498
      %3576 = vst.msk [vmem:[#allocation3 + $0x98] sm:$0xff] %vm1559, %v3500
      %3577 = vst.msk [vmem:[#allocation3 + $0xa0] sm:$0xff] %vm1559, %v3502
      %3578 = vst.msk [vmem:[#allocation3 + $0xa8] sm:$0xff] %vm1559, %v3504
      %3579 = vst.msk [vmem:[#allocation3 + $0xb0] sm:$0xff] %vm1559, %v3506
      %3580 = vst.msk [vmem:[#allocation3 + $0xb8] sm:$0xff] %vm1559, %v3508
      %3581 = vst.msk [vmem:[#allocation3 + $0xc0] sm:$0xff] %vm1559, %v3510
      %3582 = vst.msk [vmem:[#allocation3 + $0xc8] sm:$0xff] %vm1559, %v3512
      %3583 = vst.msk [vmem:[#allocation3 + $0xd0] sm:$0xff] %vm1559, %v3514
      %3584 = vst.msk [vmem:[#allocation3 + $0xd8] sm:$0xff] %vm1559, %v3516
      %3585 = vst.msk [vmem:[#allocation3 + $0xe0] sm:$0xff] %vm1559, %v3518
      %3586 = vst.msk [vmem:[#allocation3 + $0xe8] sm:$0xff] %vm1559, %v3520
      %3587 = vst.msk [vmem:[#allocation3 + $0xf0] sm:$0xff] %vm1559, %v3522
      %3588 = vst.msk [vmem:[#allocation3 + $0xf8] sm:$0xff] %vm1559, %v3524
      %v3589 = vld [vmem:[%s1398 + $0x1] sm:$0xff]
      %v3590 = vld [vmem:[%s1398 + $0x9] sm:$0xff]
      %v3591 = vld [vmem:[%s1398 + $0x19] sm:$0xff]
      %v3592 = vld [vmem:[%s1398 + $0x21] sm:$0xff]
      %v3593 = vld [vmem:[%s1398 + $0x31] sm:$0xff]
      %v3594 = vld [vmem:[%s1398 + $0x39] sm:$0xff]
      %v3595 = vld [vmem:[%s1398 + $0x49] sm:$0xff]
      %v3596 = vld [vmem:[%s1398 + $0x51] sm:$0xff]
      %v3597 = vld [vmem:[%s1398 + $0x61] sm:$0xff]
      %v3598 = vld [vmem:[%s1398 + $0x69] sm:$0xff]
      %v3599 = vld [vmem:[%s1398 + $0x79] sm:$0xff]
      %v3600 = vld [vmem:[%s1398 + $0x81] sm:$0xff]
      %v3601 = vld [vmem:[%s1398 + $0x91] sm:$0xff]
      %v3602 = vld [vmem:[%s1398 + $0x99] sm:$0xff]
      %v3603 = vld [vmem:[%s1398 + $0xa9] sm:$0xff]
      %v3604 = vld [vmem:[%s1398 + $0xb1] sm:$0xff]
      %v3605 = vld [vmem:[%s1398 + $0xc1] sm:$0xff]
      %v3606 = vld [vmem:[%s1398 + $0xc9] sm:$0xff]
      %v3607 = vld [vmem:[%s1398 + $0xd9] sm:$0xff]
      %v3608 = vld [vmem:[%s1398 + $0xe1] sm:$0xff]
      %v3609 = vld [vmem:[%s1398 + $0xf1] sm:$0xff]
      %v3610 = vld [vmem:[%s1398 + $0xf9] sm:$0xff]
      %v3611 = vld [vmem:[%s1398 + $0x109] sm:$0xff]
      %v3612 = vld [vmem:[%s1398 + $0x111] sm:$0xff]
      %v3613 = vld [vmem:[%s1398 + $0x121] sm:$0xff]
      %v3614 = vld [vmem:[%s1398 + $0x129] sm:$0xff]
      %v3615 = vld [vmem:[%s1398 + $0x139] sm:$0xff]
      %v3616 = vld [vmem:[%s1398 + $0x141] sm:$0xff]
      %v3617 = vld [vmem:[%s1398 + $0x151] sm:$0xff]
      %v3618 = vld [vmem:[%s1398 + $0x159] sm:$0xff]
      %v3619 = vld [vmem:[%s1398 + $0x169] sm:$0xff]
      %v3620 = vld [vmem:[%s1398 + $0x171] sm:$0xff]
      %3653 = vrot.lane.b32.xlu0 %v3589, 28
      %v3654 = vpop.permute.xlu0 %3653
      %3655 = vrot.lane.b32.xlu0 %v3590, 28
      %v3656 = vpop.permute.xlu0 %3655
      %3657 = vrot.lane.b32.xlu0 %v3591, 28
      %v3658 = vpop.permute.xlu0 %3657
      %3659 = vrot.lane.b32.xlu0 %v3592, 28
      %v3660 = vpop.permute.xlu0 %3659
      %3661 = vrot.lane.b32.xlu0 %v3593, 28
      %v3662 = vpop.permute.xlu0 %3661
      %3663 = vrot.lane.b32.xlu0 %v3594, 28
      %v3664 = vpop.permute.xlu0 %3663
      %3665 = vrot.lane.b32.xlu0 %v3595, 28
      %v3666 = vpop.permute.xlu0 %3665
      %3667 = vrot.lane.b32.xlu0 %v3596, 28
      %v3668 = vpop.permute.xlu0 %3667
      %3669 = vrot.lane.b32.xlu0 %v3597, 28
      %v3670 = vpop.permute.xlu0 %3669
      %3671 = vrot.lane.b32.xlu0 %v3598, 28
      %v3672 = vpop.permute.xlu0 %3671
      %3673 = vrot.lane.b32.xlu0 %v3599, 28
      %v3674 = vpop.permute.xlu0 %3673
      %3675 = vrot.lane.b32.xlu0 %v3600, 28
      %v3676 = vpop.permute.xlu0 %3675
      %3677 = vrot.lane.b32.xlu0 %v3601, 28
      %v3678 = vpop.permute.xlu0 %3677
      %3679 = vrot.lane.b32.xlu0 %v3602, 28
      %v3680 = vpop.permute.xlu0 %3679
      %3681 = vrot.lane.b32.xlu0 %v3603, 28
      %v3682 = vpop.permute.xlu0 %3681
      %3683 = vrot.lane.b32.xlu0 %v3604, 28
      %v3684 = vpop.permute.xlu0 %3683
      %3685 = vrot.lane.b32.xlu0 %v3605, 28
      %v3686 = vpop.permute.xlu0 %3685
      %3687 = vrot.lane.b32.xlu0 %v3606, 28
      %v3688 = vpop.permute.xlu0 %3687
      %3689 = vrot.lane.b32.xlu0 %v3607, 28
      %v3690 = vpop.permute.xlu0 %3689
      %3691 = vrot.lane.b32.xlu0 %v3608, 28
      %v3692 = vpop.permute.xlu0 %3691
      %3693 = vrot.lane.b32.xlu0 %v3609, 28
      %v3694 = vpop.permute.xlu0 %3693
      %3695 = vrot.lane.b32.xlu0 %v3610, 28
      %v3696 = vpop.permute.xlu0 %3695
      %3697 = vrot.lane.b32.xlu0 %v3611, 28
      %v3698 = vpop.permute.xlu0 %3697
      %3699 = vrot.lane.b32.xlu0 %v3612, 28
      %v3700 = vpop.permute.xlu0 %3699
      %3701 = vrot.lane.b32.xlu0 %v3613, 28
      %v3702 = vpop.permute.xlu0 %3701
      %3703 = vrot.lane.b32.xlu0 %v3614, 28
      %v3704 = vpop.permute.xlu0 %3703
      %3705 = vrot.lane.b32.xlu0 %v3615, 28
      %v3706 = vpop.permute.xlu0 %3705
      %3707 = vrot.lane.b32.xlu0 %v3616, 28
      %v3708 = vpop.permute.xlu0 %3707
      %3709 = vrot.lane.b32.xlu0 %v3617, 28
      %v3710 = vpop.permute.xlu0 %3709
      %3711 = vrot.lane.b32.xlu0 %v3618, 28
      %v3712 = vpop.permute.xlu0 %3711
      %3713 = vrot.lane.b32.xlu0 %v3619, 28
      %v3714 = vpop.permute.xlu0 %3713
      %3715 = vrot.lane.b32.xlu0 %v3620, 28
      %v3716 = vpop.permute.xlu0 %3715
      %3749 = vst.msk [vmem:[#allocation3] sm:$0xff] %vm1752, %v3654
      %3750 = vst.msk [vmem:[#allocation3 + $0x8] sm:$0xff] %vm1752, %v3656
      %3751 = vst.msk [vmem:[#allocation3 + $0x10] sm:$0xff] %vm1752, %v3658
      %3752 = vst.msk [vmem:[#allocation3 + $0x18] sm:$0xff] %vm1752, %v3660
      %3753 = vst.msk [vmem:[#allocation3 + $0x20] sm:$0xff] %vm1752, %v3662
      %3754 = vst.msk [vmem:[#allocation3 + $0x28] sm:$0xff] %vm1752, %v3664
      %3755 = vst.msk [vmem:[#allocation3 + $0x30] sm:$0xff] %vm1752, %v3666
      %3756 = vst.msk [vmem:[#allocation3 + $0x38] sm:$0xff] %vm1752, %v3668
      %3757 = vst.msk [vmem:[#allocation3 + $0x40] sm:$0xff] %vm1752, %v3670
      %3758 = vst.msk [vmem:[#allocation3 + $0x48] sm:$0xff] %vm1752, %v3672
      %3759 = vst.msk [vmem:[#allocation3 + $0x50] sm:$0xff] %vm1752, %v3674
      %3760 = vst.msk [vmem:[#allocation3 + $0x58] sm:$0xff] %vm1752, %v3676
      %3761 = vst.msk [vmem:[#allocation3 + $0x60] sm:$0xff] %vm1752, %v3678
      %3762 = vst.msk [vmem:[#allocation3 + $0x68] sm:$0xff] %vm1752, %v3680
      %3763 = vst.msk [vmem:[#allocation3 + $0x70] sm:$0xff] %vm1752, %v3682
      %3764 = vst.msk [vmem:[#allocation3 + $0x78] sm:$0xff] %vm1752, %v3684
      %3765 = vst.msk [vmem:[#allocation3 + $0x80] sm:$0xff] %vm1752, %v3686
      %3766 = vst.msk [vmem:[#allocation3 + $0x88] sm:$0xff] %vm1752, %v3688
      %3767 = vst.msk [vmem:[#allocation3 + $0x90] sm:$0xff] %vm1752, %v3690
      %3768 = vst.msk [vmem:[#allocation3 + $0x98] sm:$0xff] %vm1752, %v3692
      %3769 = vst.msk [vmem:[#allocation3 + $0xa0] sm:$0xff] %vm1752, %v3694
      %3770 = vst.msk [vmem:[#allocation3 + $0xa8] sm:$0xff] %vm1752, %v3696
      %3771 = vst.msk [vmem:[#allocation3 + $0xb0] sm:$0xff] %vm1752, %v3698
      %3772 = vst.msk [vmem:[#allocation3 + $0xb8] sm:$0xff] %vm1752, %v3700
      %3773 = vst.msk [vmem:[#allocation3 + $0xc0] sm:$0xff] %vm1752, %v3702
      %3774 = vst.msk [vmem:[#allocation3 + $0xc8] sm:$0xff] %vm1752, %v3704
      %3775 = vst.msk [vmem:[#allocation3 + $0xd0] sm:$0xff] %vm1752, %v3706
      %3776 = vst.msk [vmem:[#allocation3 + $0xd8] sm:$0xff] %vm1752, %v3708
      %3777 = vst.msk [vmem:[#allocation3 + $0xe0] sm:$0xff] %vm1752, %v3710
      %3778 = vst.msk [vmem:[#allocation3 + $0xe8] sm:$0xff] %vm1752, %v3712
      %3779 = vst.msk [vmem:[#allocation3 + $0xf0] sm:$0xff] %vm1752, %v3714
      %3780 = vst.msk [vmem:[#allocation3 + $0xf8] sm:$0xff] %vm1752, %v3716
      %v3781 = vld [vmem:[%s1398 + $0x2] sm:$0xff]
      %v3782 = vld [vmem:[%s1398 + $0xa] sm:$0xff]
      %v3783 = vld [vmem:[%s1398 + $0x1a] sm:$0xff]
      %v3784 = vld [vmem:[%s1398 + $0x22] sm:$0xff]
      %v3785 = vld [vmem:[%s1398 + $0x32] sm:$0xff]
      %v3786 = vld [vmem:[%s1398 + $0x3a] sm:$0xff]
      %v3787 = vld [vmem:[%s1398 + $0x4a] sm:$0xff]
      %v3788 = vld [vmem:[%s1398 + $0x52] sm:$0xff]
      %v3789 = vld [vmem:[%s1398 + $0x62] sm:$0xff]
      %v3790 = vld [vmem:[%s1398 + $0x6a] sm:$0xff]
      %v3791 = vld [vmem:[%s1398 + $0x7a] sm:$0xff]
      %v3792 = vld [vmem:[%s1398 + $0x82] sm:$0xff]
      %v3793 = vld [vmem:[%s1398 + $0x92] sm:$0xff]
      %v3794 = vld [vmem:[%s1398 + $0x9a] sm:$0xff]
      %v3795 = vld [vmem:[%s1398 + $0xaa] sm:$0xff]
      %v3796 = vld [vmem:[%s1398 + $0xb2] sm:$0xff]
      %v3797 = vld [vmem:[%s1398 + $0xc2] sm:$0xff]
      %v3798 = vld [vmem:[%s1398 + $0xca] sm:$0xff]
      %v3799 = vld [vmem:[%s1398 + $0xda] sm:$0xff]
      %v3800 = vld [vmem:[%s1398 + $0xe2] sm:$0xff]
      %v3801 = vld [vmem:[%s1398 + $0xf2] sm:$0xff]
      %v3802 = vld [vmem:[%s1398 + $0xfa] sm:$0xff]
      %v3803 = vld [vmem:[%s1398 + $0x10a] sm:$0xff]
      %v3804 = vld [vmem:[%s1398 + $0x112] sm:$0xff]
      %v3805 = vld [vmem:[%s1398 + $0x122] sm:$0xff]
      %v3806 = vld [vmem:[%s1398 + $0x12a] sm:$0xff]
      %v3807 = vld [vmem:[%s1398 + $0x13a] sm:$0xff]
      %v3808 = vld [vmem:[%s1398 + $0x142] sm:$0xff]
      %v3809 = vld [vmem:[%s1398 + $0x152] sm:$0xff]
      %v3810 = vld [vmem:[%s1398 + $0x15a] sm:$0xff]
      %v3811 = vld [vmem:[%s1398 + $0x16a] sm:$0xff]
      %v3812 = vld [vmem:[%s1398 + $0x172] sm:$0xff]
      %3845 = vrot.lane.b32.xlu0 %v3781, 32
      %v3846 = vpop.permute.xlu0 %3845
      %3847 = vrot.lane.b32.xlu0 %v3782, 32
      %v3848 = vpop.permute.xlu0 %3847
      %3849 = vrot.lane.b32.xlu0 %v3783, 32
      %v3850 = vpop.permute.xlu0 %3849
      %3851 = vrot.lane.b32.xlu0 %v3784, 32
      %v3852 = vpop.permute.xlu0 %3851
      %3853 = vrot.lane.b32.xlu0 %v3785, 32
      %v3854 = vpop.permute.xlu0 %3853
      %3855 = vrot.lane.b32.xlu0 %v3786, 32
      %v3856 = vpop.permute.xlu0 %3855
      %3857 = vrot.lane.b32.xlu0 %v3787, 32
      %v3858 = vpop.permute.xlu0 %3857
      %3859 = vrot.lane.b32.xlu0 %v3788, 32
      %v3860 = vpop.permute.xlu0 %3859
      %3861 = vrot.lane.b32.xlu0 %v3789, 32
      %v3862 = vpop.permute.xlu0 %3861
      %3863 = vrot.lane.b32.xlu0 %v3790, 32
      %v3864 = vpop.permute.xlu0 %3863
      %3865 = vrot.lane.b32.xlu0 %v3791, 32
      %v3866 = vpop.permute.xlu0 %3865
      %3867 = vrot.lane.b32.xlu0 %v3792, 32
      %v3868 = vpop.permute.xlu0 %3867
      %3869 = vrot.lane.b32.xlu0 %v3793, 32
      %v3870 = vpop.permute.xlu0 %3869
      %3871 = vrot.lane.b32.xlu0 %v3794, 32
      %v3872 = vpop.permute.xlu0 %3871
      %3873 = vrot.lane.b32.xlu0 %v3795, 32
      %v3874 = vpop.permute.xlu0 %3873
      %3875 = vrot.lane.b32.xlu0 %v3796, 32
      %v3876 = vpop.permute.xlu0 %3875
      %3877 = vrot.lane.b32.xlu0 %v3797, 32
      %v3878 = vpop.permute.xlu0 %3877
      %3879 = vrot.lane.b32.xlu0 %v3798, 32
      %v3880 = vpop.permute.xlu0 %3879
      %3881 = vrot.lane.b32.xlu0 %v3799, 32
      %v3882 = vpop.permute.xlu0 %3881
      %3883 = vrot.lane.b32.xlu0 %v3800, 32
      %v3884 = vpop.permute.xlu0 %3883
      %3885 = vrot.lane.b32.xlu0 %v3801, 32
      %v3886 = vpop.permute.xlu0 %3885
      %3887 = vrot.lane.b32.xlu0 %v3802, 32
      %v3888 = vpop.permute.xlu0 %3887
      %3889 = vrot.lane.b32.xlu0 %v3803, 32
      %v3890 = vpop.permute.xlu0 %3889
      %3891 = vrot.lane.b32.xlu0 %v3804, 32
      %v3892 = vpop.permute.xlu0 %3891
      %3893 = vrot.lane.b32.xlu0 %v3805, 32
      %v3894 = vpop.permute.xlu0 %3893
      %3895 = vrot.lane.b32.xlu0 %v3806, 32
      %v3896 = vpop.permute.xlu0 %3895
      %3897 = vrot.lane.b32.xlu0 %v3807, 32
      %v3898 = vpop.permute.xlu0 %3897
      %3899 = vrot.lane.b32.xlu0 %v3808, 32
      %v3900 = vpop.permute.xlu0 %3899
      %3901 = vrot.lane.b32.xlu0 %v3809, 32
      %v3902 = vpop.permute.xlu0 %3901
      %3903 = vrot.lane.b32.xlu0 %v3810, 32
      %v3904 = vpop.permute.xlu0 %3903
      %3905 = vrot.lane.b32.xlu0 %v3811, 32
      %v3906 = vpop.permute.xlu0 %3905
      %3907 = vrot.lane.b32.xlu0 %v3812, 32
      %v3908 = vpop.permute.xlu0 %3907
      %3941 = vst.msk [vmem:[#allocation3] sm:$0xff] %vm1945, %v3846
      %3942 = vst.msk [vmem:[#allocation3 + $0x8] sm:$0xff] %vm1945, %v3848
      %3943 = vst.msk [vmem:[#allocation3 + $0x10] sm:$0xff] %vm1945, %v3850
      %3944 = vst.msk [vmem:[#allocation3 + $0x18] sm:$0xff] %vm1945, %v3852
      %3945 = vst.msk [vmem:[#allocation3 + $0x20] sm:$0xff] %vm1945, %v3854
      %3946 = vst.msk [vmem:[#allocation3 + $0x28] sm:$0xff] %vm1945, %v3856
      %3947 = vst.msk [vmem:[#allocation3 + $0x30] sm:$0xff] %vm1945, %v3858
      %3948 = vst.msk [vmem:[#allocation3 + $0x38] sm:$0xff] %vm1945, %v3860
      %3949 = vst.msk [vmem:[#allocation3 + $0x40] sm:$0xff] %vm1945, %v3862
      %3950 = vst.msk [vmem:[#allocation3 + $0x48] sm:$0xff] %vm1945, %v3864
      %3951 = vst.msk [vmem:[#allocation3 + $0x50] sm:$0xff] %vm1945, %v3866
      %3952 = vst.msk [vmem:[#allocation3 + $0x58] sm:$0xff] %vm1945, %v3868
      %3953 = vst.msk [vmem:[#allocation3 + $0x60] sm:$0xff] %vm1945, %v3870
      %3954 = vst.msk [vmem:[#allocation3 + $0x68] sm:$0xff] %vm1945, %v3872
      %3955 = vst.msk [vmem:[#allocation3 + $0x70] sm:$0xff] %vm1945, %v3874
      %3956 = vst.msk [vmem:[#allocation3 + $0x78] sm:$0xff] %vm1945, %v3876
      %3957 = vst.msk [vmem:[#allocation3 + $0x80] sm:$0xff] %vm1945, %v3878
      %3958 = vst.msk [vmem:[#allocation3 + $0x88] sm:$0xff] %vm1945, %v3880
      %3959 = vst.msk [vmem:[#allocation3 + $0x90] sm:$0xff] %vm1945, %v3882
      %3960 = vst.msk [vmem:[#allocation3 + $0x98] sm:$0xff] %vm1945, %v3884
      %3961 = vst.msk [vmem:[#allocation3 + $0xa0] sm:$0xff] %vm1945, %v3886
      %3962 = vst.msk [vmem:[#allocation3 + $0xa8] sm:$0xff] %vm1945, %v3888
      %3963 = vst.msk [vmem:[#allocation3 + $0xb0] sm:$0xff] %vm1945, %v3890
      %3964 = vst.msk [vmem:[#allocation3 + $0xb8] sm:$0xff] %vm1945, %v3892
      %3965 = vst.msk [vmem:[#allocation3 + $0xc0] sm:$0xff] %vm1945, %v3894
      %3966 = vst.msk [vmem:[#allocation3 + $0xc8] sm:$0xff] %vm1945, %v3896
      %3967 = vst.msk [vmem:[#allocation3 + $0xd0] sm:$0xff] %vm1945, %v3898
      %3968 = vst.msk [vmem:[#allocation3 + $0xd8] sm:$0xff] %vm1945, %v3900
      %3969 = vst.msk [vmem:[#allocation3 + $0xe0] sm:$0xff] %vm1945, %v3902
      %3970 = vst.msk [vmem:[#allocation3 + $0xe8] sm:$0xff] %vm1945, %v3904
      %3971 = vst.msk [vmem:[#allocation3 + $0xf0] sm:$0xff] %vm1945, %v3906
      %3972 = vst.msk [vmem:[#allocation3 + $0xf8] sm:$0xff] %vm1945, %v3908
      %v3973 = vld [vmem:[#allocation3] sm:$0xff]
      %v3974 = vld [vmem:[#allocation3 + $0x8] sm:$0xff]
      %v3975 = vld [vmem:[#allocation3 + $0x10] sm:$0xff]
      %v3976 = vld [vmem:[#allocation3 + $0x18] sm:$0xff]
      %v3977 = vld [vmem:[#allocation3 + $0x20] sm:$0xff]
      %v3978 = vld [vmem:[#allocation3 + $0x28] sm:$0xff]
      %v3979 = vld [vmem:[#allocation3 + $0x30] sm:$0xff]
      %v3980 = vld [vmem:[#allocation3 + $0x38] sm:$0xff]
      %v3981 = vld [vmem:[#allocation3 + $0x40] sm:$0xff]
      %v3982 = vld [vmem:[#allocation3 + $0x48] sm:$0xff]
      %v3983 = vld [vmem:[#allocation3 + $0x50] sm:$0xff]
      %v3984 = vld [vmem:[#allocation3 + $0x58] sm:$0xff]
      %v3985 = vld [vmem:[#allocation3 + $0x60] sm:$0xff]
      %v3986 = vld [vmem:[#allocation3 + $0x68] sm:$0xff]
      %v3987 = vld [vmem:[#allocation3 + $0x70] sm:$0xff]
      %v3988 = vld [vmem:[#allocation3 + $0x78] sm:$0xff]
      %v3989 = vld [vmem:[#allocation3 + $0x80] sm:$0xff]
      %v3990 = vld [vmem:[#allocation3 + $0x88] sm:$0xff]
      %v3991 = vld [vmem:[#allocation3 + $0x90] sm:$0xff]
      %v3992 = vld [vmem:[#allocation3 + $0x98] sm:$0xff]
      %v3993 = vld [vmem:[#allocation3 + $0xa0] sm:$0xff]
      %v3994 = vld [vmem:[#allocation3 + $0xa8] sm:$0xff]
      %v3995 = vld [vmem:[#allocation3 + $0xb0] sm:$0xff]
      %v3996 = vld [vmem:[#allocation3 + $0xb8] sm:$0xff]
      %v3997 = vld [vmem:[#allocation3 + $0xc0] sm:$0xff]
      %v3998 = vld [vmem:[#allocation3 + $0xc8] sm:$0xff]
      %v3999 = vld [vmem:[#allocation3 + $0xd0] sm:$0xff]
      %v4000 = vld [vmem:[#allocation3 + $0xd8] sm:$0xff]
      %v4001 = vld [vmem:[#allocation3 + $0xe0] sm:$0xff]
      %v4002 = vld [vmem:[#allocation3 + $0xe8] sm:$0xff]
      %v4003 = vld [vmem:[#allocation3 + $0xf0] sm:$0xff]
      %v4004 = vld [vmem:[#allocation3 + $0xf8] sm:$0xff]
      %v4005 = vld [vmem:[%s3] sm:$0xff]
      %v4006 = vld [vmem:[%s3 + $0x8] sm:$0xff]
      %v4007 = vld [vmem:[%s3 + $0x10] sm:$0xff]
      %v4008 = vld [vmem:[%s3 + $0x18] sm:$0xff]
      %v4009 = vld [vmem:[%s3 + $0x20] sm:$0xf]
      %v4010 = vld [vmem:[%s4] sm:$0x1]
      %v4012 = vperm.slane %v4010, 0
      %v4015 = vsel %vm2019, %v3973, 0
      %v4018 = vsel %vm2019, %v3974, 0
      %v4021 = vsel %vm2019, %v3975, 0
      %v4024 = vsel %vm2019, %v3976, 0
      %v4027 = vsel %vm2019, %v3977, 0
      %v4030 = vsel %vm2019, %v3978, 0
      %v4033 = vsel %vm2019, %v3979, 0
      %v4036 = vsel %vm2019, %v3980, 0
      %v4039 = vsel %vm2019, %v3981, 0
      %v4042 = vsel %vm2019, %v3982, 0
      %v4045 = vsel %vm2019, %v3983, 0
      %v4048 = vsel %vm2019, %v3984, 0
      %v4051 = vsel %vm2019, %v3985, 0
      %v4054 = vsel %vm2019, %v3986, 0
      %v4057 = vsel %vm2019, %v3987, 0
      %v4060 = vsel %vm2019, %v3988, 0
      %v4063 = vsel %vm2019, %v3989, 0
      %v4066 = vsel %vm2019, %v3990, 0
      %v4069 = vsel %vm2019, %v3991, 0
      %v4072 = vsel %vm2019, %v3992, 0
      %v4075 = vsel %vm2019, %v3993, 0
      %v4078 = vsel %vm2019, %v3994, 0
      %v4081 = vsel %vm2019, %v3995, 0
      %v4084 = vsel %vm2019, %v3996, 0
      %v4087 = vsel %vm2019, %v3997, 0
      %v4090 = vsel %vm2019, %v3998, 0
      %v4093 = vsel %vm2019, %v3999, 0
      %v4096 = vsel %vm2019, %v4000, 0
      %v4099 = vsel %vm2019, %v4001, 0
      %v4102 = vsel %vm2019, %v4002, 0
      %v4105 = vsel %vm2019, %v4003, 0
      %v4108 = vsel %vm2019, %v4004, 0
      %v4111 = vsel %vm2116, %v4009, 0
      %4113 = vmatpush.msra.mxu0 0.0
      %4114 = vmatpush.msra.mxu0 0.0
      %4115 = vmatpush.msra.mxu0 0.0
      %4116 = vmatpush.msra.mxu0 0.0
      %4117 = vmatpush.msra.mxu0 0.0
      %4118 = vmatpush.msra.mxu0 0.0
      %4119 = vmatpush.msra.mxu0 0.0
      %4120 = vmatpush.msra.mxu0 0.0
      %4121 = vmatpush.msra.mxu0 0.0
      %4122 = vmatpush.msra.mxu0 0.0
      %4123 = vmatpush.msra.mxu0 0.0
      %4124 = vmatpush.msra.mxu0 %v4111
      %4125 = vmatpush.msra.mxu0 %v4008
      %4126 = vmatpush.msra.mxu0 %v4007
      %4127 = vmatpush.msra.mxu0 %v4006
      %4128 = vmatpush.msra.mxu0 %v4005
      %4129 = vmatmul.f32.gmra.mxu0 %v4015
      %v4130 = vpop.f32.mrf.mxu0
      %v4131 = vadd.f32 %v4012, %v4130
      %4132 = vmatmul.f32.gmra.mxu0 %v4018
      %v4133 = vpop.f32.mrf.mxu0
      %v4134 = vadd.f32 %v4012, %v4133
      %4135 = vmatmul.f32.gmra.mxu0 %v4021
      %v4136 = vpop.f32.mrf.mxu0
      %v4137 = vadd.f32 %v4012, %v4136
      %4138 = vmatmul.f32.gmra.mxu0 %v4024
      %v4139 = vpop.f32.mrf.mxu0
      %v4140 = vadd.f32 %v4012, %v4139
      %4141 = vmatmul.f32.gmra.mxu0 %v4027
      %v4142 = vpop.f32.mrf.mxu0
      %v4143 = vadd.f32 %v4012, %v4142
      %4144 = vmatmul.f32.gmra.mxu0 %v4030
      %v4145 = vpop.f32.mrf.mxu0
      %v4146 = vadd.f32 %v4012, %v4145
      %4147 = vmatmul.f32.gmra.mxu0 %v4033
      %v4148 = vpop.f32.mrf.mxu0
      %v4149 = vadd.f32 %v4012, %v4148
      %4150 = vmatmul.f32.gmra.mxu0 %v4036
      %v4151 = vpop.f32.mrf.mxu0
      %v4152 = vadd.f32 %v4012, %v4151
      %4153 = vmatmul.f32.gmra.mxu0 %v4039
      %v4154 = vpop.f32.mrf.mxu0
      %v4155 = vadd.f32 %v4012, %v4154
      %4156 = vmatmul.f32.gmra.mxu0 %v4042
      %v4157 = vpop.f32.mrf.mxu0
      %v4158 = vadd.f32 %v4012, %v4157
      %4159 = vmatmul.f32.gmra.mxu0 %v4045
      %v4160 = vpop.f32.mrf.mxu0
      %v4161 = vadd.f32 %v4012, %v4160
      %4162 = vmatmul.f32.gmra.mxu0 %v4048
      %v4163 = vpop.f32.mrf.mxu0
      %v4164 = vadd.f32 %v4012, %v4163
      %4165 = vmatmul.f32.gmra.mxu0 %v4051
      %v4166 = vpop.f32.mrf.mxu0
      %v4167 = vadd.f32 %v4012, %v4166
      %4168 = vmatmul.f32.gmra.mxu0 %v4054
      %v4169 = vpop.f32.mrf.mxu0
      %v4170 = vadd.f32 %v4012, %v4169
      %4171 = vmatmul.f32.gmra.mxu0 %v4057
      %v4172 = vpop.f32.mrf.mxu0
      %v4173 = vadd.f32 %v4012, %v4172
      %4174 = vmatmul.f32.gmra.mxu0 %v4060
      %v4175 = vpop.f32.mrf.mxu0
      %v4176 = vadd.f32 %v4012, %v4175
      %4177 = vmatmul.f32.gmra.mxu0 %v4063
      %v4178 = vpop.f32.mrf.mxu0
      %v4179 = vadd.f32 %v4012, %v4178
      %4180 = vmatmul.f32.gmra.mxu0 %v4066
      %v4181 = vpop.f32.mrf.mxu0
      %v4182 = vadd.f32 %v4012, %v4181
      %4183 = vmatmul.f32.gmra.mxu0 %v4069
      %v4184 = vpop.f32.mrf.mxu0
      %v4185 = vadd.f32 %v4012, %v4184
      %4186 = vmatmul.f32.gmra.mxu0 %v4072
      %v4187 = vpop.f32.mrf.mxu0
      %v4188 = vadd.f32 %v4012, %v4187
      %4189 = vmatmul.f32.gmra.mxu0 %v4075
      %v4190 = vpop.f32.mrf.mxu0
      %v4191 = vadd.f32 %v4012, %v4190
      %4192 = vmatmul.f32.gmra.mxu0 %v4078
      %v4193 = vpop.f32.mrf.mxu0
      %v4194 = vadd.f32 %v4012, %v4193
      %4195 = vmatmul.f32.gmra.mxu0 %v4081
      %v4196 = vpop.f32.mrf.mxu0
      %v4197 = vadd.f32 %v4012, %v4196
      %4198 = vmatmul.f32.gmra.mxu0 %v4084
      %v4199 = vpop.f32.mrf.mxu0
      %v4200 = vadd.f32 %v4012, %v4199
      %4201 = vmatmul.f32.gmra.mxu0 %v4087
      %v4202 = vpop.f32.mrf.mxu0
      %v4203 = vadd.f32 %v4012, %v4202
      %4204 = vmatmul.f32.gmra.mxu0 %v4090
      %v4205 = vpop.f32.mrf.mxu0
      %v4206 = vadd.f32 %v4012, %v4205
      %4207 = vmatmul.f32.gmra.mxu0 %v4093
      %v4208 = vpop.f32.mrf.mxu0
      %v4209 = vadd.f32 %v4012, %v4208
      %4210 = vmatmul.f32.gmra.mxu0 %v4096
      %v4211 = vpop.f32.mrf.mxu0
      %v4212 = vadd.f32 %v4012, %v4211
      %4213 = vmatmul.f32.gmra.mxu0 %v4099
      %v4214 = vpop.f32.mrf.mxu0
      %v4215 = vadd.f32 %v4012, %v4214
      %4216 = vmatmul.f32.gmra.mxu0 %v4102
      %v4217 = vpop.f32.mrf.mxu0
      %v4218 = vadd.f32 %v4012, %v4217
      %4219 = vmatmul.f32.gmra.mxu0 %v4105
      %v4220 = vpop.f32.mrf.mxu0
      %v4221 = vadd.f32 %v4012, %v4220
      %4222 = vmatmul.f32.gmra.mxu0 %v4108
      %v4223 = vpop.f32.mrf.mxu0
      %v4224 = vadd.f32 %v4012, %v4223
      %4225 = vdwg.mxu0
      %v4226 = vadd.f32 %v4131, %v225
      %v4227 = vadd.f32 %v4134, %v226
      %v4228 = vadd.f32 %v4137, %v227
      %v4229 = vadd.f32 %v4140, %v228
      %v4230 = vadd.f32 %v4143, %v229
      %v4231 = vadd.f32 %v4146, %v230
      %v4232 = vadd.f32 %v4149, %v231
      %v4233 = vadd.f32 %v4152, %v232
      %v4234 = vadd.f32 %v4155, %v233
      %v4235 = vadd.f32 %v4158, %v234
      %v4236 = vadd.f32 %v4161, %v235
      %v4237 = vadd.f32 %v4164, %v236
      %v4238 = vadd.f32 %v4167, %v237
      %v4239 = vadd.f32 %v4170, %v238
      %v4240 = vadd.f32 %v4173, %v239
      %v4241 = vadd.f32 %v4176, %v240
      %v4242 = vadd.f32 %v4179, %v241
      %v4243 = vadd.f32 %v4182, %v242
      %v4244 = vadd.f32 %v4185, %v243
      %v4245 = vadd.f32 %v4188, %v244
      %v4246 = vadd.f32 %v4191, %v245
      %v4247 = vadd.f32 %v4194, %v246
      %v4248 = vadd.f32 %v4197, %v247
      %v4249 = vadd.f32 %v4200, %v248
      %v4250 = vadd.f32 %v4203, %v249
      %v4251 = vadd.f32 %v4206, %v250
      %v4252 = vadd.f32 %v4209, %v251
      %v4253 = vadd.f32 %v4212, %v252
      %v4254 = vadd.f32 %v4215, %v253
      %v4255 = vadd.f32 %v4218, %v254
      %v4256 = vadd.f32 %v4221, %v255
      %v4257 = vadd.f32 %v4224, %v256
      %4258 = vst.msk [vmem:[%s224] sm:$0xff] %vm258, %v4226
      %4259 = vst.msk [vmem:[%s224 + $0x8] sm:$0xff] %vm258, %v4227
      %4260 = vst.msk [vmem:[%s224 + $0x10] sm:$0xff] %vm258, %v4228
      %4261 = vst.msk [vmem:[%s224 + $0x18] sm:$0xff] %vm258, %v4229
      %4262 = vst.msk [vmem:[%s224 + $0x20] sm:$0xff] %vm258, %v4230
      %4263 = vst.msk [vmem:[%s224 + $0x28] sm:$0xff] %vm258, %v4231
      %4264 = vst.msk [vmem:[%s224 + $0x30] sm:$0xff] %vm258, %v4232
      %4265 = vst.msk [vmem:[%s224 + $0x38] sm:$0xff] %vm258, %v4233
      %4266 = vst.msk [vmem:[%s224 + $0x40] sm:$0xff] %vm258, %v4234
      %4267 = vst.msk [vmem:[%s224 + $0x48] sm:$0xff] %vm258, %v4235
      %4268 = vst.msk [vmem:[%s224 + $0x50] sm:$0xff] %vm258, %v4236
      %4269 = vst.msk [vmem:[%s224 + $0x58] sm:$0xff] %vm258, %v4237
      %4270 = vst.msk [vmem:[%s224 + $0x60] sm:$0xff] %vm258, %v4238
      %4271 = vst.msk [vmem:[%s224 + $0x68] sm:$0xff] %vm258, %v4239
      %4272 = vst.msk [vmem:[%s224 + $0x70] sm:$0xff] %vm258, %v4240
      %4273 = vst.msk [vmem:[%s224 + $0x78] sm:$0xff] %vm258, %v4241
      %4274 = vst.msk [vmem:[%s224 + $0x80] sm:$0xff] %vm258, %v4242
      %4275 = vst.msk [vmem:[%s224 + $0x88] sm:$0xff] %vm258, %v4243
      %4276 = vst.msk [vmem:[%s224 + $0x90] sm:$0xff] %vm258, %v4244
      %4277 = vst.msk [vmem:[%s224 + $0x98] sm:$0xff] %vm258, %v4245
      %4278 = vst.msk [vmem:[%s224 + $0xa0] sm:$0xff] %vm258, %v4246
      %4279 = vst.msk [vmem:[%s224 + $0xa8] sm:$0xff] %vm258, %v4247
      %4280 = vst.msk [vmem:[%s224 + $0xb0] sm:$0xff] %vm258, %v4248
      %4281 = vst.msk [vmem:[%s224 + $0xb8] sm:$0xff] %vm258, %v4249
      %4282 = vst.msk [vmem:[%s224 + $0xc0] sm:$0xff] %vm258, %v4250
      %4283 = vst.msk [vmem:[%s224 + $0xc8] sm:$0xff] %vm258, %v4251
      %4284 = vst.msk [vmem:[%s224 + $0xd0] sm:$0xff] %vm258, %v4252
      %4285 = vst.msk [vmem:[%s224 + $0xd8] sm:$0xff] %vm258, %v4253
      %4286 = vst.msk [vmem:[%s224 + $0xe0] sm:$0xff] %vm258, %v4254
      %4287 = vst.msk [vmem:[%s224 + $0xe8] sm:$0xff] %vm258, %v4255
      %4288 = vst.msk [vmem:[%s224 + $0xf0] sm:$0xff] %vm258, %v4256
      %4289 = vst.msk [vmem:[%s224 + $0xf8] sm:$0xff] %vm258, %v4257
      %p4290 = scmp.lt.s32.totalorder %s16, 1
      %s4291 = scalar_select %p4290, %s16, 1
      %s4292 = smul.addr %s4291, 32
      %s4293 = smul.addr %s4292, 8
      %s4294 = scalar_lea.vmem %s5, %s4293
      // Predicated region
      $region41: #{tpu_custom_call.1} parent=39 // pred_check
        %p4295 = pneg %p144
      $region42: #{tpu_custom_call.1} parent=39 // pred_check_branch
        %4297 = sbr.rel (%p4295) target = $region44
      $region43: #{tpu_custom_call.1} parent=39 // pred_region
        _
      $region44: #{tpu_custom_call.1} parent=39 // pred_fallthru
        _
    $region40: #{tpu_custom_call.1} parent=5 // pred_fallthru
      _
    %p4298 = scmp.le.s32.totalorder 2, %s11
    // Predicated region
    $region45: #{tpu_custom_call.1} parent=5 // pred_check
      %p4299 = pneg %p4298
    $region46: #{tpu_custom_call.1} parent=5 // pred_check_branch
      %4301 = sbr.rel (%p4299) target = $region48
    $region47: #{tpu_custom_call.1} parent=5 // pred_region
      %s4302 = ssub.s32 %s11, 2
      // Predicated region
      $region49: #{tpu_custom_call.1} parent=47 // pred_check
        %p4303 = pneg %p150
      $region50: #{tpu_custom_call.1} parent=47 // pred_check_branch
        %4305 = sbr.rel (%p4303) target = $region52
      $region51: #{tpu_custom_call.1} parent=47 // pred_region
        %p4306 = scmp.lt.s32.totalorder %s17, 1
        %s4307 = scalar_select %p4306, %s17, 1
        %s4308 = smul.addr %s4307, 32
        %s4309 = smul.addr %s4308, 8
        %s4310 = scalar_lea.vmem %s5, %s4309
      $region52: #{tpu_custom_call.1} parent=47 // pred_fallthru
        _
    $region48: #{tpu_custom_call.1} parent=5 // pred_fallthru
      _
  $region6: #{tpu_custom_call.1} parent=0 // loop_footer
    %s15 = sadd.s32 1, %s11
  $region7: #{tpu_custom_call.1} parent=0 // loop_footer_branch
    %10 = sbr.rel target = $region3
  $region8: #{tpu_custom_call.1} parent=0 // loop_exit
    _

</llo_original>
